<compile_context>
chip_gen: v5e
topology: v5e:2x2
jax: 0.10.0
libtpu: 0.0.40
codegen_flags: <defaults>
</compile_context>

<pallas_src>
import math
from functools import partial

import jax
import jax.numpy as jnp
from jax import lax
from jax.experimental import pallas as pl
from jax.experimental.pallas import tpu as pltpu


# ----------------------------- fused Pallas kernel ------------------------------

def _fused_forward_kernel(*refs, nhead, emb_size, num_bins, out_width, ln_eps=1e-5):
    # ref layout: x, enc_w, enc_b, pe, 12x layer1, 12x layer2,
    #             dec_w, dec_b, bin1_w, bin1_b, bin2_w, bin2_b, out
    x_ref = refs[0]
    enc_w, enc_b, pe = refs[1], refs[2], refs[3]
    l1 = refs[4:16]
    l2 = refs[16:28]
    dec_w, dec_b, bin1_w, bin1_b, bin2_w, bin2_b = refs[28:34]
    o_ref = refs[34]

    def dense(h, w_ref, b_ref, relu=False):
        y = jnp.dot(h, w_ref[...], preferred_element_type=jnp.float32) + b_ref[...]
        return jnp.maximum(y, 0.0) if relu else y

    def layer_norm(h, g_ref, b_ref):
        mu = jnp.mean(h, axis=-1, keepdims=True)
        hc = h - mu
        var = jnp.mean(hc * hc, axis=-1, keepdims=True)
        return hc * lax.rsqrt(var + ln_eps) * g_ref[...] + b_ref[...]

    def encoder_layer(h, p12):
        # PyTorch TransformerEncoderLayer, post-norm, ReLU, dropout = identity.
        inw, inb, ow, ob, n1g, n1b, f1w, f1b, f2w, f2b, n2g, n2b = p12
        S, D = h.shape
        Dh = D // nhead
        scale = 1.0 / math.sqrt(Dh)

        qkv = dense(h, inw, inb)                                   # (S, 3D)
        attn = jnp.zeros((S, D), jnp.float32)
        for hh in range(nhead):                                    # static unroll
            qh = qkv[:, hh * Dh:(hh + 1) * Dh]
            kh = qkv[:, D + hh * Dh:D + (hh + 1) * Dh]
            vh = qkv[:, 2 * D + hh * Dh:2 * D + (hh + 1) * Dh]
            s = jnp.dot(qh, kh.T, preferred_element_type=jnp.float32) * scale
            m = jnp.max(s, axis=-1, keepdims=True)
            p = jnp.exp(s - m)
            p = p * pl.reciprocal(jnp.sum(p, axis=-1, keepdims=True), approx=True)
            head = jnp.dot(p, vh, preferred_element_type=jnp.float32)
            # concat(heads) @ Wo  ==  sum_h head_h @ Wo[h*Dh:(h+1)*Dh, :]
            attn = attn + jnp.dot(head, ow[hh * Dh:(hh + 1) * Dh, :],
                                  preferred_element_type=jnp.float32)
        attn = attn + ob[...]

        h = layer_norm(h + attn, n1g, n1b)
        ff = dense(dense(h, f1w, f1b, relu=True), f2w, f2b)
        return layer_norm(h + ff, n2g, n2b)

    # ---- encoder linear + positional encoding (fused) ----
    x = x_ref[0]                                                   # (S, nb_bins)
    h = dense(x, enc_w, enc_b) + pe[...]                           # (S, D)

    # ---- two transformer encoder layers ----
    h = encoder_layer(h, l1)
    emb = encoder_layer(h, l2)

    # ---- decoder -> 3-D structure ----
    z = dense(emb, dec_w, dec_b)                                   # (S, E)

    # TODO(synk): centralize_and_normalize_torch source not in the snippet;
    # implemented as mean-centering over loci + scaling by the max locus norm
    # (epsilon-guarded).
    zc = z - jnp.mean(z, axis=0, keepdims=True)
    sqn = jnp.sum(zc * zc, axis=-1, keepdims=True)                 # (S, 1)
    z = zc * lax.rsqrt(jnp.max(sqn) + 1e-12)

    # ---- confidence-bin logits ----
    logits = dense(dense(emb, bin1_w, bin1_b, relu=True), bin2_w, bin2_b)  # (S, NB)

    # ---- pairwise Euclidean distances (direct differences, E is tiny) ----
    S = z.shape[0]
    d2 = jnp.zeros((S, S), jnp.float32)
    for e in range(emb_size):                                      # static unroll
        col = z[:, e:e + 1]                                        # (S, 1)
        diff = col - col.T                                         # (S, S)
        d2 = d2 + diff * diff
    w = jnp.sqrt(d2)

    # ---- single lane-dense packed output: [z | w | logits | zero pad] ----
    pad = out_width - (emb_size + S + num_bins)
    o_ref[0] = jnp.concatenate(
        [z, w, logits, jnp.zeros((S, pad), jnp.float32)], axis=-1)


# ------------------------- wrapper (builds specs, calls kernel) --------------------------

_LAYER_KEYS = ("in_proj_w", "in_proj_b", "out_proj_w", "out_proj_b",
               "norm1_g", "norm1_b", "lin1_w", "lin1_b",
               "lin2_w", "lin2_b", "norm2_g", "norm2_b")


def _as2d(a):
    return a.reshape(1, -1) if a.ndim == 1 else a


def trans_conf_forward(x, params, cfg):
    B, S = cfg["batch_size"], cfg["nb_bins"]
    E, NB, H = cfg["embedding_size"], cfg["num_bins_logits"], cfg["nb_head"]

    x = x.reshape(B, S, S)
    pe = params["pe"][:S, 0]                                       # (S, D)

    def flat_layer(lp):
        return [_as2d(lp[k]) for k in _LAYER_KEYS]

    inputs = [x,
              params["enc_w"], _as2d(params["enc_b"]), pe,
              *flat_layer(params["layer1"]),
              *flat_layer(params["layer2"]),
              params["dec_w"], _as2d(params["dec_b"]),
              params["bin1_w"], _as2d(params["bin1_b"]),
              params["bin2_w"], _as2d(params["bin2_b"])]

    out_w = max(128, ((E + S + NB + 127) // 128) * 128)            # lane-dense slab

    in_specs = [pl.BlockSpec((1, S, S), lambda b: (b, 0, 0))]
    for a in inputs[1:]:
        in_specs.append(pl.BlockSpec(a.shape, lambda b: (0, 0)))   # weights: resident

    packed = pl.pallas_call(
        partial(_fused_forward_kernel, nhead=H, emb_size=E,
                num_bins=NB, out_width=out_w),
        out_shape=jax.ShapeDtypeStruct((B, S, out_w), jnp.float32),
        grid=(B,),
        in_specs=in_specs,
        out_specs=pl.BlockSpec((1, S, out_w), lambda b: (b, 0, 0)),
        compiler_params=pltpu.CompilerParams(
            dimension_semantics=("parallel",)),                    # 2 TCs on v7x
    )(*inputs)

    z = packed[:, :, :E]
    w = packed[:, :, E:E + S]
    logits = packed[:, :, E + S:E + S + NB]
    return z, w, logits


# ------------------------------ parameters ---------------------------------

def _dense_init(key, fan_in, fan_out, scale=0.1):
    kw, kb = jax.random.split(key)
    w = jax.random.uniform(kw, (fan_in, fan_out), jnp.float32, -scale, scale)
    b = jax.random.uniform(kb, (fan_out,), jnp.float32, -scale, scale)
    return w, b


def _layer_params(key, d, dff):
    ks = jax.random.split(key, 4)
    in_w, in_b = _dense_init(ks[0], d, 3 * d)
    out_w, out_b = _dense_init(ks[1], d, d)
    l1_w, l1_b = _dense_init(ks[2], d, dff)
    l2_w, l2_b = _dense_init(ks[3], dff, d)
    return dict(in_proj_w=in_w, in_proj_b=in_b, out_proj_w=out_w, out_proj_b=out_b,
                lin1_w=l1_w, lin1_b=l1_b, lin2_w=l2_w, lin2_b=l2_b,
                norm1_g=jnp.ones((d,), jnp.float32), norm1_b=jnp.zeros((d,), jnp.float32),
                norm2_g=jnp.ones((d,), jnp.float32), norm2_b=jnp.zeros((d,), jnp.float32))


def _make_pe(d_model, max_len=64):
    position = jnp.arange(max_len, dtype=jnp.float32)[:, None]
    div_term = jnp.exp(jnp.arange(0, d_model, 2, dtype=jnp.float32)
                       * (-math.log(10000.0) / d_model))
    pe = jnp.zeros((max_len, 1, d_model), jnp.float32)
    pe = pe.at[:, 0, 0::2].set(jnp.sin(position * div_term))
    pe = pe.at[:, 0, 1::2].set(jnp.cos(position * div_term))
    return pe


def init_params(key, cfg):
    S, D = cfg["nb_bins"], cfg["nb_hidden"]
    E, NB = cfg["embedding_size"], cfg["num_bins_logits"]
    ks = jax.random.split(key, 6)
    enc_w, enc_b = _dense_init(ks[0], S, D)
    dec_w, dec_b = _dense_init(ks[1], D, E)
    # NOTE: module default zero_init=True would zero these weights (degenerate
    # output); a non-zero deterministic init is used so the kernel does real work.
    bin1_w, bin1_b = _dense_init(ks[2], D, NB)
    bin2_w, bin2_b = _dense_init(ks[3], NB, NB)
    return dict(enc_w=enc_w, enc_b=enc_b, dec_w=dec_w, dec_b=dec_b,
                bin1_w=bin1_w, bin1_b=bin1_b, bin2_w=bin2_w, bin2_b=bin2_b,
                pe=_make_pe(D),
                layer1=_layer_params(ks[4], D, D),                  # dff = nb_hidden
                layer2=_layer_params(ks[5], D, cfg["secd_hid"]))    # dff = secd_hid


# --------------------------------- main -------------------------------------

if __name__ == "__main__":
    cfg = dict(nb_bins=16, embedding_size=3, batch_size=2, num_bins_logits=10,
               nb_head=2, nb_hidden=32, secd_hid=16)

    key = jax.random.PRNGKey(0)
    kx, kp = jax.random.split(key)
    x = jax.random.normal(kx, (cfg["batch_size"], cfg["nb_bins"], cfg["nb_bins"]),
                          jnp.float32)
    params = init_params(kp, cfg)

    fwd = jax.jit(lambda xx, pp: trans_conf_forward(xx, pp, cfg))
    z, w, logits = fwd(x, params)
    jax.block_until_ready((z, w, logits))

    assert z.shape == (2, 16, 3)
    assert w.shape == (2, 16, 16)
    assert logits.shape == (2, 16, 10)
    assert bool(jnp.all(jnp.isfinite(z)))
    assert bool(jnp.all(jnp.isfinite(w)))
    assert bool(jnp.all(jnp.isfinite(logits)))
    print("KERNEL_OK")
</pallas_src>

<mosaic_0001>
module attributes {stable_mosaic.version = 11 : i64} {
  func.func @_fused_forward_kernel(%arg0: i32, %arg1: memref<1x16x16xf32, #tpu.memory_space<vmem>>, %arg2: memref<16x32xf32, #tpu.memory_space<vmem>>, %arg3: memref<1x32xf32, #tpu.memory_space<vmem>>, %arg4: memref<16x32xf32, #tpu.memory_space<vmem>>, %arg5: memref<32x96xf32, #tpu.memory_space<vmem>>, %arg6: memref<1x96xf32, #tpu.memory_space<vmem>>, %arg7: memref<32x32xf32, #tpu.memory_space<vmem>>, %arg8: memref<1x32xf32, #tpu.memory_space<vmem>>, %arg9: memref<1x32xf32, #tpu.memory_space<vmem>>, %arg10: memref<1x32xf32, #tpu.memory_space<vmem>>, %arg11: memref<32x32xf32, #tpu.memory_space<vmem>>, %arg12: memref<1x32xf32, #tpu.memory_space<vmem>>, %arg13: memref<32x32xf32, #tpu.memory_space<vmem>>, %arg14: memref<1x32xf32, #tpu.memory_space<vmem>>, %arg15: memref<1x32xf32, #tpu.memory_space<vmem>>, %arg16: memref<1x32xf32, #tpu.memory_space<vmem>>, %arg17: memref<32x96xf32, #tpu.memory_space<vmem>>, %arg18: memref<1x96xf32, #tpu.memory_space<vmem>>, %arg19: memref<32x32xf32, #tpu.memory_space<vmem>>, %arg20: memref<1x32xf32, #tpu.memory_space<vmem>>, %arg21: memref<1x32xf32, #tpu.memory_space<vmem>>, %arg22: memref<1x32xf32, #tpu.memory_space<vmem>>, %arg23: memref<32x16xf32, #tpu.memory_space<vmem>>, %arg24: memref<1x16xf32, #tpu.memory_space<vmem>>, %arg25: memref<16x32xf32, #tpu.memory_space<vmem>>, %arg26: memref<1x32xf32, #tpu.memory_space<vmem>>, %arg27: memref<1x32xf32, #tpu.memory_space<vmem>>, %arg28: memref<1x32xf32, #tpu.memory_space<vmem>>, %arg29: memref<32x3xf32, #tpu.memory_space<vmem>>, %arg30: memref<1x3xf32, #tpu.memory_space<vmem>>, %arg31: memref<32x10xf32, #tpu.memory_space<vmem>>, %arg32: memref<1x10xf32, #tpu.memory_space<vmem>>, %arg33: memref<10x10xf32, #tpu.memory_space<vmem>>, %arg34: memref<1x10xf32, #tpu.memory_space<vmem>>, %arg35: memref<1x16x128xf32, #tpu.memory_space<vmem>>) attributes {dimension_semantics = [#tpu.dimension_semantics<parallel>], iteration_bounds = array<i64: 2>, scalar_prefetch = 0 : i64, scratch_operands = 0 : i64, tpu.core_type = #tpu.core_type<tc>, window_params = [{transform_indices = @transform_0, window_bounds = array<i64: 1, 16, 16>}, {pipeline_mode = #tpu.pipeline_mode<synchronous>, transform_indices = @transform_1, window_bounds = array<i64: 16, 32>}, {pipeline_mode = #tpu.pipeline_mode<synchronous>, transform_indices = @transform_2, window_bounds = array<i64: 1, 32>}, {pipeline_mode = #tpu.pipeline_mode<synchronous>, transform_indices = @transform_3, window_bounds = array<i64: 16, 32>}, {pipeline_mode = #tpu.pipeline_mode<synchronous>, transform_indices = @transform_4, window_bounds = array<i64: 32, 96>}, {pipeline_mode = #tpu.pipeline_mode<synchronous>, transform_indices = @transform_5, window_bounds = array<i64: 1, 96>}, {pipeline_mode = #tpu.pipeline_mode<synchronous>, transform_indices = @transform_6, window_bounds = array<i64: 32, 32>}, {pipeline_mode = #tpu.pipeline_mode<synchronous>, transform_indices = @transform_7, window_bounds = array<i64: 1, 32>}, {pipeline_mode = #tpu.pipeline_mode<synchronous>, transform_indices = @transform_8, window_bounds = array<i64: 1, 32>}, {pipeline_mode = #tpu.pipeline_mode<synchronous>, transform_indices = @transform_9, window_bounds = array<i64: 1, 32>}, {pipeline_mode = #tpu.pipeline_mode<synchronous>, transform_indices = @transform_10, window_bounds = array<i64: 32, 32>}, {pipeline_mode = #tpu.pipeline_mode<synchronous>, transform_indices = @transform_11, window_bounds = array<i64: 1, 32>}, {pipeline_mode = #tpu.pipeline_mode<synchronous>, transform_indices = @transform_12, window_bounds = array<i64: 32, 32>}, {pipeline_mode = #tpu.pipeline_mode<synchronous>, transform_indices = @transform_13, window_bounds = array<i64: 1, 32>}, {pipeline_mode = #tpu.pipeline_mode<synchronous>, transform_indices = @transform_14, window_bounds = array<i64: 1, 32>}, {pipeline_mode = #tpu.pipeline_mode<synchronous>, transform_indices = @transform_15, window_bounds = array<i64: 1, 32>}, {pipeline_mode = #tpu.pipeline_mode<synchronous>, transform_indices = @transform_16, window_bounds = array<i64: 32, 96>}, {pipeline_mode = #tpu.pipeline_mode<synchronous>, transform_indices = @transform_17, window_bounds = array<i64: 1, 96>}, {pipeline_mode = #tpu.pipeline_mode<synchronous>, transform_indices = @transform_18, window_bounds = array<i64: 32, 32>}, {pipeline_mode = #tpu.pipeline_mode<synchronous>, transform_indices = @transform_19, window_bounds = array<i64: 1, 32>}, {pipeline_mode = #tpu.pipeline_mode<synchronous>, transform_indices = @transform_20, window_bounds = array<i64: 1, 32>}, {pipeline_mode = #tpu.pipeline_mode<synchronous>, transform_indices = @transform_21, window_bounds = array<i64: 1, 32>}, {pipeline_mode = #tpu.pipeline_mode<synchronous>, transform_indices = @transform_22, window_bounds = array<i64: 32, 16>}, {pipeline_mode = #tpu.pipeline_mode<synchronous>, transform_indices = @transform_23, window_bounds = array<i64: 1, 16>}, {pipeline_mode = #tpu.pipeline_mode<synchronous>, transform_indices = @transform_24, window_bounds = array<i64: 16, 32>}, {pipeline_mode = #tpu.pipeline_mode<synchronous>, transform_indices = @transform_25, window_bounds = array<i64: 1, 32>}, {pipeline_mode = #tpu.pipeline_mode<synchronous>, transform_indices = @transform_26, window_bounds = array<i64: 1, 32>}, {pipeline_mode = #tpu.pipeline_mode<synchronous>, transform_indices = @transform_27, window_bounds = array<i64: 1, 32>}, {pipeline_mode = #tpu.pipeline_mode<synchronous>, transform_indices = @transform_28, window_bounds = array<i64: 32, 3>}, {pipeline_mode = #tpu.pipeline_mode<synchronous>, transform_indices = @transform_29, window_bounds = array<i64: 1, 3>}, {pipeline_mode = #tpu.pipeline_mode<synchronous>, transform_indices = @transform_30, window_bounds = array<i64: 32, 10>}, {pipeline_mode = #tpu.pipeline_mode<synchronous>, transform_indices = @transform_31, window_bounds = array<i64: 1, 10>}, {pipeline_mode = #tpu.pipeline_mode<synchronous>, transform_indices = @transform_32, window_bounds = array<i64: 10, 10>}, {pipeline_mode = #tpu.pipeline_mode<synchronous>, transform_indices = @transform_33, window_bounds = array<i64: 1, 10>}, {transform_indices = @transform_34, window_bounds = array<i64: 1, 16, 128>}]} {
    %c0 = arith.constant 0 : index
    %c0_0 = arith.constant 0 : index
    %c0_1 = arith.constant 0 : index
    %0 = vector.load %arg1[%c0, %c0_0, %c0_1] : memref<1x16x16xf32, #tpu.memory_space<vmem>>, vector<1x16x16xf32>
    %1 = vector.shape_cast %0 : vector<1x16x16xf32> to vector<16x16xf32>
    %c0_2 = arith.constant 0 : index
    %c0_3 = arith.constant 0 : index
    %2 = vector.load %arg2[%c0_2, %c0_3] : memref<16x32xf32, #tpu.memory_space<vmem>>, vector<16x32xf32>
    %cst = arith.constant dense<0.000000e+00> : vector<16x32xf32>
    %3 = tpu.matmul %1, %2, %cst {dimension_numbers = #tpu.dot_dimension_numbers<[1], [0], [0], [1], [0, 0, 1, 1], [], []>} : vector<16x16xf32>, vector<16x32xf32>, vector<16x32xf32> -> vector<16x32xf32>
    %c0_4 = arith.constant 0 : index
    %c0_5 = arith.constant 0 : index
    %4 = vector.load %arg3[%c0_4, %c0_5] : memref<1x32xf32, #tpu.memory_space<vmem>>, vector<1x32xf32>
    %5 = vector.broadcast %4 : vector<1x32xf32> to vector<16x32xf32>
    %6 = arith.addf %3, %5 : vector<16x32xf32>
    %c0_6 = arith.constant 0 : index
    %c0_7 = arith.constant 0 : index
    %7 = vector.load %arg4[%c0_6, %c0_7] : memref<16x32xf32, #tpu.memory_space<vmem>>, vector<16x32xf32>
    %8 = arith.addf %6, %7 : vector<16x32xf32>
    %c0_8 = arith.constant 0 : index
    %c0_9 = arith.constant 0 : index
    %9 = vector.load %arg5[%c0_8, %c0_9] : memref<32x96xf32, #tpu.memory_space<vmem>>, vector<32x96xf32>
    %cst_10 = arith.constant dense<0.000000e+00> : vector<16x96xf32>
    %10 = tpu.matmul %8, %9, %cst_10 {dimension_numbers = #tpu.dot_dimension_numbers<[1], [0], [0], [1], [0, 0, 1, 1], [], []>} : vector<16x32xf32>, vector<32x96xf32>, vector<16x96xf32> -> vector<16x96xf32>
    %c0_11 = arith.constant 0 : index
    %c0_12 = arith.constant 0 : index
    %11 = vector.load %arg6[%c0_11, %c0_12] : memref<1x96xf32, #tpu.memory_space<vmem>>, vector<1x96xf32>
    %12 = vector.broadcast %11 : vector<1x96xf32> to vector<16x96xf32>
    %13 = arith.addf %10, %12 : vector<16x96xf32>
    %cst_13 = arith.constant 0.000000e+00 : f32
    %14 = vector.broadcast %cst_13 : f32 to vector<16x32xf32>
    %15 = vector.extract_strided_slice %13 {offsets = [0, 0], sizes = [16, 16], strides = [1, 1]} : vector<16x96xf32> to vector<16x16xf32>
    %16 = vector.extract_strided_slice %13 {offsets = [0, 32], sizes = [16, 16], strides = [1, 1]} : vector<16x96xf32> to vector<16x16xf32>
    %17 = vector.extract_strided_slice %13 {offsets = [0, 64], sizes = [16, 16], strides = [1, 1]} : vector<16x96xf32> to vector<16x16xf32>
    %18 = tpu.transpose %16, [1, 0] : vector<16x16xf32> -> vector<16x16xf32>
    %cst_14 = arith.constant dense<0.000000e+00> : vector<16x16xf32>
    %19 = tpu.matmul %15, %18, %cst_14 {dimension_numbers = #tpu.dot_dimension_numbers<[1], [0], [0], [1], [0, 0, 1, 1], [], []>} : vector<16x16xf32>, vector<16x16xf32>, vector<16x16xf32> -> vector<16x16xf32>
    %cst_15 = arith.constant 2.500000e-01 : f32
    %20 = vector.broadcast %cst_15 : f32 to vector<16x16xf32>
    %21 = arith.mulf %19, %20 : vector<16x16xf32>
    %cst_16 = arith.constant dense<0xFF800000> : vector<16xf32>
    %22 = vector.multi_reduction <maximumf>, %21, %cst_16 [1] : vector<16x16xf32> to vector<16xf32>
    %23 = vector.shape_cast %22 : vector<16xf32> to vector<16x1xf32>
    %24 = vector.broadcast %23 : vector<16x1xf32> to vector<16x16xf32>
    %25 = arith.subf %21, %24 : vector<16x16xf32>
    %26 = math.exp %25 : vector<16x16xf32>
    %cst_17 = arith.constant dense<0.000000e+00> : vector<16xf32>
    %27 = vector.multi_reduction <add>, %26, %cst_17 [1] : vector<16x16xf32> to vector<16xf32>
    %28 = vector.shape_cast %27 : vector<16xf32> to vector<16x1xf32>
    %29 = tpu.reciprocal %28 {approx = true} : vector<16x1xf32> -> vector<16x1xf32>
    %30 = vector.broadcast %29 : vector<16x1xf32> to vector<16x16xf32>
    %31 = arith.mulf %26, %30 : vector<16x16xf32>
    %cst_18 = arith.constant dense<0.000000e+00> : vector<16x16xf32>
    %32 = tpu.matmul %31, %17, %cst_18 {dimension_numbers = #tpu.dot_dimension_numbers<[1], [0], [0], [1], [0, 0, 1, 1], [], []>} : vector<16x16xf32>, vector<16x16xf32>, vector<16x16xf32> -> vector<16x16xf32>
    %c0_19 = arith.constant 0 : index
    %c0_20 = arith.constant 0 : index
    %33 = vector.load %arg7[%c0_19, %c0_20] : memref<32x32xf32, #tpu.memory_space<vmem>>, vector<16x32xf32>
    %cst_21 = arith.constant dense<0.000000e+00> : vector<16x32xf32>
    %34 = tpu.matmul %32, %33, %cst_21 {dimension_numbers = #tpu.dot_dimension_numbers<[1], [0], [0], [1], [0, 0, 1, 1], [], []>} : vector<16x16xf32>, vector<16x32xf32>, vector<16x32xf32> -> vector<16x32xf32>
    %35 = arith.addf %14, %34 : vector<16x32xf32>
    %36 = vector.extract_strided_slice %13 {offsets = [0, 16], sizes = [16, 16], strides = [1, 1]} : vector<16x96xf32> to vector<16x16xf32>
    %37 = vector.extract_strided_slice %13 {offsets = [0, 48], sizes = [16, 16], strides = [1, 1]} : vector<16x96xf32> to vector<16x16xf32>
    %38 = vector.extract_strided_slice %13 {offsets = [0, 80], sizes = [16, 16], strides = [1, 1]} : vector<16x96xf32> to vector<16x16xf32>
    %39 = tpu.transpose %37, [1, 0] : vector<16x16xf32> -> vector<16x16xf32>
    %cst_22 = arith.constant dense<0.000000e+00> : vector<16x16xf32>
    %40 = tpu.matmul %36, %39, %cst_22 {dimension_numbers = #tpu.dot_dimension_numbers<[1], [0], [0], [1], [0, 0, 1, 1], [], []>} : vector<16x16xf32>, vector<16x16xf32>, vector<16x16xf32> -> vector<16x16xf32>
    %cst_23 = arith.constant 2.500000e-01 : f32
    %41 = vector.broadcast %cst_23 : f32 to vector<16x16xf32>
    %42 = arith.mulf %40, %41 : vector<16x16xf32>
    %cst_24 = arith.constant dense<0xFF800000> : vector<16xf32>
    %43 = vector.multi_reduction <maximumf>, %42, %cst_24 [1] : vector<16x16xf32> to vector<16xf32>
    %44 = vector.shape_cast %43 : vector<16xf32> to vector<16x1xf32>
    %45 = vector.broadcast %44 : vector<16x1xf32> to vector<16x16xf32>
    %46 = arith.subf %42, %45 : vector<16x16xf32>
    %47 = math.exp %46 : vector<16x16xf32>
    %cst_25 = arith.constant dense<0.000000e+00> : vector<16xf32>
    %48 = vector.multi_reduction <add>, %47, %cst_25 [1] : vector<16x16xf32> to vector<16xf32>
    %49 = vector.shape_cast %48 : vector<16xf32> to vector<16x1xf32>
    %50 = tpu.reciprocal %49 {approx = true} : vector<16x1xf32> -> vector<16x1xf32>
    %51 = vector.broadcast %50 : vector<16x1xf32> to vector<16x16xf32>
    %52 = arith.mulf %47, %51 : vector<16x16xf32>
    %cst_26 = arith.constant dense<0.000000e+00> : vector<16x16xf32>
    %53 = tpu.matmul %52, %38, %cst_26 {dimension_numbers = #tpu.dot_dimension_numbers<[1], [0], [0], [1], [0, 0, 1, 1], [], []>} : vector<16x16xf32>, vector<16x16xf32>, vector<16x16xf32> -> vector<16x16xf32>
    %c16 = arith.constant 16 : index
    %c0_27 = arith.constant 0 : index
    %54 = vector.load %arg7[%c16, %c0_27] : memref<32x32xf32, #tpu.memory_space<vmem>>, vector<16x32xf32>
    %cst_28 = arith.constant dense<0.000000e+00> : vector<16x32xf32>
    %55 = tpu.matmul %53, %54, %cst_28 {dimension_numbers = #tpu.dot_dimension_numbers<[1], [0], [0], [1], [0, 0, 1, 1], [], []>} : vector<16x16xf32>, vector<16x32xf32>, vector<16x32xf32> -> vector<16x32xf32>
    %56 = arith.addf %35, %55 : vector<16x32xf32>
    %c0_29 = arith.constant 0 : index
    %c0_30 = arith.constant 0 : index
    %57 = vector.load %arg8[%c0_29, %c0_30] : memref<1x32xf32, #tpu.memory_space<vmem>>, vector<1x32xf32>
    %58 = vector.broadcast %57 : vector<1x32xf32> to vector<16x32xf32>
    %59 = arith.addf %56, %58 : vector<16x32xf32>
    %60 = arith.addf %8, %59 : vector<16x32xf32>
    %cst_31 = arith.constant dense<0.000000e+00> : vector<16xf32>
    %61 = vector.multi_reduction <add>, %60, %cst_31 [1] : vector<16x32xf32> to vector<16xf32>
    %62 = vector.shape_cast %61 : vector<16xf32> to vector<16x1xf32>
    %cst_32 = arith.constant 3.200000e+01 : f32
    %63 = vector.broadcast %cst_32 : f32 to vector<16x1xf32>
    %64 = arith.divf %62, %63 : vector<16x1xf32>
    %65 = vector.broadcast %64 : vector<16x1xf32> to vector<16x32xf32>
    %66 = arith.subf %60, %65 : vector<16x32xf32>
    %67 = arith.mulf %66, %66 : vector<16x32xf32>
    %cst_33 = arith.constant dense<0.000000e+00> : vector<16xf32>
    %68 = vector.multi_reduction <add>, %67, %cst_33 [1] : vector<16x32xf32> to vector<16xf32>
    %69 = vector.shape_cast %68 : vector<16xf32> to vector<16x1xf32>
    %cst_34 = arith.constant 3.200000e+01 : f32
    %70 = vector.broadcast %cst_34 : f32 to vector<16x1xf32>
    %71 = arith.divf %69, %70 : vector<16x1xf32>
    %cst_35 = arith.constant 9.99999974E-6 : f32
    %72 = vector.broadcast %cst_35 : f32 to vector<16x1xf32>
    %73 = arith.addf %71, %72 : vector<16x1xf32>
    %74 = math.rsqrt %73 : vector<16x1xf32>
    %75 = vector.broadcast %74 : vector<16x1xf32> to vector<16x32xf32>
    %76 = arith.mulf %66, %75 : vector<16x32xf32>
    %c0_36 = arith.constant 0 : index
    %c0_37 = arith.constant 0 : index
    %77 = vector.load %arg9[%c0_36, %c0_37] : memref<1x32xf32, #tpu.memory_space<vmem>>, vector<1x32xf32>
    %78 = vector.broadcast %77 : vector<1x32xf32> to vector<16x32xf32>
    %79 = arith.mulf %76, %78 : vector<16x32xf32>
    %c0_38 = arith.constant 0 : index
    %c0_39 = arith.constant 0 : index
    %80 = vector.load %arg10[%c0_38, %c0_39] : memref<1x32xf32, #tpu.memory_space<vmem>>, vector<1x32xf32>
    %81 = vector.broadcast %80 : vector<1x32xf32> to vector<16x32xf32>
    %82 = arith.addf %79, %81 : vector<16x32xf32>
    %c0_40 = arith.constant 0 : index
    %c0_41 = arith.constant 0 : index
    %83 = vector.load %arg11[%c0_40, %c0_41] : memref<32x32xf32, #tpu.memory_space<vmem>>, vector<32x32xf32>
    %cst_42 = arith.constant dense<0.000000e+00> : vector<16x32xf32>
    %84 = tpu.matmul %82, %83, %cst_42 {dimension_numbers = #tpu.dot_dimension_numbers<[1], [0], [0], [1], [0, 0, 1, 1], [], []>} : vector<16x32xf32>, vector<32x32xf32>, vector<16x32xf32> -> vector<16x32xf32>
    %c0_43 = arith.constant 0 : index
    %c0_44 = arith.constant 0 : index
    %85 = vector.load %arg12[%c0_43, %c0_44] : memref<1x32xf32, #tpu.memory_space<vmem>>, vector<1x32xf32>
    %86 = vector.broadcast %85 : vector<1x32xf32> to vector<16x32xf32>
    %87 = arith.addf %84, %86 : vector<16x32xf32>
    %cst_45 = arith.constant 0.000000e+00 : f32
    %88 = vector.broadcast %cst_45 : f32 to vector<16x32xf32>
    %89 = arith.maximumf %87, %88 : vector<16x32xf32>
    %c0_46 = arith.constant 0 : index
    %c0_47 = arith.constant 0 : index
    %90 = vector.load %arg13[%c0_46, %c0_47] : memref<32x32xf32, #tpu.memory_space<vmem>>, vector<32x32xf32>
    %cst_48 = arith.constant dense<0.000000e+00> : vector<16x32xf32>
    %91 = tpu.matmul %89, %90, %cst_48 {dimension_numbers = #tpu.dot_dimension_numbers<[1], [0], [0], [1], [0, 0, 1, 1], [], []>} : vector<16x32xf32>, vector<32x32xf32>, vector<16x32xf32> -> vector<16x32xf32>
    %c0_49 = arith.constant 0 : index
    %c0_50 = arith.constant 0 : index
    %92 = vector.load %arg14[%c0_49, %c0_50] : memref<1x32xf32, #tpu.memory_space<vmem>>, vector<1x32xf32>
    %93 = vector.broadcast %92 : vector<1x32xf32> to vector<16x32xf32>
    %94 = arith.addf %91, %93 : vector<16x32xf32>
    %95 = arith.addf %82, %94 : vector<16x32xf32>
    %cst_51 = arith.constant dense<0.000000e+00> : vector<16xf32>
    %96 = vector.multi_reduction <add>, %95, %cst_51 [1] : vector<16x32xf32> to vector<16xf32>
    %97 = vector.shape_cast %96 : vector<16xf32> to vector<16x1xf32>
    %cst_52 = arith.constant 3.200000e+01 : f32
    %98 = vector.broadcast %cst_52 : f32 to vector<16x1xf32>
    %99 = arith.divf %97, %98 : vector<16x1xf32>
    %100 = vector.broadcast %99 : vector<16x1xf32> to vector<16x32xf32>
    %101 = arith.subf %95, %100 : vector<16x32xf32>
    %102 = arith.mulf %101, %101 : vector<16x32xf32>
    %cst_53 = arith.constant dense<0.000000e+00> : vector<16xf32>
    %103 = vector.multi_reduction <add>, %102, %cst_53 [1] : vector<16x32xf32> to vector<16xf32>
    %104 = vector.shape_cast %103 : vector<16xf32> to vector<16x1xf32>
    %cst_54 = arith.constant 3.200000e+01 : f32
    %105 = vector.broadcast %cst_54 : f32 to vector<16x1xf32>
    %106 = arith.divf %104, %105 : vector<16x1xf32>
    %cst_55 = arith.constant 9.99999974E-6 : f32
    %107 = vector.broadcast %cst_55 : f32 to vector<16x1xf32>
    %108 = arith.addf %106, %107 : vector<16x1xf32>
    %109 = math.rsqrt %108 : vector<16x1xf32>
    %110 = vector.broadcast %109 : vector<16x1xf32> to vector<16x32xf32>
    %111 = arith.mulf %101, %110 : vector<16x32xf32>
    %c0_56 = arith.constant 0 : index
    %c0_57 = arith.constant 0 : index
    %112 = vector.load %arg15[%c0_56, %c0_57] : memref<1x32xf32, #tpu.memory_space<vmem>>, vector<1x32xf32>
    %113 = vector.broadcast %112 : vector<1x32xf32> to vector<16x32xf32>
    %114 = arith.mulf %111, %113 : vector<16x32xf32>
    %c0_58 = arith.constant 0 : index
    %c0_59 = arith.constant 0 : index
    %115 = vector.load %arg16[%c0_58, %c0_59] : memref<1x32xf32, #tpu.memory_space<vmem>>, vector<1x32xf32>
    %116 = vector.broadcast %115 : vector<1x32xf32> to vector<16x32xf32>
    %117 = arith.addf %114, %116 : vector<16x32xf32>
    %c0_60 = arith.constant 0 : index
    %c0_61 = arith.constant 0 : index
    %118 = vector.load %arg17[%c0_60, %c0_61] : memref<32x96xf32, #tpu.memory_space<vmem>>, vector<32x96xf32>
    %cst_62 = arith.constant dense<0.000000e+00> : vector<16x96xf32>
    %119 = tpu.matmul %117, %118, %cst_62 {dimension_numbers = #tpu.dot_dimension_numbers<[1], [0], [0], [1], [0, 0, 1, 1], [], []>} : vector<16x32xf32>, vector<32x96xf32>, vector<16x96xf32> -> vector<16x96xf32>
    %c0_63 = arith.constant 0 : index
    %c0_64 = arith.constant 0 : index
    %120 = vector.load %arg18[%c0_63, %c0_64] : memref<1x96xf32, #tpu.memory_space<vmem>>, vector<1x96xf32>
    %121 = vector.broadcast %120 : vector<1x96xf32> to vector<16x96xf32>
    %122 = arith.addf %119, %121 : vector<16x96xf32>
    %cst_65 = arith.constant 0.000000e+00 : f32
    %123 = vector.broadcast %cst_65 : f32 to vector<16x32xf32>
    %124 = vector.extract_strided_slice %122 {offsets = [0, 0], sizes = [16, 16], strides = [1, 1]} : vector<16x96xf32> to vector<16x16xf32>
    %125 = vector.extract_strided_slice %122 {offsets = [0, 32], sizes = [16, 16], strides = [1, 1]} : vector<16x96xf32> to vector<16x16xf32>
    %126 = vector.extract_strided_slice %122 {offsets = [0, 64], sizes = [16, 16], strides = [1, 1]} : vector<16x96xf32> to vector<16x16xf32>
    %127 = tpu.transpose %125, [1, 0] : vector<16x16xf32> -> vector<16x16xf32>
    %cst_66 = arith.constant dense<0.000000e+00> : vector<16x16xf32>
    %128 = tpu.matmul %124, %127, %cst_66 {dimension_numbers = #tpu.dot_dimension_numbers<[1], [0], [0], [1], [0, 0, 1, 1], [], []>} : vector<16x16xf32>, vector<16x16xf32>, vector<16x16xf32> -> vector<16x16xf32>
    %cst_67 = arith.constant 2.500000e-01 : f32
    %129 = vector.broadcast %cst_67 : f32 to vector<16x16xf32>
    %130 = arith.mulf %128, %129 : vector<16x16xf32>
    %cst_68 = arith.constant dense<0xFF800000> : vector<16xf32>
    %131 = vector.multi_reduction <maximumf>, %130, %cst_68 [1] : vector<16x16xf32> to vector<16xf32>
    %132 = vector.shape_cast %131 : vector<16xf32> to vector<16x1xf32>
    %133 = vector.broadcast %132 : vector<16x1xf32> to vector<16x16xf32>
    %134 = arith.subf %130, %133 : vector<16x16xf32>
    %135 = math.exp %134 : vector<16x16xf32>
    %cst_69 = arith.constant dense<0.000000e+00> : vector<16xf32>
    %136 = vector.multi_reduction <add>, %135, %cst_69 [1] : vector<16x16xf32> to vector<16xf32>
    %137 = vector.shape_cast %136 : vector<16xf32> to vector<16x1xf32>
    %138 = tpu.reciprocal %137 {approx = true} : vector<16x1xf32> -> vector<16x1xf32>
    %139 = vector.broadcast %138 : vector<16x1xf32> to vector<16x16xf32>
    %140 = arith.mulf %135, %139 : vector<16x16xf32>
    %cst_70 = arith.constant dense<0.000000e+00> : vector<16x16xf32>
    %141 = tpu.matmul %140, %126, %cst_70 {dimension_numbers = #tpu.dot_dimension_numbers<[1], [0], [0], [1], [0, 0, 1, 1], [], []>} : vector<16x16xf32>, vector<16x16xf32>, vector<16x16xf32> -> vector<16x16xf32>
    %c0_71 = arith.constant 0 : index
    %c0_72 = arith.constant 0 : index
    %142 = vector.load %arg19[%c0_71, %c0_72] : memref<32x32xf32, #tpu.memory_space<vmem>>, vector<16x32xf32>
    %cst_73 = arith.constant dense<0.000000e+00> : vector<16x32xf32>
    %143 = tpu.matmul %141, %142, %cst_73 {dimension_numbers = #tpu.dot_dimension_numbers<[1], [0], [0], [1], [0, 0, 1, 1], [], []>} : vector<16x16xf32>, vector<16x32xf32>, vector<16x32xf32> -> vector<16x32xf32>
    %144 = arith.addf %123, %143 : vector<16x32xf32>
    %145 = vector.extract_strided_slice %122 {offsets = [0, 16], sizes = [16, 16], strides = [1, 1]} : vector<16x96xf32> to vector<16x16xf32>
    %146 = vector.extract_strided_slice %122 {offsets = [0, 48], sizes = [16, 16], strides = [1, 1]} : vector<16x96xf32> to vector<16x16xf32>
    %147 = vector.extract_strided_slice %122 {offsets = [0, 80], sizes = [16, 16], strides = [1, 1]} : vector<16x96xf32> to vector<16x16xf32>
    %148 = tpu.transpose %146, [1, 0] : vector<16x16xf32> -> vector<16x16xf32>
    %cst_74 = arith.constant dense<0.000000e+00> : vector<16x16xf32>
    %149 = tpu.matmul %145, %148, %cst_74 {dimension_numbers = #tpu.dot_dimension_numbers<[1], [0], [0], [1], [0, 0, 1, 1], [], []>} : vector<16x16xf32>, vector<16x16xf32>, vector<16x16xf32> -> vector<16x16xf32>
    %cst_75 = arith.constant 2.500000e-01 : f32
    %150 = vector.broadcast %cst_75 : f32 to vector<16x16xf32>
    %151 = arith.mulf %149, %150 : vector<16x16xf32>
    %cst_76 = arith.constant dense<0xFF800000> : vector<16xf32>
    %152 = vector.multi_reduction <maximumf>, %151, %cst_76 [1] : vector<16x16xf32> to vector<16xf32>
    %153 = vector.shape_cast %152 : vector<16xf32> to vector<16x1xf32>
    %154 = vector.broadcast %153 : vector<16x1xf32> to vector<16x16xf32>
    %155 = arith.subf %151, %154 : vector<16x16xf32>
    %156 = math.exp %155 : vector<16x16xf32>
    %cst_77 = arith.constant dense<0.000000e+00> : vector<16xf32>
    %157 = vector.multi_reduction <add>, %156, %cst_77 [1] : vector<16x16xf32> to vector<16xf32>
    %158 = vector.shape_cast %157 : vector<16xf32> to vector<16x1xf32>
    %159 = tpu.reciprocal %158 {approx = true} : vector<16x1xf32> -> vector<16x1xf32>
    %160 = vector.broadcast %159 : vector<16x1xf32> to vector<16x16xf32>
    %161 = arith.mulf %156, %160 : vector<16x16xf32>
    %cst_78 = arith.constant dense<0.000000e+00> : vector<16x16xf32>
    %162 = tpu.matmul %161, %147, %cst_78 {dimension_numbers = #tpu.dot_dimension_numbers<[1], [0], [0], [1], [0, 0, 1, 1], [], []>} : vector<16x16xf32>, vector<16x16xf32>, vector<16x16xf32> -> vector<16x16xf32>
    %c16_79 = arith.constant 16 : index
    %c0_80 = arith.constant 0 : index
    %163 = vector.load %arg19[%c16_79, %c0_80] : memref<32x32xf32, #tpu.memory_space<vmem>>, vector<16x32xf32>
    %cst_81 = arith.constant dense<0.000000e+00> : vector<16x32xf32>
    %164 = tpu.matmul %162, %163, %cst_81 {dimension_numbers = #tpu.dot_dimension_numbers<[1], [0], [0], [1], [0, 0, 1, 1], [], []>} : vector<16x16xf32>, vector<16x32xf32>, vector<16x32xf32> -> vector<16x32xf32>
    %165 = arith.addf %144, %164 : vector<16x32xf32>
    %c0_82 = arith.constant 0 : index
    %c0_83 = arith.constant 0 : index
    %166 = vector.load %arg20[%c0_82, %c0_83] : memref<1x32xf32, #tpu.memory_space<vmem>>, vector<1x32xf32>
    %167 = vector.broadcast %166 : vector<1x32xf32> to vector<16x32xf32>
    %168 = arith.addf %165, %167 : vector<16x32xf32>
    %169 = arith.addf %117, %168 : vector<16x32xf32>
    %cst_84 = arith.constant dense<0.000000e+00> : vector<16xf32>
    %170 = vector.multi_reduction <add>, %169, %cst_84 [1] : vector<16x32xf32> to vector<16xf32>
    %171 = vector.shape_cast %170 : vector<16xf32> to vector<16x1xf32>
    %cst_85 = arith.constant 3.200000e+01 : f32
    %172 = vector.broadcast %cst_85 : f32 to vector<16x1xf32>
    %173 = arith.divf %171, %172 : vector<16x1xf32>
    %174 = vector.broadcast %173 : vector<16x1xf32> to vector<16x32xf32>
    %175 = arith.subf %169, %174 : vector<16x32xf32>
    %176 = arith.mulf %175, %175 : vector<16x32xf32>
    %cst_86 = arith.constant dense<0.000000e+00> : vector<16xf32>
    %177 = vector.multi_reduction <add>, %176, %cst_86 [1] : vector<16x32xf32> to vector<16xf32>
    %178 = vector.shape_cast %177 : vector<16xf32> to vector<16x1xf32>
    %cst_87 = arith.constant 3.200000e+01 : f32
    %179 = vector.broadcast %cst_87 : f32 to vector<16x1xf32>
    %180 = arith.divf %178, %179 : vector<16x1xf32>
    %cst_88 = arith.constant 9.99999974E-6 : f32
    %181 = vector.broadcast %cst_88 : f32 to vector<16x1xf32>
    %182 = arith.addf %180, %181 : vector<16x1xf32>
    %183 = math.rsqrt %182 : vector<16x1xf32>
    %184 = vector.broadcast %183 : vector<16x1xf32> to vector<16x32xf32>
    %185 = arith.mulf %175, %184 : vector<16x32xf32>
    %c0_89 = arith.constant 0 : index
    %c0_90 = arith.constant 0 : index
    %186 = vector.load %arg21[%c0_89, %c0_90] : memref<1x32xf32, #tpu.memory_space<vmem>>, vector<1x32xf32>
    %187 = vector.broadcast %186 : vector<1x32xf32> to vector<16x32xf32>
    %188 = arith.mulf %185, %187 : vector<16x32xf32>
    %c0_91 = arith.constant 0 : index
    %c0_92 = arith.constant 0 : index
    %189 = vector.load %arg22[%c0_91, %c0_92] : memref<1x32xf32, #tpu.memory_space<vmem>>, vector<1x32xf32>
    %190 = vector.broadcast %189 : vector<1x32xf32> to vector<16x32xf32>
    %191 = arith.addf %188, %190 : vector<16x32xf32>
    %c0_93 = arith.constant 0 : index
    %c0_94 = arith.constant 0 : index
    %192 = vector.load %arg23[%c0_93, %c0_94] : memref<32x16xf32, #tpu.memory_space<vmem>>, vector<32x16xf32>
    %cst_95 = arith.constant dense<0.000000e+00> : vector<16x16xf32>
    %193 = tpu.matmul %191, %192, %cst_95 {dimension_numbers = #tpu.dot_dimension_numbers<[1], [0], [0], [1], [0, 0, 1, 1], [], []>} : vector<16x32xf32>, vector<32x16xf32>, vector<16x16xf32> -> vector<16x16xf32>
    %c0_96 = arith.constant 0 : index
    %c0_97 = arith.constant 0 : index
    %194 = vector.load %arg24[%c0_96, %c0_97] : memref<1x16xf32, #tpu.memory_space<vmem>>, vector<1x16xf32>
    %195 = vector.broadcast %194 : vector<1x16xf32> to vector<16x16xf32>
    %196 = arith.addf %193, %195 : vector<16x16xf32>
    %cst_98 = arith.constant 0.000000e+00 : f32
    %197 = vector.broadcast %cst_98 : f32 to vector<16x16xf32>
    %198 = arith.maximumf %196, %197 : vector<16x16xf32>
    %c0_99 = arith.constant 0 : index
    %c0_100 = arith.constant 0 : index
    %199 = vector.load %arg25[%c0_99, %c0_100] : memref<16x32xf32, #tpu.memory_space<vmem>>, vector<16x32xf32>
    %cst_101 = arith.constant dense<0.000000e+00> : vector<16x32xf32>
    %200 = tpu.matmul %198, %199, %cst_101 {dimension_numbers = #tpu.dot_dimension_numbers<[1], [0], [0], [1], [0, 0, 1, 1], [], []>} : vector<16x16xf32>, vector<16x32xf32>, vector<16x32xf32> -> vector<16x32xf32>
    %c0_102 = arith.constant 0 : index
    %c0_103 = arith.constant 0 : index
    %201 = vector.load %arg26[%c0_102, %c0_103] : memref<1x32xf32, #tpu.memory_space<vmem>>, vector<1x32xf32>
    %202 = vector.broadcast %201 : vector<1x32xf32> to vector<16x32xf32>
    %203 = arith.addf %200, %202 : vector<16x32xf32>
    %204 = arith.addf %191, %203 : vector<16x32xf32>
    %cst_104 = arith.constant dense<0.000000e+00> : vector<16xf32>
    %205 = vector.multi_reduction <add>, %204, %cst_104 [1] : vector<16x32xf32> to vector<16xf32>
    %206 = vector.shape_cast %205 : vector<16xf32> to vector<16x1xf32>
    %cst_105 = arith.constant 3.200000e+01 : f32
    %207 = vector.broadcast %cst_105 : f32 to vector<16x1xf32>
    %208 = arith.divf %206, %207 : vector<16x1xf32>
    %209 = vector.broadcast %208 : vector<16x1xf32> to vector<16x32xf32>
    %210 = arith.subf %204, %209 : vector<16x32xf32>
    %211 = arith.mulf %210, %210 : vector<16x32xf32>
    %cst_106 = arith.constant dense<0.000000e+00> : vector<16xf32>
    %212 = vector.multi_reduction <add>, %211, %cst_106 [1] : vector<16x32xf32> to vector<16xf32>
    %213 = vector.shape_cast %212 : vector<16xf32> to vector<16x1xf32>
    %cst_107 = arith.constant 3.200000e+01 : f32
    %214 = vector.broadcast %cst_107 : f32 to vector<16x1xf32>
    %215 = arith.divf %213, %214 : vector<16x1xf32>
    %cst_108 = arith.constant 9.99999974E-6 : f32
    %216 = vector.broadcast %cst_108 : f32 to vector<16x1xf32>
    %217 = arith.addf %215, %216 : vector<16x1xf32>
    %218 = math.rsqrt %217 : vector<16x1xf32>
    %219 = vector.broadcast %218 : vector<16x1xf32> to vector<16x32xf32>
    %220 = arith.mulf %210, %219 : vector<16x32xf32>
    %c0_109 = arith.constant 0 : index
    %c0_110 = arith.constant 0 : index
    %221 = vector.load %arg27[%c0_109, %c0_110] : memref<1x32xf32, #tpu.memory_space<vmem>>, vector<1x32xf32>
    %222 = vector.broadcast %221 : vector<1x32xf32> to vector<16x32xf32>
    %223 = arith.mulf %220, %222 : vector<16x32xf32>
    %c0_111 = arith.constant 0 : index
    %c0_112 = arith.constant 0 : index
    %224 = vector.load %arg28[%c0_111, %c0_112] : memref<1x32xf32, #tpu.memory_space<vmem>>, vector<1x32xf32>
    %225 = vector.broadcast %224 : vector<1x32xf32> to vector<16x32xf32>
    %226 = arith.addf %223, %225 : vector<16x32xf32>
    %c0_113 = arith.constant 0 : index
    %c0_114 = arith.constant 0 : index
    %227 = vector.load %arg29[%c0_113, %c0_114] : memref<32x3xf32, #tpu.memory_space<vmem>>, vector<32x3xf32>
    %cst_115 = arith.constant dense<0.000000e+00> : vector<16x3xf32>
    %228 = tpu.matmul %226, %227, %cst_115 {dimension_numbers = #tpu.dot_dimension_numbers<[1], [0], [0], [1], [0, 0, 1, 1], [], []>} : vector<16x32xf32>, vector<32x3xf32>, vector<16x3xf32> -> vector<16x3xf32>
    %c0_116 = arith.constant 0 : index
    %c0_117 = arith.constant 0 : index
    %229 = vector.load %arg30[%c0_116, %c0_117] : memref<1x3xf32, #tpu.memory_space<vmem>>, vector<1x3xf32>
    %230 = vector.broadcast %229 : vector<1x3xf32> to vector<16x3xf32>
    %231 = arith.addf %228, %230 : vector<16x3xf32>
    %cst_118 = arith.constant dense<0.000000e+00> : vector<3xf32>
    %232 = vector.multi_reduction <add>, %231, %cst_118 [0] : vector<16x3xf32> to vector<3xf32>
    %233 = vector.shape_cast %232 : vector<3xf32> to vector<1x3xf32>
    %cst_119 = arith.constant 1.600000e+01 : f32
    %234 = vector.broadcast %cst_119 : f32 to vector<1x3xf32>
    %235 = arith.divf %233, %234 : vector<1x3xf32>
    %236 = vector.broadcast %235 : vector<1x3xf32> to vector<16x3xf32>
    %237 = arith.subf %231, %236 : vector<16x3xf32>
    %238 = arith.mulf %237, %237 : vector<16x3xf32>
    %cst_120 = arith.constant dense<0.000000e+00> : vector<16xf32>
    %239 = vector.multi_reduction <add>, %238, %cst_120 [1] : vector<16x3xf32> to vector<16xf32>
    %240 = vector.shape_cast %239 : vector<16xf32> to vector<16x1xf32>
    %241 = vector.shape_cast %240 : vector<16x1xf32> to vector<1x16x1xf32>
    %cst_121 = arith.constant dense<0xFF800000> : vector<1xf32>
    %242 = vector.multi_reduction <maximumf>, %241, %cst_121 [1, 2] : vector<1x16x1xf32> to vector<1xf32>
    %243 = vector.shape_cast %242 : vector<1xf32> to vector<1x1x1xf32>
    %244 = vector.extract %243[0, 0, 0] : f32 from vector<1x1x1xf32>
    %cst_122 = arith.constant 9.99999996E-13 : f32
    %245 = arith.addf %244, %cst_122 : f32
    %246 = math.rsqrt %245 : f32
    %247 = vector.broadcast %246 : f32 to vector<16x3xf32>
    %248 = arith.mulf %237, %247 : vector<16x3xf32>
    %c0_123 = arith.constant 0 : index
    %c0_124 = arith.constant 0 : index
    %249 = vector.load %arg31[%c0_123, %c0_124] : memref<32x10xf32, #tpu.memory_space<vmem>>, vector<32x10xf32>
    %cst_125 = arith.constant dense<0.000000e+00> : vector<16x10xf32>
    %250 = tpu.matmul %226, %249, %cst_125 {dimension_numbers = #tpu.dot_dimension_numbers<[1], [0], [0], [1], [0, 0, 1, 1], [], []>} : vector<16x32xf32>, vector<32x10xf32>, vector<16x10xf32> -> vector<16x10xf32>
    %c0_126 = arith.constant 0 : index
    %c0_127 = arith.constant 0 : index
    %251 = vector.load %arg32[%c0_126, %c0_127] : memref<1x10xf32, #tpu.memory_space<vmem>>, vector<1x10xf32>
    %252 = vector.broadcast %251 : vector<1x10xf32> to vector<16x10xf32>
    %253 = arith.addf %250, %252 : vector<16x10xf32>
    %cst_128 = arith.constant 0.000000e+00 : f32
    %254 = vector.broadcast %cst_128 : f32 to vector<16x10xf32>
    %255 = arith.maximumf %253, %254 : vector<16x10xf32>
    %c0_129 = arith.constant 0 : index
    %c0_130 = arith.constant 0 : index
    %256 = vector.load %arg33[%c0_129, %c0_130] : memref<10x10xf32, #tpu.memory_space<vmem>>, vector<10x10xf32>
    %cst_131 = arith.constant dense<0.000000e+00> : vector<16x10xf32>
    %257 = tpu.matmul %255, %256, %cst_131 {dimension_numbers = #tpu.dot_dimension_numbers<[1], [0], [0], [1], [0, 0, 1, 1], [], []>} : vector<16x10xf32>, vector<10x10xf32>, vector<16x10xf32> -> vector<16x10xf32>
    %c0_132 = arith.constant 0 : index
    %c0_133 = arith.constant 0 : index
    %258 = vector.load %arg34[%c0_132, %c0_133] : memref<1x10xf32, #tpu.memory_space<vmem>>, vector<1x10xf32>
    %259 = vector.broadcast %258 : vector<1x10xf32> to vector<16x10xf32>
    %260 = arith.addf %257, %259 : vector<16x10xf32>
    %cst_134 = arith.constant 0.000000e+00 : f32
    %261 = vector.broadcast %cst_134 : f32 to vector<16x16xf32>
    %262 = vector.extract_strided_slice %248 {offsets = [0, 0], sizes = [16, 1], strides = [1, 1]} : vector<16x3xf32> to vector<16x1xf32>
    %263 = tpu.transpose %262, [1, 0] : vector<16x1xf32> -> vector<1x16xf32>
    %264 = vector.broadcast %262 : vector<16x1xf32> to vector<16x16xf32>
    %265 = vector.broadcast %263 : vector<1x16xf32> to vector<16x16xf32>
    %266 = arith.subf %264, %265 : vector<16x16xf32>
    %267 = arith.mulf %266, %266 : vector<16x16xf32>
    %268 = arith.addf %261, %267 : vector<16x16xf32>
    %269 = vector.extract_strided_slice %248 {offsets = [0, 1], sizes = [16, 1], strides = [1, 1]} : vector<16x3xf32> to vector<16x1xf32>
    %270 = tpu.transpose %269, [1, 0] : vector<16x1xf32> -> vector<1x16xf32>
    %271 = vector.broadcast %269 : vector<16x1xf32> to vector<16x16xf32>
    %272 = vector.broadcast %270 : vector<1x16xf32> to vector<16x16xf32>
    %273 = arith.subf %271, %272 : vector<16x16xf32>
    %274 = arith.mulf %273, %273 : vector<16x16xf32>
    %275 = arith.addf %268, %274 : vector<16x16xf32>
    %276 = vector.extract_strided_slice %248 {offsets = [0, 2], sizes = [16, 1], strides = [1, 1]} : vector<16x3xf32> to vector<16x1xf32>
    %277 = tpu.transpose %276, [1, 0] : vector<16x1xf32> -> vector<1x16xf32>
    %278 = vector.broadcast %276 : vector<16x1xf32> to vector<16x16xf32>
    %279 = vector.broadcast %277 : vector<1x16xf32> to vector<16x16xf32>
    %280 = arith.subf %278, %279 : vector<16x16xf32>
    %281 = arith.mulf %280, %280 : vector<16x16xf32>
    %282 = arith.addf %275, %281 : vector<16x16xf32>
    %283 = math.sqrt %282 : vector<16x16xf32>
    %cst_135 = arith.constant 0.000000e+00 : f32
    %284 = vector.broadcast %cst_135 : f32 to vector<16x99xf32>
    %285 = tpu.concatenate %248, %283, %260, %284 in 1 : vector<16x3xf32>, vector<16x16xf32>, vector<16x10xf32>, vector<16x99xf32> -> vector<16x128xf32>
    %c0_136 = arith.constant 0 : index
    %c0_137 = arith.constant 0 : index
    %c0_138 = arith.constant 0 : index
    %286 = vector.load %arg35[%c0_136, %c0_137, %c0_138] : memref<1x16x128xf32, #tpu.memory_space<vmem>>, vector<1x16x128xf32>
    %287 = vector.shape_cast %286 : vector<1x16x128xf32> to vector<16x128xf32>
    %288 = vector.shape_cast %285 : vector<16x128xf32> to vector<1x16x128xf32>
    tpu.vector_store %arg35[%c0_136, %c0_137, %c0_138], %288 {strides = array<i32>} : memref<1x16x128xf32, #tpu.memory_space<vmem>>, vector<1x16x128xf32>,
    return
  }
  func.func @transform_0(%arg0: i32) -> (i32, i32, i32) {
    %c0_i32 = arith.constant 0 : i32
    %c0_i32_0 = arith.constant 0 : i32
    %c0_i32_1 = arith.constant 0 : i32
    return %arg0, %c0_i32, %c0_i32_0 : i32, i32, i32
  }
  func.func @transform_1(%arg0: i32) -> (i32, i32) {
    %c0_i32 = arith.constant 0 : i32
    %c0_i32_0 = arith.constant 0 : i32
    %c0_i32_1 = arith.constant 0 : i32
    return %c0_i32, %c0_i32_0 : i32, i32
  }
  func.func @transform_2(%arg0: i32) -> (i32, i32) {
    %c0_i32 = arith.constant 0 : i32
    %c0_i32_0 = arith.constant 0 : i32
    %c0_i32_1 = arith.constant 0 : i32
    return %c0_i32, %c0_i32_0 : i32, i32
  }
  func.func @transform_3(%arg0: i32) -> (i32, i32) {
    %c0_i32 = arith.constant 0 : i32
    %c0_i32_0 = arith.constant 0 : i32
    %c0_i32_1 = arith.constant 0 : i32
    return %c0_i32, %c0_i32_0 : i32, i32
  }
  func.func @transform_4(%arg0: i32) -> (i32, i32) {
    %c0_i32 = arith.constant 0 : i32
    %c0_i32_0 = arith.constant 0 : i32
    %c0_i32_1 = arith.constant 0 : i32
    return %c0_i32, %c0_i32_0 : i32, i32
  }
  func.func @transform_5(%arg0: i32) -> (i32, i32) {
    %c0_i32 = arith.constant 0 : i32
    %c0_i32_0 = arith.constant 0 : i32
    %c0_i32_1 = arith.constant 0 : i32
    return %c0_i32, %c0_i32_0 : i32, i32
  }
  func.func @transform_6(%arg0: i32) -> (i32, i32) {
    %c0_i32 = arith.constant 0 : i32
    %c0_i32_0 = arith.constant 0 : i32
    %c0_i32_1 = arith.constant 0 : i32
    return %c0_i32, %c0_i32_0 : i32, i32
  }
  func.func @transform_7(%arg0: i32) -> (i32, i32) {
    %c0_i32 = arith.constant 0 : i32
    %c0_i32_0 = arith.constant 0 : i32
    %c0_i32_1 = arith.constant 0 : i32
    return %c0_i32, %c0_i32_0 : i32, i32
  }
  func.func @transform_8(%arg0: i32) -> (i32, i32) {
    %c0_i32 = arith.constant 0 : i32
    %c0_i32_0 = arith.constant 0 : i32
    %c0_i32_1 = arith.constant 0 : i32
    return %c0_i32, %c0_i32_0 : i32, i32
  }
  func.func @transform_9(%arg0: i32) -> (i32, i32) {
    %c0_i32 = arith.constant 0 : i32
    %c0_i32_0 = arith.constant 0 : i32
    %c0_i32_1 = arith.constant 0 : i32
    return %c0_i32, %c0_i32_0 : i32, i32
  }
  func.func @transform_10(%arg0: i32) -> (i32, i32) {
    %c0_i32 = arith.constant 0 : i32
    %c0_i32_0 = arith.constant 0 : i32
    %c0_i32_1 = arith.constant 0 : i32
    return %c0_i32, %c0_i32_0 : i32, i32
  }
  func.func @transform_11(%arg0: i32) -> (i32, i32) {
    %c0_i32 = arith.constant 0 : i32
    %c0_i32_0 = arith.constant 0 : i32
    %c0_i32_1 = arith.constant 0 : i32
    return %c0_i32, %c0_i32_0 : i32, i32
  }
  func.func @transform_12(%arg0: i32) -> (i32, i32) {
    %c0_i32 = arith.constant 0 : i32
    %c0_i32_0 = arith.constant 0 : i32
    %c0_i32_1 = arith.constant 0 : i32
    return %c0_i32, %c0_i32_0 : i32, i32
  }
  func.func @transform_13(%arg0: i32) -> (i32, i32) {
    %c0_i32 = arith.constant 0 : i32
    %c0_i32_0 = arith.constant 0 : i32
    %c0_i32_1 = arith.constant 0 : i32
    return %c0_i32, %c0_i32_0 : i32, i32
  }
  func.func @transform_14(%arg0: i32) -> (i32, i32) {
    %c0_i32 = arith.constant 0 : i32
    %c0_i32_0 = arith.constant 0 : i32
    %c0_i32_1 = arith.constant 0 : i32
    return %c0_i32, %c0_i32_0 : i32, i32
  }
  func.func @transform_15(%arg0: i32) -> (i32, i32) {
    %c0_i32 = arith.constant 0 : i32
    %c0_i32_0 = arith.constant 0 : i32
    %c0_i32_1 = arith.constant 0 : i32
    return %c0_i32, %c0_i32_0 : i32, i32
  }
  func.func @transform_16(%arg0: i32) -> (i32, i32) {
    %c0_i32 = arith.constant 0 : i32
    %c0_i32_0 = arith.constant 0 : i32
    %c0_i32_1 = arith.constant 0 : i32
    return %c0_i32, %c0_i32_0 : i32, i32
  }
  func.func @transform_17(%arg0: i32) -> (i32, i32) {
    %c0_i32 = arith.constant 0 : i32
    %c0_i32_0 = arith.constant 0 : i32
    %c0_i32_1 = arith.constant 0 : i32
    return %c0_i32, %c0_i32_0 : i32, i32
  }
  func.func @transform_18(%arg0: i32) -> (i32, i32) {
    %c0_i32 = arith.constant 0 : i32
    %c0_i32_0 = arith.constant 0 : i32
    %c0_i32_1 = arith.constant 0 : i32
    return %c0_i32, %c0_i32_0 : i32, i32
  }
  func.func @transform_19(%arg0: i32) -> (i32, i32) {
    %c0_i32 = arith.constant 0 : i32
    %c0_i32_0 = arith.constant 0 : i32
    %c0_i32_1 = arith.constant 0 : i32
    return %c0_i32, %c0_i32_0 : i32, i32
  }
  func.func @transform_20(%arg0: i32) -> (i32, i32) {
    %c0_i32 = arith.constant 0 : i32
    %c0_i32_0 = arith.constant 0 : i32
    %c0_i32_1 = arith.constant 0 : i32
    return %c0_i32, %c0_i32_0 : i32, i32
  }
  func.func @transform_21(%arg0: i32) -> (i32, i32) {
    %c0_i32 = arith.constant 0 : i32
    %c0_i32_0 = arith.constant 0 : i32
    %c0_i32_1 = arith.constant 0 : i32
    return %c0_i32, %c0_i32_0 : i32, i32
  }
  func.func @transform_22(%arg0: i32) -> (i32, i32) {
    %c0_i32 = arith.constant 0 : i32
    %c0_i32_0 = arith.constant 0 : i32
    %c0_i32_1 = arith.constant 0 : i32
    return %c0_i32, %c0_i32_0 : i32, i32
  }
  func.func @transform_23(%arg0: i32) -> (i32, i32) {
    %c0_i32 = arith.constant 0 : i32
    %c0_i32_0 = arith.constant 0 : i32
    %c0_i32_1 = arith.constant 0 : i32
    return %c0_i32, %c0_i32_0 : i32, i32
  }
  func.func @transform_24(%arg0: i32) -> (i32, i32) {
    %c0_i32 = arith.constant 0 : i32
    %c0_i32_0 = arith.constant 0 : i32
    %c0_i32_1 = arith.constant 0 : i32
    return %c0_i32, %c0_i32_0 : i32, i32
  }
  func.func @transform_25(%arg0: i32) -> (i32, i32) {
    %c0_i32 = arith.constant 0 : i32
    %c0_i32_0 = arith.constant 0 : i32
    %c0_i32_1 = arith.constant 0 : i32
    return %c0_i32, %c0_i32_0 : i32, i32
  }
  func.func @transform_26(%arg0: i32) -> (i32, i32) {
    %c0_i32 = arith.constant 0 : i32
    %c0_i32_0 = arith.constant 0 : i32
    %c0_i32_1 = arith.constant 0 : i32
    return %c0_i32, %c0_i32_0 : i32, i32
  }
  func.func @transform_27(%arg0: i32) -> (i32, i32) {
    %c0_i32 = arith.constant 0 : i32
    %c0_i32_0 = arith.constant 0 : i32
    %c0_i32_1 = arith.constant 0 : i32
    return %c0_i32, %c0_i32_0 : i32, i32
  }
  func.func @transform_28(%arg0: i32) -> (i32, i32) {
    %c0_i32 = arith.constant 0 : i32
    %c0_i32_0 = arith.constant 0 : i32
    %c0_i32_1 = arith.constant 0 : i32
    return %c0_i32, %c0_i32_0 : i32, i32
  }
  func.func @transform_29(%arg0: i32) -> (i32, i32) {
    %c0_i32 = arith.constant 0 : i32
    %c0_i32_0 = arith.constant 0 : i32
    %c0_i32_1 = arith.constant 0 : i32
    return %c0_i32, %c0_i32_0 : i32, i32
  }
  func.func @transform_30(%arg0: i32) -> (i32, i32) {
    %c0_i32 = arith.constant 0 : i32
    %c0_i32_0 = arith.constant 0 : i32
    %c0_i32_1 = arith.constant 0 : i32
    return %c0_i32, %c0_i32_0 : i32, i32
  }
  func.func @transform_31(%arg0: i32) -> (i32, i32) {
    %c0_i32 = arith.constant 0 : i32
    %c0_i32_0 = arith.constant 0 : i32
    %c0_i32_1 = arith.constant 0 : i32
    return %c0_i32, %c0_i32_0 : i32, i32
  }
  func.func @transform_32(%arg0: i32) -> (i32, i32) {
    %c0_i32 = arith.constant 0 : i32
    %c0_i32_0 = arith.constant 0 : i32
    %c0_i32_1 = arith.constant 0 : i32
    return %c0_i32, %c0_i32_0 : i32, i32
  }
  func.func @transform_33(%arg0: i32) -> (i32, i32) {
    %c0_i32 = arith.constant 0 : i32
    %c0_i32_0 = arith.constant 0 : i32
    %c0_i32_1 = arith.constant 0 : i32
    return %c0_i32, %c0_i32_0 : i32, i32
  }
  func.func @transform_34(%arg0: i32) -> (i32, i32, i32) {
    %c0_i32 = arith.constant 0 : i32
    %c0_i32_0 = arith.constant 0 : i32
    %c0_i32_1 = arith.constant 0 : i32
    return %arg0, %c0_i32, %c0_i32_0 : i32, i32, i32
  }
}

</mosaic_0001>

<llo_original>
// kernel: _lambda_.1
$region0: #{_lambda_.1}
  #allocation0 [shape = 'u32[]', space=smem, size = 0x4, offset = 0x4, fixed_abs, tag = 'smem constant byte address 0x4 - core index']
  #allocation1 [shape = 'u32[72,128]{1,0:T(1,128)}', space=vmem, size = 0x9000, scoped, tag = 'internal scratch']
  %s0 = inlined_call_operand.smem [shape: u32[35], index: -1, kind: input, shape index: {}]
  %s1 = sld [smem:[%s0]]
  %s2 = scalar_lea.smem %s0, 1
  %s3 = sld [smem:[%s2]]
  %s4 = scalar_lea.smem %s0, 2
  %s5 = sld [smem:[%s4]]
  %s6 = scalar_lea.smem %s0, 3
  %s7 = sld [smem:[%s6]]
  %s8 = scalar_lea.smem %s0, 4
  %s9 = sld [smem:[%s8]]
  %s10 = scalar_lea.smem %s0, 5
  %s11 = sld [smem:[%s10]]
  %s12 = scalar_lea.smem %s0, 6
  %s13 = sld [smem:[%s12]]
  %s14 = scalar_lea.smem %s0, 7
  %s15 = sld [smem:[%s14]]
  %s16 = scalar_lea.smem %s0, 8
  %s17 = sld [smem:[%s16]]
  %s18 = scalar_lea.smem %s0, 9
  %s19 = sld [smem:[%s18]]
  %s20 = scalar_lea.smem %s0, 10
  %s21 = sld [smem:[%s20]]
  %s22 = scalar_lea.smem %s0, 11
  %s23 = sld [smem:[%s22]]
  %s24 = scalar_lea.smem %s0, 12
  %s25 = sld [smem:[%s24]]
  %s26 = scalar_lea.smem %s0, 13
  %s27 = sld [smem:[%s26]]
  %s28 = scalar_lea.smem %s0, 14
  %s29 = sld [smem:[%s28]]
  %s30 = scalar_lea.smem %s0, 15
  %s31 = sld [smem:[%s30]]
  %s32 = scalar_lea.smem %s0, 16
  %s33 = sld [smem:[%s32]]
  %s34 = scalar_lea.smem %s0, 17
  %s35 = sld [smem:[%s34]]
  %s36 = scalar_lea.smem %s0, 18
  %s37 = sld [smem:[%s36]]
  %s38 = scalar_lea.smem %s0, 19
  %s39 = sld [smem:[%s38]]
  %s40 = scalar_lea.smem %s0, 20
  %s41 = sld [smem:[%s40]]
  %s42 = scalar_lea.smem %s0, 21
  %s43 = sld [smem:[%s42]]
  %s44 = scalar_lea.smem %s0, 22
  %s45 = sld [smem:[%s44]]
  %s46 = scalar_lea.smem %s0, 23
  %s47 = sld [smem:[%s46]]
  %s48 = scalar_lea.smem %s0, 24
  %s49 = sld [smem:[%s48]]
  %s50 = scalar_lea.smem %s0, 25
  %s51 = sld [smem:[%s50]]
  %s52 = scalar_lea.smem %s0, 26
  %s53 = sld [smem:[%s52]]
  %s54 = scalar_lea.smem %s0, 27
  %s55 = sld [smem:[%s54]]
  %s56 = scalar_lea.smem %s0, 28
  %s57 = sld [smem:[%s56]]
  %s58 = scalar_lea.smem %s0, 29
  %s59 = sld [smem:[%s58]]
  %s60 = scalar_lea.smem %s0, 30
  %s61 = sld [smem:[%s60]]
  %s62 = scalar_lea.smem %s0, 31
  %s63 = sld [smem:[%s62]]
  %s64 = scalar_lea.smem %s0, 32
  %s65 = sld [smem:[%s64]]
  %s66 = scalar_lea.smem %s0, 33
  %s67 = sld [smem:[%s66]]
  %s68 = scalar_lea.smem %s0, 34
  %s69 = sld [smem:[%s68]]
  %s70 = sld [smem:[#allocation0]]
  $region253: #{_lambda_.1} parent=0
    _
  %s72 = ssub.s32 1, %s70
  %s73 = scalar_select 0, %s72, %s70
  $region1: #{_lambda_.1} parent=0
    #allocation2 [shape = 'u8[8192]{0}', space=vmem, size = 0x2000, scoped, tag = 'input window, operand 1, single buffered']
    #allocation3 [shape = 's32[2]{0}', space=sflag, size = 0x8, scoped, tag = 'scoped memory for _lambda_.1']
    #allocation4 [shape = 'u8[512]{0}', space=vmem, size = 0x400, scoped, tag = 'input window, operand 9, single buffered']
    #allocation5 [shape = 's32[1]{0}', space=sflag, size = 0x4, scoped, tag = 'scoped memory for _lambda_.1']
    #allocation6 [shape = 'u8[512]{0}', space=vmem, size = 0x400, scoped, tag = 'input window, operand 11, single buffered']
    #allocation7 [shape = 'u8[512]{0}', space=vmem, size = 0x400, scoped, tag = 'input window, operand 13, single buffered']
    #allocation8 [shape = 's32[1]{0}', space=sflag, size = 0x4, scoped, tag = 'scoped memory for _lambda_.1']
    #allocation9 [shape = 'u8[512]{0}', space=vmem, size = 0x400, scoped, tag = 'input window, operand 14, single buffered']
    #allocation10 [shape = 'u8[512]{0}', space=vmem, size = 0x400, scoped, tag = 'input window, operand 15, single buffered']
    #allocation11 [shape = 's32[1]{0}', space=sflag, size = 0x4, scoped, tag = 'scoped memory for _lambda_.1']
    #allocation12 [shape = 'u8[16384]{0}', space=vmem, size = 0x4000, scoped, tag = 'input window, operand 16, single buffered']
    #allocation13 [shape = 'u8[512]{0}', space=vmem, size = 0x400, scoped, tag = 'input window, operand 17, single buffered']
    #allocation14 [shape = 's32[1]{0}', space=sflag, size = 0x4, scoped, tag = 'scoped memory for _lambda_.1']
    #allocation15 [shape = 'u8[16384]{0}', space=vmem, size = 0x4000, scoped, tag = 'input window, operand 18, single buffered']
    #allocation16 [shape = 'u8[512]{0}', space=vmem, size = 0x400, scoped, tag = 'input window, operand 19, single buffered']
    #allocation17 [shape = 's32[1]{0}', space=sflag, size = 0x4, scoped, tag = 'scoped memory for _lambda_.1']
    #allocation18 [shape = 'u8[512]{0}', space=vmem, size = 0x400, scoped, tag = 'input window, operand 20, single buffered']
    #allocation19 [shape = 'u8[512]{0}', space=vmem, size = 0x400, scoped, tag = 'input window, operand 21, single buffered']
    #allocation20 [shape = 's32[1]{0}', space=sflag, size = 0x4, scoped, tag = 'scoped memory for _lambda_.1']
    #allocation21 [shape = 'u8[512]{0}', space=vmem, size = 0x400, scoped, tag = 'input window, operand 23, single buffered']
    #allocation22 [shape = 'u8[8192]{0}', space=vmem, size = 0x2000, scoped, tag = 'input window, operand 24, single buffered']
    #allocation23 [shape = 's32[1]{0}', space=sflag, size = 0x4, scoped, tag = 'scoped memory for _lambda_.1']
    #allocation24 [shape = 'u8[512]{0}', space=vmem, size = 0x400, scoped, tag = 'input window, operand 25, single buffered']
    #allocation25 [shape = 'u8[512]{0}', space=vmem, size = 0x400, scoped, tag = 'input window, operand 26, single buffered']
    #allocation26 [shape = 's32[1]{0}', space=sflag, size = 0x4, scoped, tag = 'scoped memory for _lambda_.1']
    #allocation27 [shape = 'u8[512]{0}', space=vmem, size = 0x400, scoped, tag = 'input window, operand 27, single buffered']
    #allocation28 [shape = 'u8[512]{0}', space=vmem, size = 0x400, scoped, tag = 'input window, operand 29, single buffered']
    #allocation29 [shape = 's32[1]{0}', space=sflag, size = 0x4, scoped, tag = 'scoped memory for _lambda_.1']
    #allocation30 [shape = 'u8[512]{0}', space=vmem, size = 0x400, scoped, tag = 'input window, operand 31, single buffered']
    #allocation31 [shape = 'u8[8192]{0}', space=vmem, size = 0x2000, scoped, tag = 'input window, operand 32, single buffered']
    #allocation32 [shape = 's32[1]{0}', space=sflag, size = 0x4, scoped, tag = 'scoped memory for _lambda_.1']
    #allocation33 [shape = 'u8[512]{0}', space=vmem, size = 0x400, scoped, tag = 'input window, operand 33, single buffered']
    %74 = vsyncpa [#allocation3], 0
    %75 = vsyncpa [#allocation5], 0
    %76 = vsyncpa [#allocation8], 0
    %77 = vsyncpa [#allocation11], 0
    %78 = vsyncpa [#allocation14], 0
    %79 = vsyncpa [#allocation17], 0
    %80 = vsyncpa [#allocation20], 0
    %81 = vsyncpa [#allocation23], 0
    %82 = vsyncpa [#allocation26], 0
    %83 = vsyncpa [#allocation29], 0
    %84 = vsyncpa [#allocation32], 0
    loop: start=0, step=1, limit=4
    $region2: #{_lambda_.1} parent=1 // loop_pre_header
      _
    $region3: #{_lambda_.1} parent=1 // loop_header
      %s86 = sphi 0, %s90
      %p87 = scmp.ge.s32.totalorder %s86, 4
      %s96 = sphi 0, %s98
      %s99 = sphi 0, %s96
      %s100 = sphi 0, %s99
      %s116 = sphi 0, %s100
      %s120 = sphi 0, %s120
      %s122 = sphi 0, %s120
      %s123 = sphi 0, %s122
      %s137 = sphi 0, %s123
      %s141 = sphi 0, %s141
      %s143 = sphi 0, %s141
      %s144 = sphi 0, %s143
      %s158 = sphi 0, %s144
      %s162 = sphi 0, %s162
      %s164 = sphi 0, %s162
      %s165 = sphi 0, %s164
      %s179 = sphi 0, %s165
      %s183 = sphi 0, %s183
      %s185 = sphi 0, %s183
      %s186 = sphi 0, %s185
      %s200 = sphi 0, %s186
      %s204 = sphi 0, %s204
      %s206 = sphi 0, %s204
      %s207 = sphi 0, %s206
      %s221 = sphi 0, %s207
      %s225 = sphi 0, %s225
      %s227 = sphi 0, %s225
      %s228 = sphi 0, %s227
      %s242 = sphi 0, %s228
      %s246 = sphi 0, %s246
      %s248 = sphi 0, %s246
      %s249 = sphi 0, %s248
      %s263 = sphi 0, %s249
      %s267 = sphi 0, %s267
      %s269 = sphi 0, %s267
      %s270 = sphi 0, %s269
      %s284 = sphi 0, %s270
      %s288 = sphi 0, %s288
      %s290 = sphi 0, %s288
      %s291 = sphi 0, %s290
      %s305 = sphi 0, %s291
      %s309 = sphi 0, %s309
      %s311 = sphi 0, %s309
      %s312 = sphi 0, %s311
      %s326 = sphi 0, %s312
      %s330 = sphi 0, %s330
      %s332 = sphi 0, %s330
      %s333 = sphi 0, %s332
      %s347 = sphi 0, %s333
      %s351 = sphi 0, %s351
      %s353 = sphi 0, %s351
      %s354 = sphi 0, %s353
      %s368 = sphi 0, %s354
      %s372 = sphi 0, %s372
      %s374 = sphi 0, %s372
      %s375 = sphi 0, %s374
      %s389 = sphi 0, %s375
      %s393 = sphi 0, %s393
      %s395 = sphi 0, %s393
      %s396 = sphi 0, %s395
      %s410 = sphi 0, %s396
      %s414 = sphi 0, %s414
      %s416 = sphi 0, %s414
      %s417 = sphi 0, %s416
      %s431 = sphi 0, %s417
      %s435 = sphi 0, %s435
      %s437 = sphi 0, %s435
      %s438 = sphi 0, %s437
      %s452 = sphi 0, %s438
      %s456 = sphi 0, %s456
      %s458 = sphi 0, %s456
      %s459 = sphi 0, %s458
      %s473 = sphi 0, %s459
      %s477 = sphi 0, %s477
      %s479 = sphi 0, %s477
      %s480 = sphi 0, %s479
      %s494 = sphi 0, %s480
      %s498 = sphi 0, %s498
      %s500 = sphi 0, %s498
      %s501 = sphi 0, %s500
      %s515 = sphi 0, %s501
      %s519 = sphi 0, %s519
      %s521 = sphi 0, %s519
      %s522 = sphi 0, %s521
      %s536 = sphi 0, %s522
      %s540 = sphi 0, %s540
      %s542 = sphi 0, %s540
      %s543 = sphi 0, %s542
      %s557 = sphi 0, %s543
      %s561 = sphi 0, %s561
      %s563 = sphi 0, %s561
      %s564 = sphi 0, %s563
      %s578 = sphi 0, %s564
      %s582 = sphi 0, %s582
      %s584 = sphi 0, %s582
      %s585 = sphi 0, %s584
      %s599 = sphi 0, %s585
      %s603 = sphi 0, %s603
      %s605 = sphi 0, %s603
      %s606 = sphi 0, %s605
      %s620 = sphi 0, %s606
      %s624 = sphi 0, %s624
      %s626 = sphi 0, %s624
      %s627 = sphi 0, %s626
      %s641 = sphi 0, %s627
      %s645 = sphi 0, %s645
      %s647 = sphi 0, %s645
      %s648 = sphi 0, %s647
      %s662 = sphi 0, %s648
      %s666 = sphi 0, %s666
      %s668 = sphi 0, %s666
      %s669 = sphi 0, %s668
      %s683 = sphi 0, %s669
      %s687 = sphi 0, %s687
      %s689 = sphi 0, %s687
      %s690 = sphi 0, %s689
      %s704 = sphi 0, %s690
      %s708 = sphi 0, %s708
      %s710 = sphi 0, %s708
      %s711 = sphi 0, %s710
      %s725 = sphi 0, %s711
      %s729 = sphi 0, %s729
      %s731 = sphi 0, %s729
      %s732 = sphi 0, %s731
      %s746 = sphi 0, %s732
      %s750 = sphi 0, %s750
      %s752 = sphi 0, %s750
      %s753 = sphi 0, %s752
      %s767 = sphi 0, %s753
      %s771 = sphi 0, %s771
      %s773 = sphi 0, %s771
      %s774 = sphi 0, %s773
      %s788 = sphi 0, %s774
      %s792 = sphi 0, %s792
      %s794 = sphi 0, %s792
      %s795 = sphi 0, %s794
      %s809 = sphi 0, %s795
      %s815 = sphi 0, %s817
      %s818 = sphi 0, %s815
      %s819 = sphi 0, %s818
      %s835 = sphi 0, %s819
    $region4: #{_lambda_.1} parent=1 // loop_header_branch
      %89 = sbr.rel (%p87) target = $region8
    $region5: #{_lambda_.1} parent=1 // loop_body
      %s91 = ssub.s32 %s86, 1
      %s92 = ssub.s32 %s86, 2
      %s93 = sadd.s32 %s86, 1
      %s94 = ssub.s32 %s86, %s93
      %p95 = scmp.eq.s32.totalorder %s94, 0
      %s97 = sadd.s32 %s96, 1
      %s98 = scalar_select %p95, %s96, %s97
      %p101 = pneg %p95
      %p102 = scmp.eq.s32.totalorder %s86, 1
      %p103 = por %p101, %p102
      %p104 = scmp.ne.s32.totalorder %s96, %s99
      %p105 = scmp.eq.s32.totalorder %s86, 0
      %p106 = por %p104, %p105
      %p107 = scmp.ne.s32.totalorder %s96, %s99
      %p108 = scmp.eq.s32.totalorder %s91, 1
      %p109 = por %p107, %p108
      %p110 = scmp.ne.s32.totalorder %s99, %s100
      %p111 = scmp.eq.s32.totalorder %s91, 0
      %p112 = por %p110, %p111
      %p113 = scmp.ne.s32.totalorder %s99, %s100
      %p114 = scmp.eq.s32.totalorder %s92, 1
      %p115 = por %p113, %p114
      %p117 = scmp.ne.s32.totalorder %s100, %s116
      %p118 = scmp.eq.s32.totalorder %s92, 0
      %p119 = por %p117, %p118
      %s121 = sadd.s32 %s120, 1
      %p124 = scmp.eq.s32.totalorder %s86, 1
      %p125 = scmp.ne.s32.totalorder %s120, %s122
      %p126 = scmp.eq.s32.totalorder %s86, 0
      %p127 = por %p125, %p126
      %p128 = scmp.ne.s32.totalorder %s120, %s122
      %p129 = scmp.eq.s32.totalorder %s91, 1
      %p130 = por %p128, %p129
      %p131 = scmp.ne.s32.totalorder %s122, %s123
      %p132 = scmp.eq.s32.totalorder %s91, 0
      %p133 = por %p131, %p132
      %p134 = scmp.ne.s32.totalorder %s122, %s123
      %p135 = scmp.eq.s32.totalorder %s92, 1
      %p136 = por %p134, %p135
      %p138 = scmp.ne.s32.totalorder %s123, %s137
      %p139 = scmp.eq.s32.totalorder %s92, 0
      %p140 = por %p138, %p139
      %s142 = sadd.s32 %s141, 1
      %p145 = scmp.eq.s32.totalorder %s86, 1
      %p146 = scmp.ne.s32.totalorder %s141, %s143
      %p147 = scmp.eq.s32.totalorder %s86, 0
      %p148 = por %p146, %p147
      %p149 = scmp.ne.s32.totalorder %s141, %s143
      %p150 = scmp.eq.s32.totalorder %s91, 1
      %p151 = por %p149, %p150
      %p152 = scmp.ne.s32.totalorder %s143, %s144
      %p153 = scmp.eq.s32.totalorder %s91, 0
      %p154 = por %p152, %p153
      %p155 = scmp.ne.s32.totalorder %s143, %s144
      %p156 = scmp.eq.s32.totalorder %s92, 1
      %p157 = por %p155, %p156
      %p159 = scmp.ne.s32.totalorder %s144, %s158
      %p160 = scmp.eq.s32.totalorder %s92, 0
      %p161 = por %p159, %p160
      %s163 = sadd.s32 %s162, 1
      %p166 = scmp.eq.s32.totalorder %s86, 1
      %p167 = scmp.ne.s32.totalorder %s162, %s164
      %p168 = scmp.eq.s32.totalorder %s86, 0
      %p169 = por %p167, %p168
      %p170 = scmp.ne.s32.totalorder %s162, %s164
      %p171 = scmp.eq.s32.totalorder %s91, 1
      %p172 = por %p170, %p171
      %p173 = scmp.ne.s32.totalorder %s164, %s165
      %p174 = scmp.eq.s32.totalorder %s91, 0
      %p175 = por %p173, %p174
      %p176 = scmp.ne.s32.totalorder %s164, %s165
      %p177 = scmp.eq.s32.totalorder %s92, 1
      %p178 = por %p176, %p177
      %p180 = scmp.ne.s32.totalorder %s165, %s179
      %p181 = scmp.eq.s32.totalorder %s92, 0
      %p182 = por %p180, %p181
      %s184 = sadd.s32 %s183, 1
      %p187 = scmp.eq.s32.totalorder %s86, 1
      %p188 = scmp.ne.s32.totalorder %s183, %s185
      %p189 = scmp.eq.s32.totalorder %s86, 0
      %p190 = por %p188, %p189
      %p191 = scmp.ne.s32.totalorder %s183, %s185
      %p192 = scmp.eq.s32.totalorder %s91, 1
      %p193 = por %p191, %p192
      %p194 = scmp.ne.s32.totalorder %s185, %s186
      %p195 = scmp.eq.s32.totalorder %s91, 0
      %p196 = por %p194, %p195
      %p197 = scmp.ne.s32.totalorder %s185, %s186
      %p198 = scmp.eq.s32.totalorder %s92, 1
      %p199 = por %p197, %p198
      %p201 = scmp.ne.s32.totalorder %s186, %s200
      %p202 = scmp.eq.s32.totalorder %s92, 0
      %p203 = por %p201, %p202
      %s205 = sadd.s32 %s204, 1
      %p208 = scmp.eq.s32.totalorder %s86, 1
      %p209 = scmp.ne.s32.totalorder %s204, %s206
      %p210 = scmp.eq.s32.totalorder %s86, 0
      %p211 = por %p209, %p210
      %p212 = scmp.ne.s32.totalorder %s204, %s206
      %p213 = scmp.eq.s32.totalorder %s91, 1
      %p214 = por %p212, %p213
      %p215 = scmp.ne.s32.totalorder %s206, %s207
      %p216 = scmp.eq.s32.totalorder %s91, 0
      %p217 = por %p215, %p216
      %p218 = scmp.ne.s32.totalorder %s206, %s207
      %p219 = scmp.eq.s32.totalorder %s92, 1
      %p220 = por %p218, %p219
      %p222 = scmp.ne.s32.totalorder %s207, %s221
      %p223 = scmp.eq.s32.totalorder %s92, 0
      %p224 = por %p222, %p223
      %s226 = sadd.s32 %s225, 1
      %p229 = scmp.eq.s32.totalorder %s86, 1
      %p230 = scmp.ne.s32.totalorder %s225, %s227
      %p231 = scmp.eq.s32.totalorder %s86, 0
      %p232 = por %p230, %p231
      %p233 = scmp.ne.s32.totalorder %s225, %s227
      %p234 = scmp.eq.s32.totalorder %s91, 1
      %p235 = por %p233, %p234
      %p236 = scmp.ne.s32.totalorder %s227, %s228
      %p237 = scmp.eq.s32.totalorder %s91, 0
      %p238 = por %p236, %p237
      %p239 = scmp.ne.s32.totalorder %s227, %s228
      %p240 = scmp.eq.s32.totalorder %s92, 1
      %p241 = por %p239, %p240
      %p243 = scmp.ne.s32.totalorder %s228, %s242
      %p244 = scmp.eq.s32.totalorder %s92, 0
      %p245 = por %p243, %p244
      %s247 = sadd.s32 %s246, 1
      %p250 = scmp.eq.s32.totalorder %s86, 1
      %p251 = scmp.ne.s32.totalorder %s246, %s248
      %p252 = scmp.eq.s32.totalorder %s86, 0
      %p253 = por %p251, %p252
      %p254 = scmp.ne.s32.totalorder %s246, %s248
      %p255 = scmp.eq.s32.totalorder %s91, 1
      %p256 = por %p254, %p255
      %p257 = scmp.ne.s32.totalorder %s248, %s249
      %p258 = scmp.eq.s32.totalorder %s91, 0
      %p259 = por %p257, %p258
      %p260 = scmp.ne.s32.totalorder %s248, %s249
      %p261 = scmp.eq.s32.totalorder %s92, 1
      %p262 = por %p260, %p261
      %p264 = scmp.ne.s32.totalorder %s249, %s263
      %p265 = scmp.eq.s32.totalorder %s92, 0
      %p266 = por %p264, %p265
      %s268 = sadd.s32 %s267, 1
      %p271 = scmp.eq.s32.totalorder %s86, 1
      %p272 = scmp.ne.s32.totalorder %s267, %s269
      %p273 = scmp.eq.s32.totalorder %s86, 0
      %p274 = por %p272, %p273
      %p275 = scmp.ne.s32.totalorder %s267, %s269
      %p276 = scmp.eq.s32.totalorder %s91, 1
      %p277 = por %p275, %p276
      %p278 = scmp.ne.s32.totalorder %s269, %s270
      %p279 = scmp.eq.s32.totalorder %s91, 0
      %p280 = por %p278, %p279
      %p281 = scmp.ne.s32.totalorder %s269, %s270
      %p282 = scmp.eq.s32.totalorder %s92, 1
      %p283 = por %p281, %p282
      %p285 = scmp.ne.s32.totalorder %s270, %s284
      %p286 = scmp.eq.s32.totalorder %s92, 0
      %p287 = por %p285, %p286
      %s289 = sadd.s32 %s288, 1
      %p292 = scmp.eq.s32.totalorder %s86, 1
      %p293 = scmp.ne.s32.totalorder %s288, %s290
      %p294 = scmp.eq.s32.totalorder %s86, 0
      %p295 = por %p293, %p294
      %p296 = scmp.ne.s32.totalorder %s288, %s290
      %p297 = scmp.eq.s32.totalorder %s91, 1
      %p298 = por %p296, %p297
      %p299 = scmp.ne.s32.totalorder %s290, %s291
      %p300 = scmp.eq.s32.totalorder %s91, 0
      %p301 = por %p299, %p300
      %p302 = scmp.ne.s32.totalorder %s290, %s291
      %p303 = scmp.eq.s32.totalorder %s92, 1
      %p304 = por %p302, %p303
      %p306 = scmp.ne.s32.totalorder %s291, %s305
      %p307 = scmp.eq.s32.totalorder %s92, 0
      %p308 = por %p306, %p307
      %s310 = sadd.s32 %s309, 1
      %p313 = scmp.eq.s32.totalorder %s86, 1
      %p314 = scmp.ne.s32.totalorder %s309, %s311
      %p315 = scmp.eq.s32.totalorder %s86, 0
      %p316 = por %p314, %p315
      %p317 = scmp.ne.s32.totalorder %s309, %s311
      %p318 = scmp.eq.s32.totalorder %s91, 1
      %p319 = por %p317, %p318
      %p320 = scmp.ne.s32.totalorder %s311, %s312
      %p321 = scmp.eq.s32.totalorder %s91, 0
      %p322 = por %p320, %p321
      %p323 = scmp.ne.s32.totalorder %s311, %s312
      %p324 = scmp.eq.s32.totalorder %s92, 1
      %p325 = por %p323, %p324
      %p327 = scmp.ne.s32.totalorder %s312, %s326
      %p328 = scmp.eq.s32.totalorder %s92, 0
      %p329 = por %p327, %p328
      %s331 = sadd.s32 %s330, 1
      %p334 = scmp.eq.s32.totalorder %s86, 1
      %p335 = scmp.ne.s32.totalorder %s330, %s332
      %p336 = scmp.eq.s32.totalorder %s86, 0
      %p337 = por %p335, %p336
      %p338 = scmp.ne.s32.totalorder %s330, %s332
      %p339 = scmp.eq.s32.totalorder %s91, 1
      %p340 = por %p338, %p339
      %p341 = scmp.ne.s32.totalorder %s332, %s333
      %p342 = scmp.eq.s32.totalorder %s91, 0
      %p343 = por %p341, %p342
      %p344 = scmp.ne.s32.totalorder %s332, %s333
      %p345 = scmp.eq.s32.totalorder %s92, 1
      %p346 = por %p344, %p345
      %p348 = scmp.ne.s32.totalorder %s333, %s347
      %p349 = scmp.eq.s32.totalorder %s92, 0
      %p350 = por %p348, %p349
      %s352 = sadd.s32 %s351, 1
      %p355 = scmp.eq.s32.totalorder %s86, 1
      %p356 = scmp.ne.s32.totalorder %s351, %s353
      %p357 = scmp.eq.s32.totalorder %s86, 0
      %p358 = por %p356, %p357
      %p359 = scmp.ne.s32.totalorder %s351, %s353
      %p360 = scmp.eq.s32.totalorder %s91, 1
      %p361 = por %p359, %p360
      %p362 = scmp.ne.s32.totalorder %s353, %s354
      %p363 = scmp.eq.s32.totalorder %s91, 0
      %p364 = por %p362, %p363
      %p365 = scmp.ne.s32.totalorder %s353, %s354
      %p366 = scmp.eq.s32.totalorder %s92, 1
      %p367 = por %p365, %p366
      %p369 = scmp.ne.s32.totalorder %s354, %s368
      %p370 = scmp.eq.s32.totalorder %s92, 0
      %p371 = por %p369, %p370
      %s373 = sadd.s32 %s372, 1
      %p376 = scmp.eq.s32.totalorder %s86, 1
      %p377 = scmp.ne.s32.totalorder %s372, %s374
      %p378 = scmp.eq.s32.totalorder %s86, 0
      %p379 = por %p377, %p378
      %p380 = scmp.ne.s32.totalorder %s372, %s374
      %p381 = scmp.eq.s32.totalorder %s91, 1
      %p382 = por %p380, %p381
      %p383 = scmp.ne.s32.totalorder %s374, %s375
      %p384 = scmp.eq.s32.totalorder %s91, 0
      %p385 = por %p383, %p384
      %p386 = scmp.ne.s32.totalorder %s374, %s375
      %p387 = scmp.eq.s32.totalorder %s92, 1
      %p388 = por %p386, %p387
      %p390 = scmp.ne.s32.totalorder %s375, %s389
      %p391 = scmp.eq.s32.totalorder %s92, 0
      %p392 = por %p390, %p391
      %s394 = sadd.s32 %s393, 1
      %p397 = scmp.eq.s32.totalorder %s86, 1
      %p398 = scmp.ne.s32.totalorder %s393, %s395
      %p399 = scmp.eq.s32.totalorder %s86, 0
      %p400 = por %p398, %p399
      %p401 = scmp.ne.s32.totalorder %s393, %s395
      %p402 = scmp.eq.s32.totalorder %s91, 1
      %p403 = por %p401, %p402
      %p404 = scmp.ne.s32.totalorder %s395, %s396
      %p405 = scmp.eq.s32.totalorder %s91, 0
      %p406 = por %p404, %p405
      %p407 = scmp.ne.s32.totalorder %s395, %s396
      %p408 = scmp.eq.s32.totalorder %s92, 1
      %p409 = por %p407, %p408
      %p411 = scmp.ne.s32.totalorder %s396, %s410
      %p412 = scmp.eq.s32.totalorder %s92, 0
      %p413 = por %p411, %p412
      %s415 = sadd.s32 %s414, 1
      %p418 = scmp.eq.s32.totalorder %s86, 1
      %p419 = scmp.ne.s32.totalorder %s414, %s416
      %p420 = scmp.eq.s32.totalorder %s86, 0
      %p421 = por %p419, %p420
      %p422 = scmp.ne.s32.totalorder %s414, %s416
      %p423 = scmp.eq.s32.totalorder %s91, 1
      %p424 = por %p422, %p423
      %p425 = scmp.ne.s32.totalorder %s416, %s417
      %p426 = scmp.eq.s32.totalorder %s91, 0
      %p427 = por %p425, %p426
      %p428 = scmp.ne.s32.totalorder %s416, %s417
      %p429 = scmp.eq.s32.totalorder %s92, 1
      %p430 = por %p428, %p429
      %p432 = scmp.ne.s32.totalorder %s417, %s431
      %p433 = scmp.eq.s32.totalorder %s92, 0
      %p434 = por %p432, %p433
      %s436 = sadd.s32 %s435, 1
      %p439 = scmp.eq.s32.totalorder %s86, 1
      %p440 = scmp.ne.s32.totalorder %s435, %s437
      %p441 = scmp.eq.s32.totalorder %s86, 0
      %p442 = por %p440, %p441
      %p443 = scmp.ne.s32.totalorder %s435, %s437
      %p444 = scmp.eq.s32.totalorder %s91, 1
      %p445 = por %p443, %p444
      %p446 = scmp.ne.s32.totalorder %s437, %s438
      %p447 = scmp.eq.s32.totalorder %s91, 0
      %p448 = por %p446, %p447
      %p449 = scmp.ne.s32.totalorder %s437, %s438
      %p450 = scmp.eq.s32.totalorder %s92, 1
      %p451 = por %p449, %p450
      %p453 = scmp.ne.s32.totalorder %s438, %s452
      %p454 = scmp.eq.s32.totalorder %s92, 0
      %p455 = por %p453, %p454
      %s457 = sadd.s32 %s456, 1
      %p460 = scmp.eq.s32.totalorder %s86, 1
      %p461 = scmp.ne.s32.totalorder %s456, %s458
      %p462 = scmp.eq.s32.totalorder %s86, 0
      %p463 = por %p461, %p462
      %p464 = scmp.ne.s32.totalorder %s456, %s458
      %p465 = scmp.eq.s32.totalorder %s91, 1
      %p466 = por %p464, %p465
      %p467 = scmp.ne.s32.totalorder %s458, %s459
      %p468 = scmp.eq.s32.totalorder %s91, 0
      %p469 = por %p467, %p468
      %p470 = scmp.ne.s32.totalorder %s458, %s459
      %p471 = scmp.eq.s32.totalorder %s92, 1
      %p472 = por %p470, %p471
      %p474 = scmp.ne.s32.totalorder %s459, %s473
      %p475 = scmp.eq.s32.totalorder %s92, 0
      %p476 = por %p474, %p475
      %s478 = sadd.s32 %s477, 1
      %p481 = scmp.eq.s32.totalorder %s86, 1
      %p482 = scmp.ne.s32.totalorder %s477, %s479
      %p483 = scmp.eq.s32.totalorder %s86, 0
      %p484 = por %p482, %p483
      %p485 = scmp.ne.s32.totalorder %s477, %s479
      %p486 = scmp.eq.s32.totalorder %s91, 1
      %p487 = por %p485, %p486
      %p488 = scmp.ne.s32.totalorder %s479, %s480
      %p489 = scmp.eq.s32.totalorder %s91, 0
      %p490 = por %p488, %p489
      %p491 = scmp.ne.s32.totalorder %s479, %s480
      %p492 = scmp.eq.s32.totalorder %s92, 1
      %p493 = por %p491, %p492
      %p495 = scmp.ne.s32.totalorder %s480, %s494
      %p496 = scmp.eq.s32.totalorder %s92, 0
      %p497 = por %p495, %p496
      %s499 = sadd.s32 %s498, 1
      %p502 = scmp.eq.s32.totalorder %s86, 1
      %p503 = scmp.ne.s32.totalorder %s498, %s500
      %p504 = scmp.eq.s32.totalorder %s86, 0
      %p505 = por %p503, %p504
      %p506 = scmp.ne.s32.totalorder %s498, %s500
      %p507 = scmp.eq.s32.totalorder %s91, 1
      %p508 = por %p506, %p507
      %p509 = scmp.ne.s32.totalorder %s500, %s501
      %p510 = scmp.eq.s32.totalorder %s91, 0
      %p511 = por %p509, %p510
      %p512 = scmp.ne.s32.totalorder %s500, %s501
      %p513 = scmp.eq.s32.totalorder %s92, 1
      %p514 = por %p512, %p513
      %p516 = scmp.ne.s32.totalorder %s501, %s515
      %p517 = scmp.eq.s32.totalorder %s92, 0
      %p518 = por %p516, %p517
      %s520 = sadd.s32 %s519, 1
      %p523 = scmp.eq.s32.totalorder %s86, 1
      %p524 = scmp.ne.s32.totalorder %s519, %s521
      %p525 = scmp.eq.s32.totalorder %s86, 0
      %p526 = por %p524, %p525
      %p527 = scmp.ne.s32.totalorder %s519, %s521
      %p528 = scmp.eq.s32.totalorder %s91, 1
      %p529 = por %p527, %p528
      %p530 = scmp.ne.s32.totalorder %s521, %s522
      %p531 = scmp.eq.s32.totalorder %s91, 0
      %p532 = por %p530, %p531
      %p533 = scmp.ne.s32.totalorder %s521, %s522
      %p534 = scmp.eq.s32.totalorder %s92, 1
      %p535 = por %p533, %p534
      %p537 = scmp.ne.s32.totalorder %s522, %s536
      %p538 = scmp.eq.s32.totalorder %s92, 0
      %p539 = por %p537, %p538
      %s541 = sadd.s32 %s540, 1
      %p544 = scmp.eq.s32.totalorder %s86, 1
      %p545 = scmp.ne.s32.totalorder %s540, %s542
      %p546 = scmp.eq.s32.totalorder %s86, 0
      %p547 = por %p545, %p546
      %p548 = scmp.ne.s32.totalorder %s540, %s542
      %p549 = scmp.eq.s32.totalorder %s91, 1
      %p550 = por %p548, %p549
      %p551 = scmp.ne.s32.totalorder %s542, %s543
      %p552 = scmp.eq.s32.totalorder %s91, 0
      %p553 = por %p551, %p552
      %p554 = scmp.ne.s32.totalorder %s542, %s543
      %p555 = scmp.eq.s32.totalorder %s92, 1
      %p556 = por %p554, %p555
      %p558 = scmp.ne.s32.totalorder %s543, %s557
      %p559 = scmp.eq.s32.totalorder %s92, 0
      %p560 = por %p558, %p559
      %s562 = sadd.s32 %s561, 1
      %p565 = scmp.eq.s32.totalorder %s86, 1
      %p566 = scmp.ne.s32.totalorder %s561, %s563
      %p567 = scmp.eq.s32.totalorder %s86, 0
      %p568 = por %p566, %p567
      %p569 = scmp.ne.s32.totalorder %s561, %s563
      %p570 = scmp.eq.s32.totalorder %s91, 1
      %p571 = por %p569, %p570
      %p572 = scmp.ne.s32.totalorder %s563, %s564
      %p573 = scmp.eq.s32.totalorder %s91, 0
      %p574 = por %p572, %p573
      %p575 = scmp.ne.s32.totalorder %s563, %s564
      %p576 = scmp.eq.s32.totalorder %s92, 1
      %p577 = por %p575, %p576
      %p579 = scmp.ne.s32.totalorder %s564, %s578
      %p580 = scmp.eq.s32.totalorder %s92, 0
      %p581 = por %p579, %p580
      %s583 = sadd.s32 %s582, 1
      %p586 = scmp.eq.s32.totalorder %s86, 1
      %p587 = scmp.ne.s32.totalorder %s582, %s584
      %p588 = scmp.eq.s32.totalorder %s86, 0
      %p589 = por %p587, %p588
      %p590 = scmp.ne.s32.totalorder %s582, %s584
      %p591 = scmp.eq.s32.totalorder %s91, 1
      %p592 = por %p590, %p591
      %p593 = scmp.ne.s32.totalorder %s584, %s585
      %p594 = scmp.eq.s32.totalorder %s91, 0
      %p595 = por %p593, %p594
      %p596 = scmp.ne.s32.totalorder %s584, %s585
      %p597 = scmp.eq.s32.totalorder %s92, 1
      %p598 = por %p596, %p597
      %p600 = scmp.ne.s32.totalorder %s585, %s599
      %p601 = scmp.eq.s32.totalorder %s92, 0
      %p602 = por %p600, %p601
      %s604 = sadd.s32 %s603, 1
      %p607 = scmp.eq.s32.totalorder %s86, 1
      %p608 = scmp.ne.s32.totalorder %s603, %s605
      %p609 = scmp.eq.s32.totalorder %s86, 0
      %p610 = por %p608, %p609
      %p611 = scmp.ne.s32.totalorder %s603, %s605
      %p612 = scmp.eq.s32.totalorder %s91, 1
      %p613 = por %p611, %p612
      %p614 = scmp.ne.s32.totalorder %s605, %s606
      %p615 = scmp.eq.s32.totalorder %s91, 0
      %p616 = por %p614, %p615
      %p617 = scmp.ne.s32.totalorder %s605, %s606
      %p618 = scmp.eq.s32.totalorder %s92, 1
      %p619 = por %p617, %p618
      %p621 = scmp.ne.s32.totalorder %s606, %s620
      %p622 = scmp.eq.s32.totalorder %s92, 0
      %p623 = por %p621, %p622
      %s625 = sadd.s32 %s624, 1
      %p628 = scmp.eq.s32.totalorder %s86, 1
      %p629 = scmp.ne.s32.totalorder %s624, %s626
      %p630 = scmp.eq.s32.totalorder %s86, 0
      %p631 = por %p629, %p630
      %p632 = scmp.ne.s32.totalorder %s624, %s626
      %p633 = scmp.eq.s32.totalorder %s91, 1
      %p634 = por %p632, %p633
      %p635 = scmp.ne.s32.totalorder %s626, %s627
      %p636 = scmp.eq.s32.totalorder %s91, 0
      %p637 = por %p635, %p636
      %p638 = scmp.ne.s32.totalorder %s626, %s627
      %p639 = scmp.eq.s32.totalorder %s92, 1
      %p640 = por %p638, %p639
      %p642 = scmp.ne.s32.totalorder %s627, %s641
      %p643 = scmp.eq.s32.totalorder %s92, 0
      %p644 = por %p642, %p643
      %s646 = sadd.s32 %s645, 1
      %p649 = scmp.eq.s32.totalorder %s86, 1
      %p650 = scmp.ne.s32.totalorder %s645, %s647
      %p651 = scmp.eq.s32.totalorder %s86, 0
      %p652 = por %p650, %p651
      %p653 = scmp.ne.s32.totalorder %s645, %s647
      %p654 = scmp.eq.s32.totalorder %s91, 1
      %p655 = por %p653, %p654
      %p656 = scmp.ne.s32.totalorder %s647, %s648
      %p657 = scmp.eq.s32.totalorder %s91, 0
      %p658 = por %p656, %p657
      %p659 = scmp.ne.s32.totalorder %s647, %s648
      %p660 = scmp.eq.s32.totalorder %s92, 1
      %p661 = por %p659, %p660
      %p663 = scmp.ne.s32.totalorder %s648, %s662
      %p664 = scmp.eq.s32.totalorder %s92, 0
      %p665 = por %p663, %p664
      %s667 = sadd.s32 %s666, 1
      %p670 = scmp.eq.s32.totalorder %s86, 1
      %p671 = scmp.ne.s32.totalorder %s666, %s668
      %p672 = scmp.eq.s32.totalorder %s86, 0
      %p673 = por %p671, %p672
      %p674 = scmp.ne.s32.totalorder %s666, %s668
      %p675 = scmp.eq.s32.totalorder %s91, 1
      %p676 = por %p674, %p675
      %p677 = scmp.ne.s32.totalorder %s668, %s669
      %p678 = scmp.eq.s32.totalorder %s91, 0
      %p679 = por %p677, %p678
      %p680 = scmp.ne.s32.totalorder %s668, %s669
      %p681 = scmp.eq.s32.totalorder %s92, 1
      %p682 = por %p680, %p681
      %p684 = scmp.ne.s32.totalorder %s669, %s683
      %p685 = scmp.eq.s32.totalorder %s92, 0
      %p686 = por %p684, %p685
      %s688 = sadd.s32 %s687, 1
      %p691 = scmp.eq.s32.totalorder %s86, 1
      %p692 = scmp.ne.s32.totalorder %s687, %s689
      %p693 = scmp.eq.s32.totalorder %s86, 0
      %p694 = por %p692, %p693
      %p695 = scmp.ne.s32.totalorder %s687, %s689
      %p696 = scmp.eq.s32.totalorder %s91, 1
      %p697 = por %p695, %p696
      %p698 = scmp.ne.s32.totalorder %s689, %s690
      %p699 = scmp.eq.s32.totalorder %s91, 0
      %p700 = por %p698, %p699
      %p701 = scmp.ne.s32.totalorder %s689, %s690
      %p702 = scmp.eq.s32.totalorder %s92, 1
      %p703 = por %p701, %p702
      %p705 = scmp.ne.s32.totalorder %s690, %s704
      %p706 = scmp.eq.s32.totalorder %s92, 0
      %p707 = por %p705, %p706
      %s709 = sadd.s32 %s708, 1
      %p712 = scmp.eq.s32.totalorder %s86, 1
      %p713 = scmp.ne.s32.totalorder %s708, %s710
      %p714 = scmp.eq.s32.totalorder %s86, 0
      %p715 = por %p713, %p714
      %p716 = scmp.ne.s32.totalorder %s708, %s710
      %p717 = scmp.eq.s32.totalorder %s91, 1
      %p718 = por %p716, %p717
      %p719 = scmp.ne.s32.totalorder %s710, %s711
      %p720 = scmp.eq.s32.totalorder %s91, 0
      %p721 = por %p719, %p720
      %p722 = scmp.ne.s32.totalorder %s710, %s711
      %p723 = scmp.eq.s32.totalorder %s92, 1
      %p724 = por %p722, %p723
      %p726 = scmp.ne.s32.totalorder %s711, %s725
      %p727 = scmp.eq.s32.totalorder %s92, 0
      %p728 = por %p726, %p727
      %s730 = sadd.s32 %s729, 1
      %p733 = scmp.eq.s32.totalorder %s86, 1
      %p734 = scmp.ne.s32.totalorder %s729, %s731
      %p735 = scmp.eq.s32.totalorder %s86, 0
      %p736 = por %p734, %p735
      %p737 = scmp.ne.s32.totalorder %s729, %s731
      %p738 = scmp.eq.s32.totalorder %s91, 1
      %p739 = por %p737, %p738
      %p740 = scmp.ne.s32.totalorder %s731, %s732
      %p741 = scmp.eq.s32.totalorder %s91, 0
      %p742 = por %p740, %p741
      %p743 = scmp.ne.s32.totalorder %s731, %s732
      %p744 = scmp.eq.s32.totalorder %s92, 1
      %p745 = por %p743, %p744
      %p747 = scmp.ne.s32.totalorder %s732, %s746
      %p748 = scmp.eq.s32.totalorder %s92, 0
      %p749 = por %p747, %p748
      %s751 = sadd.s32 %s750, 1
      %p754 = scmp.eq.s32.totalorder %s86, 1
      %p755 = scmp.ne.s32.totalorder %s750, %s752
      %p756 = scmp.eq.s32.totalorder %s86, 0
      %p757 = por %p755, %p756
      %p758 = scmp.ne.s32.totalorder %s750, %s752
      %p759 = scmp.eq.s32.totalorder %s91, 1
      %p760 = por %p758, %p759
      %p761 = scmp.ne.s32.totalorder %s752, %s753
      %p762 = scmp.eq.s32.totalorder %s91, 0
      %p763 = por %p761, %p762
      %p764 = scmp.ne.s32.totalorder %s752, %s753
      %p765 = scmp.eq.s32.totalorder %s92, 1
      %p766 = por %p764, %p765
      %p768 = scmp.ne.s32.totalorder %s753, %s767
      %p769 = scmp.eq.s32.totalorder %s92, 0
      %p770 = por %p768, %p769
      %s772 = sadd.s32 %s771, 1
      %p775 = scmp.eq.s32.totalorder %s86, 1
      %p776 = scmp.ne.s32.totalorder %s771, %s773
      %p777 = scmp.eq.s32.totalorder %s86, 0
      %p778 = por %p776, %p777
      %p779 = scmp.ne.s32.totalorder %s771, %s773
      %p780 = scmp.eq.s32.totalorder %s91, 1
      %p781 = por %p779, %p780
      %p782 = scmp.ne.s32.totalorder %s773, %s774
      %p783 = scmp.eq.s32.totalorder %s91, 0
      %p784 = por %p782, %p783
      %p785 = scmp.ne.s32.totalorder %s773, %s774
      %p786 = scmp.eq.s32.totalorder %s92, 1
      %p787 = por %p785, %p786
      %p789 = scmp.ne.s32.totalorder %s774, %s788
      %p790 = scmp.eq.s32.totalorder %s92, 0
      %p791 = por %p789, %p790
      %s793 = sadd.s32 %s792, 1
      %p796 = scmp.eq.s32.totalorder %s86, 1
      %p797 = scmp.ne.s32.totalorder %s792, %s794
      %p798 = scmp.eq.s32.totalorder %s86, 0
      %p799 = por %p797, %p798
      %p800 = scmp.ne.s32.totalorder %s792, %s794
      %p801 = scmp.eq.s32.totalorder %s91, 1
      %p802 = por %p800, %p801
      %p803 = scmp.ne.s32.totalorder %s794, %s795
      %p804 = scmp.eq.s32.totalorder %s91, 0
      %p805 = por %p803, %p804
      %p806 = scmp.ne.s32.totalorder %s794, %s795
      %p807 = scmp.eq.s32.totalorder %s92, 1
      %p808 = por %p806, %p807
      %p810 = scmp.ne.s32.totalorder %s795, %s809
      %p811 = scmp.eq.s32.totalorder %s92, 0
      %p812 = por %p810, %p811
      %s813 = ssub.s32 %s86, %s93
      %p814 = scmp.eq.s32.totalorder %s813, 0
      %s816 = sadd.s32 %s815, 1
      %s817 = scalar_select %p814, %s815, %s816
      %p820 = pneg %p814
      %p821 = scmp.eq.s32.totalorder %s86, 1
      %p822 = por %p820, %p821
      %p823 = scmp.ne.s32.totalorder %s815, %s818
      %p824 = scmp.eq.s32.totalorder %s86, 0
      %p825 = por %p823, %p824
      %p826 = scmp.ne.s32.totalorder %s815, %s818
      %p827 = scmp.eq.s32.totalorder %s91, 1
      %p828 = por %p826, %p827
      %p829 = scmp.ne.s32.totalorder %s818, %s819
      %p830 = scmp.eq.s32.totalorder %s91, 0
      %p831 = por %p829, %p830
      %p832 = scmp.ne.s32.totalorder %s818, %s819
      %p833 = scmp.eq.s32.totalorder %s92, 1
      %p834 = por %p832, %p833
      %p836 = scmp.ne.s32.totalorder %s819, %s835
      %p837 = scmp.eq.s32.totalorder %s92, 0
      %p838 = por %p836, %p837
      %p839 = scmp.le.s32.totalorder 1, %s86
      %p840 = scmp.lt.s32.totalorder %s86, 3
      %p841 = pnand %p839, %p840
      %p842 = pneg %p841
      // Predicated region
      $region9: #{_lambda_.1} parent=5 // pred_check
        _
      $region10: #{_lambda_.1} parent=5 // pred_check_branch
        %844 = sbr.rel (%p841) target = $region12
      $region11: #{_lambda_.1} parent=5 // pred_region
        %s845 = ssub.s32 %s86, 1
        // Predicated region
        $region13: #{_lambda_.1} parent=11 // pred_check
          %p846 = pneg %p133
        $region14: #{_lambda_.1} parent=11 // pred_check_branch
          %848 = sbr.rel (%p846) target = $region16
        $region15: #{_lambda_.1} parent=11 // pred_region
          %850 = vsyncadd [#allocation3], 0
          %s851 = sshll.u32 %s3, 4
          %s852 = int_to_ptr.hbm [resolvable:$true] %s851
          %s853 = sshll.u32 [#allocation2], 4
          %s854 = int_to_ptr.vmem [resolvable:$true] %s853
          %859 = dma.hbm_to_vmem [thread:$0]  %s852, 256, %s854, [#allocation3], 128, 128, 8
        $region16: #{_lambda_.1} parent=11 // pred_fallthru
          _
        // Predicated region
        $region17: #{_lambda_.1} parent=11 // pred_check
          %p860 = pneg %p154
        $region18: #{_lambda_.1} parent=11 // pred_check_branch
          %862 = sbr.rel (%p860) target = $region20
        $region19: #{_lambda_.1} parent=11 // pred_region
          _
        $region20: #{_lambda_.1} parent=11 // pred_fallthru
          _
        // Predicated region
        $region21: #{_lambda_.1} parent=11 // pred_check
          %p863 = pneg %p175
        $region22: #{_lambda_.1} parent=11 // pred_check_branch
          %865 = sbr.rel (%p863) target = $region24
        $region23: #{_lambda_.1} parent=11 // pred_region
          _
        $region24: #{_lambda_.1} parent=11 // pred_fallthru
          _
        // Predicated region
        $region25: #{_lambda_.1} parent=11 // pred_check
          %p866 = pneg %p196
        $region26: #{_lambda_.1} parent=11 // pred_check_branch
          %868 = sbr.rel (%p866) target = $region28
        $region27: #{_lambda_.1} parent=11 // pred_region
          _
        $region28: #{_lambda_.1} parent=11 // pred_fallthru
          _
        // Predicated region
        $region29: #{_lambda_.1} parent=11 // pred_check
          %p869 = pneg %p217
        $region30: #{_lambda_.1} parent=11 // pred_check_branch
          %871 = sbr.rel (%p869) target = $region32
        $region31: #{_lambda_.1} parent=11 // pred_region
          _
        $region32: #{_lambda_.1} parent=11 // pred_fallthru
          _
        // Predicated region
        $region33: #{_lambda_.1} parent=11 // pred_check
          %p872 = pneg %p238
        $region34: #{_lambda_.1} parent=11 // pred_check_branch
          %874 = sbr.rel (%p872) target = $region36
        $region35: #{_lambda_.1} parent=11 // pred_region
          _
        $region36: #{_lambda_.1} parent=11 // pred_fallthru
          _
        // Predicated region
        $region37: #{_lambda_.1} parent=11 // pred_check
          %p875 = pneg %p259
        $region38: #{_lambda_.1} parent=11 // pred_check_branch
          %877 = sbr.rel (%p875) target = $region40
        $region39: #{_lambda_.1} parent=11 // pred_region
          _
        $region40: #{_lambda_.1} parent=11 // pred_fallthru
          _
        // Predicated region
        $region41: #{_lambda_.1} parent=11 // pred_check
          %p878 = pneg %p280
        $region42: #{_lambda_.1} parent=11 // pred_check_branch
          %880 = sbr.rel (%p878) target = $region44
        $region43: #{_lambda_.1} parent=11 // pred_region
          _
        $region44: #{_lambda_.1} parent=11 // pred_fallthru
          _
        // Predicated region
        $region45: #{_lambda_.1} parent=11 // pred_check
          %p881 = pneg %p301
        $region46: #{_lambda_.1} parent=11 // pred_check_branch
          %883 = sbr.rel (%p881) target = $region48
        $region47: #{_lambda_.1} parent=11 // pred_region
          %885 = vsyncadd [#allocation5], 0
          %s887 = sshll.u32 %s19, 4
          %s888 = int_to_ptr.hbm [resolvable:$true] %s887
          %s889 = sshll.u32 [#allocation4], 4
          %s890 = int_to_ptr.vmem [resolvable:$true] %s889
          %892 = dma.hbm_to_vmem [thread:$0]  %s888, 16, %s890, [#allocation5]
        $region48: #{_lambda_.1} parent=11 // pred_fallthru
          _
        // Predicated region
        $region49: #{_lambda_.1} parent=11 // pred_check
          %p893 = pneg %p322
        $region50: #{_lambda_.1} parent=11 // pred_check_branch
          %895 = sbr.rel (%p893) target = $region52
        $region51: #{_lambda_.1} parent=11 // pred_region
          _
        $region52: #{_lambda_.1} parent=11 // pred_fallthru
          _
        // Predicated region
        $region53: #{_lambda_.1} parent=11 // pred_check
          %p896 = pneg %p343
        $region54: #{_lambda_.1} parent=11 // pred_check_branch
          %898 = sbr.rel (%p896) target = $region56
        $region55: #{_lambda_.1} parent=11 // pred_region
          %900 = vsyncadd [#allocation5], 0
          %s902 = sshll.u32 %s23, 4
          %s903 = int_to_ptr.hbm [resolvable:$true] %s902
          %s904 = sshll.u32 [#allocation6], 4
          %s905 = int_to_ptr.vmem [resolvable:$true] %s904
          %907 = dma.hbm_to_vmem [thread:$0]  %s903, 16, %s905, [#allocation5]
        $region56: #{_lambda_.1} parent=11 // pred_fallthru
          _
        // Predicated region
        $region57: #{_lambda_.1} parent=11 // pred_check
          %p908 = pneg %p364
        $region58: #{_lambda_.1} parent=11 // pred_check_branch
          %910 = sbr.rel (%p908) target = $region60
        $region59: #{_lambda_.1} parent=11 // pred_region
          _
        $region60: #{_lambda_.1} parent=11 // pred_fallthru
          _
        // Predicated region
        $region61: #{_lambda_.1} parent=11 // pred_check
          %p911 = pneg %p385
        $region62: #{_lambda_.1} parent=11 // pred_check_branch
          %913 = sbr.rel (%p911) target = $region64
        $region63: #{_lambda_.1} parent=11 // pred_region
          %915 = vsyncadd [#allocation8], 0
          %s917 = sshll.u32 %s27, 4
          %s918 = int_to_ptr.hbm [resolvable:$true] %s917
          %s919 = sshll.u32 [#allocation7], 4
          %s920 = int_to_ptr.vmem [resolvable:$true] %s919
          %922 = dma.hbm_to_vmem [thread:$0]  %s918, 16, %s920, [#allocation8]
        $region64: #{_lambda_.1} parent=11 // pred_fallthru
          _
        // Predicated region
        $region65: #{_lambda_.1} parent=11 // pred_check
          %p923 = pneg %p406
        $region66: #{_lambda_.1} parent=11 // pred_check_branch
          %925 = sbr.rel (%p923) target = $region68
        $region67: #{_lambda_.1} parent=11 // pred_region
          %927 = vsyncadd [#allocation8], 0
          %s929 = sshll.u32 %s29, 4
          %s930 = int_to_ptr.hbm [resolvable:$true] %s929
          %s931 = sshll.u32 [#allocation9], 4
          %s932 = int_to_ptr.vmem [resolvable:$true] %s931
          %934 = dma.hbm_to_vmem [thread:$0]  %s930, 16, %s932, [#allocation8]
        $region68: #{_lambda_.1} parent=11 // pred_fallthru
          _
        // Predicated region
        $region69: #{_lambda_.1} parent=11 // pred_check
          %p935 = pneg %p427
        $region70: #{_lambda_.1} parent=11 // pred_check_branch
          %937 = sbr.rel (%p935) target = $region72
        $region71: #{_lambda_.1} parent=11 // pred_region
          %939 = vsyncadd [#allocation11], 0
          %s941 = sshll.u32 %s31, 4
          %s942 = int_to_ptr.hbm [resolvable:$true] %s941
          %s943 = sshll.u32 [#allocation10], 4
          %s944 = int_to_ptr.vmem [resolvable:$true] %s943
          %946 = dma.hbm_to_vmem [thread:$0]  %s942, 16, %s944, [#allocation11]
        $region72: #{_lambda_.1} parent=11 // pred_fallthru
          _
        // Predicated region
        $region73: #{_lambda_.1} parent=11 // pred_check
          %p947 = pneg %p448
        $region74: #{_lambda_.1} parent=11 // pred_check_branch
          %949 = sbr.rel (%p947) target = $region76
        $region75: #{_lambda_.1} parent=11 // pred_region
          %951 = vsyncadd [#allocation11], 0
          %s952 = sshll.u32 %s33, 4
          %s953 = int_to_ptr.hbm [resolvable:$true] %s952
          %s954 = sshll.u32 [#allocation12], 4
          %s955 = int_to_ptr.vmem [resolvable:$true] %s954
          %960 = dma.hbm_to_vmem [thread:$0]  %s953, 512, %s955, [#allocation11], 128, 128, 8
        $region76: #{_lambda_.1} parent=11 // pred_fallthru
          _
        // Predicated region
        $region77: #{_lambda_.1} parent=11 // pred_check
          %p961 = pneg %p469
        $region78: #{_lambda_.1} parent=11 // pred_check_branch
          %963 = sbr.rel (%p961) target = $region80
        $region79: #{_lambda_.1} parent=11 // pred_region
          %965 = vsyncadd [#allocation14], 0
          %s967 = sshll.u32 %s35, 4
          %s968 = int_to_ptr.hbm [resolvable:$true] %s967
          %s969 = sshll.u32 [#allocation13], 4
          %s970 = int_to_ptr.vmem [resolvable:$true] %s969
          %972 = dma.hbm_to_vmem [thread:$0]  %s968, 16, %s970, [#allocation14]
        $region80: #{_lambda_.1} parent=11 // pred_fallthru
          _
        // Predicated region
        $region81: #{_lambda_.1} parent=11 // pred_check
          %p973 = pneg %p490
        $region82: #{_lambda_.1} parent=11 // pred_check_branch
          %975 = sbr.rel (%p973) target = $region84
        $region83: #{_lambda_.1} parent=11 // pred_region
          %977 = vsyncadd [#allocation14], 0
          %s978 = sshll.u32 %s37, 4
          %s979 = int_to_ptr.hbm [resolvable:$true] %s978
          %s980 = sshll.u32 [#allocation15], 4
          %s981 = int_to_ptr.vmem [resolvable:$true] %s980
          %986 = dma.hbm_to_vmem [thread:$0]  %s979, 512, %s981, [#allocation14], 128, 128, 8
        $region84: #{_lambda_.1} parent=11 // pred_fallthru
          _
        // Predicated region
        $region85: #{_lambda_.1} parent=11 // pred_check
          %p987 = pneg %p511
        $region86: #{_lambda_.1} parent=11 // pred_check_branch
          %989 = sbr.rel (%p987) target = $region88
        $region87: #{_lambda_.1} parent=11 // pred_region
          %991 = vsyncadd [#allocation17], 0
          %s993 = sshll.u32 %s39, 4
          %s994 = int_to_ptr.hbm [resolvable:$true] %s993
          %s995 = sshll.u32 [#allocation16], 4
          %s996 = int_to_ptr.vmem [resolvable:$true] %s995
          %998 = dma.hbm_to_vmem [thread:$0]  %s994, 16, %s996, [#allocation17]
        $region88: #{_lambda_.1} parent=11 // pred_fallthru
          _
        // Predicated region
        $region89: #{_lambda_.1} parent=11 // pred_check
          %p999 = pneg %p532
        $region90: #{_lambda_.1} parent=11 // pred_check_branch
          %1001 = sbr.rel (%p999) target = $region92
        $region91: #{_lambda_.1} parent=11 // pred_region
          %1003 = vsyncadd [#allocation17], 0
          %s1005 = sshll.u32 %s41, 4
          %s1006 = int_to_ptr.hbm [resolvable:$true] %s1005
          %s1007 = sshll.u32 [#allocation18], 4
          %s1008 = int_to_ptr.vmem [resolvable:$true] %s1007
          %1010 = dma.hbm_to_vmem [thread:$0]  %s1006, 16, %s1008, [#allocation17]
        $region92: #{_lambda_.1} parent=11 // pred_fallthru
          _
        // Predicated region
        $region93: #{_lambda_.1} parent=11 // pred_check
          %p1011 = pneg %p553
        $region94: #{_lambda_.1} parent=11 // pred_check_branch
          %1013 = sbr.rel (%p1011) target = $region96
        $region95: #{_lambda_.1} parent=11 // pred_region
          %1015 = vsyncadd [#allocation20], 0
          %s1017 = sshll.u32 %s43, 4
          %s1018 = int_to_ptr.hbm [resolvable:$true] %s1017
          %s1019 = sshll.u32 [#allocation19], 4
          %s1020 = int_to_ptr.vmem [resolvable:$true] %s1019
          %1022 = dma.hbm_to_vmem [thread:$0]  %s1018, 16, %s1020, [#allocation20]
        $region96: #{_lambda_.1} parent=11 // pred_fallthru
          _
        // Predicated region
        $region97: #{_lambda_.1} parent=11 // pred_check
          %p1023 = pneg %p574
        $region98: #{_lambda_.1} parent=11 // pred_check_branch
          %1025 = sbr.rel (%p1023) target = $region100
        $region99: #{_lambda_.1} parent=11 // pred_region
          _
        $region100: #{_lambda_.1} parent=11 // pred_fallthru
          _
        // Predicated region
        $region101: #{_lambda_.1} parent=11 // pred_check
          %p1026 = pneg %p595
        $region102: #{_lambda_.1} parent=11 // pred_check_branch
          %1028 = sbr.rel (%p1026) target = $region104
        $region103: #{_lambda_.1} parent=11 // pred_region
          %1030 = vsyncadd [#allocation20], 0
          %s1032 = sshll.u32 %s47, 4
          %s1033 = int_to_ptr.hbm [resolvable:$true] %s1032
          %s1034 = sshll.u32 [#allocation21], 4
          %s1035 = int_to_ptr.vmem [resolvable:$true] %s1034
          %1037 = dma.hbm_to_vmem [thread:$0]  %s1033, 16, %s1035, [#allocation20]
        $region104: #{_lambda_.1} parent=11 // pred_fallthru
          _
        // Predicated region
        $region105: #{_lambda_.1} parent=11 // pred_check
          %p1038 = pneg %p616
        $region106: #{_lambda_.1} parent=11 // pred_check_branch
          %1040 = sbr.rel (%p1038) target = $region108
        $region107: #{_lambda_.1} parent=11 // pred_region
          %1042 = vsyncadd [#allocation23], 0
          %s1043 = sshll.u32 %s49, 4
          %s1044 = int_to_ptr.hbm [resolvable:$true] %s1043
          %s1045 = sshll.u32 [#allocation22], 4
          %s1046 = int_to_ptr.vmem [resolvable:$true] %s1045
          %1051 = dma.hbm_to_vmem [thread:$0]  %s1044, 256, %s1046, [#allocation23], 128, 128, 8
        $region108: #{_lambda_.1} parent=11 // pred_fallthru
          _
        // Predicated region
        $region109: #{_lambda_.1} parent=11 // pred_check
          %p1052 = pneg %p637
        $region110: #{_lambda_.1} parent=11 // pred_check_branch
          %1054 = sbr.rel (%p1052) target = $region112
        $region111: #{_lambda_.1} parent=11 // pred_region
          %1056 = vsyncadd [#allocation23], 0
          %s1058 = sshll.u32 %s51, 4
          %s1059 = int_to_ptr.hbm [resolvable:$true] %s1058
          %s1060 = sshll.u32 [#allocation24], 4
          %s1061 = int_to_ptr.vmem [resolvable:$true] %s1060
          %1063 = dma.hbm_to_vmem [thread:$0]  %s1059, 16, %s1061, [#allocation23]
        $region112: #{_lambda_.1} parent=11 // pred_fallthru
          _
        // Predicated region
        $region113: #{_lambda_.1} parent=11 // pred_check
          %p1064 = pneg %p658
        $region114: #{_lambda_.1} parent=11 // pred_check_branch
          %1066 = sbr.rel (%p1064) target = $region116
        $region115: #{_lambda_.1} parent=11 // pred_region
          %1068 = vsyncadd [#allocation26], 0
          %s1070 = sshll.u32 %s53, 4
          %s1071 = int_to_ptr.hbm [resolvable:$true] %s1070
          %s1072 = sshll.u32 [#allocation25], 4
          %s1073 = int_to_ptr.vmem [resolvable:$true] %s1072
          %1075 = dma.hbm_to_vmem [thread:$0]  %s1071, 16, %s1073, [#allocation26]
        $region116: #{_lambda_.1} parent=11 // pred_fallthru
          _
        // Predicated region
        $region117: #{_lambda_.1} parent=11 // pred_check
          %p1076 = pneg %p679
        $region118: #{_lambda_.1} parent=11 // pred_check_branch
          %1078 = sbr.rel (%p1076) target = $region120
        $region119: #{_lambda_.1} parent=11 // pred_region
          %1080 = vsyncadd [#allocation26], 0
          %s1082 = sshll.u32 %s55, 4
          %s1083 = int_to_ptr.hbm [resolvable:$true] %s1082
          %s1084 = sshll.u32 [#allocation27], 4
          %s1085 = int_to_ptr.vmem [resolvable:$true] %s1084
          %1087 = dma.hbm_to_vmem [thread:$0]  %s1083, 16, %s1085, [#allocation26]
        $region120: #{_lambda_.1} parent=11 // pred_fallthru
          _
        // Predicated region
        $region121: #{_lambda_.1} parent=11 // pred_check
          %p1088 = pneg %p700
        $region122: #{_lambda_.1} parent=11 // pred_check_branch
          %1090 = sbr.rel (%p1088) target = $region124
        $region123: #{_lambda_.1} parent=11 // pred_region
          _
        $region124: #{_lambda_.1} parent=11 // pred_fallthru
          _
        // Predicated region
        $region125: #{_lambda_.1} parent=11 // pred_check
          %p1091 = pneg %p721
        $region126: #{_lambda_.1} parent=11 // pred_check_branch
          %1093 = sbr.rel (%p1091) target = $region128
        $region127: #{_lambda_.1} parent=11 // pred_region
          %1095 = vsyncadd [#allocation29], 0
          %s1097 = sshll.u32 %s59, 4
          %s1098 = int_to_ptr.hbm [resolvable:$true] %s1097
          %s1099 = sshll.u32 [#allocation28], 4
          %s1100 = int_to_ptr.vmem [resolvable:$true] %s1099
          %1102 = dma.hbm_to_vmem [thread:$0]  %s1098, 16, %s1100, [#allocation29]
        $region128: #{_lambda_.1} parent=11 // pred_fallthru
          _
        // Predicated region
        $region129: #{_lambda_.1} parent=11 // pred_check
          %p1103 = pneg %p742
        $region130: #{_lambda_.1} parent=11 // pred_check_branch
          %1105 = sbr.rel (%p1103) target = $region132
        $region131: #{_lambda_.1} parent=11 // pred_region
          _
        $region132: #{_lambda_.1} parent=11 // pred_fallthru
          _
        // Predicated region
        $region133: #{_lambda_.1} parent=11 // pred_check
          %p1106 = pneg %p763
        $region134: #{_lambda_.1} parent=11 // pred_check_branch
          %1108 = sbr.rel (%p1106) target = $region136
        $region135: #{_lambda_.1} parent=11 // pred_region
          %1110 = vsyncadd [#allocation29], 0
          %s1112 = sshll.u32 %s63, 4
          %s1113 = int_to_ptr.hbm [resolvable:$true] %s1112
          %s1114 = sshll.u32 [#allocation30], 4
          %s1115 = int_to_ptr.vmem [resolvable:$true] %s1114
          %1117 = dma.hbm_to_vmem [thread:$0]  %s1113, 16, %s1115, [#allocation29]
        $region136: #{_lambda_.1} parent=11 // pred_fallthru
          _
        // Predicated region
        $region137: #{_lambda_.1} parent=11 // pred_check
          %p1118 = pneg %p784
        $region138: #{_lambda_.1} parent=11 // pred_check_branch
          %1120 = sbr.rel (%p1118) target = $region140
        $region139: #{_lambda_.1} parent=11 // pred_region
          %1122 = vsyncadd [#allocation32], 0
          %s1123 = sshll.u32 %s65, 4
          %s1124 = int_to_ptr.hbm [resolvable:$true] %s1123
          %s1125 = sshll.u32 [#allocation31], 4
          %s1126 = int_to_ptr.vmem [resolvable:$true] %s1125
          %1131 = dma.hbm_to_vmem [thread:$0]  %s1124, 256, %s1126, [#allocation32], 128, 128, 8
        $region140: #{_lambda_.1} parent=11 // pred_fallthru
          _
        // Predicated region
        $region141: #{_lambda_.1} parent=11 // pred_check
          %p1132 = pneg %p805
        $region142: #{_lambda_.1} parent=11 // pred_check_branch
          %1134 = sbr.rel (%p1132) target = $region144
        $region143: #{_lambda_.1} parent=11 // pred_region
          %1136 = vsyncadd [#allocation32], 0
          %s1138 = sshll.u32 %s67, 4
          %s1139 = int_to_ptr.hbm [resolvable:$true] %s1138
          %s1140 = sshll.u32 [#allocation33], 4
          %s1141 = int_to_ptr.vmem [resolvable:$true] %s1140
          %1143 = dma.hbm_to_vmem [thread:$0]  %s1139, 16, %s1141, [#allocation32]
        $region144: #{_lambda_.1} parent=11 // pred_fallthru
          _
      $region12: #{_lambda_.1} parent=5 // pred_fallthru
        _
      %p1144 = scmp.lt.s32.totalorder %s86, 2
      // Predicated region
      $region145: #{_lambda_.1} parent=5 // pred_check
        %p1145 = pneg %p1144
      $region146: #{_lambda_.1} parent=5 // pred_check_branch
        %1147 = sbr.rel (%p1145) target = $region148
      $region147: #{_lambda_.1} parent=5 // pred_region
        // Predicated region
        $region149: #{_lambda_.1} parent=147 // pred_check
          %p1148 = pneg %p106
        $region150: #{_lambda_.1} parent=147 // pred_check_branch
          %1150 = sbr.rel (%p1148) target = $region152
        $region151: #{_lambda_.1} parent=147 // pred_region
          %p1151 = scmp.lt.s32.totalorder %s86, 1
          %s1152 = scalar_select %p1151, %s86, 1
          %s1153 = smul.addr %s1152, 2
          %s1154 = smul.addr %s1153, 8
          %s1155 = scalar_lea.vmem %s1, %s1154
        $region152: #{_lambda_.1} parent=147 // pred_fallthru
          _
      $region148: #{_lambda_.1} parent=5 // pred_fallthru
        _
      %p1156 = scmp.le.s32.totalorder 1, %s86
      %p1157 = scmp.lt.s32.totalorder %s86, 3
      %p1158 = pnand %p1156, %p1157
      %p1159 = pneg %p1158
      // Predicated region
      $region153: #{_lambda_.1} parent=5 // pred_check
        _
      $region154: #{_lambda_.1} parent=5 // pred_check_branch
        %1161 = sbr.rel (%p1158) target = $region156
      $region155: #{_lambda_.1} parent=5 // pred_region
        %s1162 = ssub.s32 %s86, 1
        // Predicated region
        $region157: #{_lambda_.1} parent=155 // pred_check
          %p1163 = pneg %p133
        $region158: #{_lambda_.1} parent=155 // pred_check_branch
          %1165 = sbr.rel (%p1163) target = $region160
        $region159: #{_lambda_.1} parent=155 // pred_region
          %1167 = dma.done [#allocation3], 256
        $region160: #{_lambda_.1} parent=155 // pred_fallthru
          _
        // Predicated region
        $region161: #{_lambda_.1} parent=155 // pred_check
          %p1168 = pneg %p301
        $region162: #{_lambda_.1} parent=155 // pred_check_branch
          %1170 = sbr.rel (%p1168) target = $region164
        $region163: #{_lambda_.1} parent=155 // pred_region
          %1172 = dma.done [#allocation5], 16
        $region164: #{_lambda_.1} parent=155 // pred_fallthru
          _
        // Predicated region
        $region165: #{_lambda_.1} parent=155 // pred_check
          %p1173 = pneg %p343
        $region166: #{_lambda_.1} parent=155 // pred_check_branch
          %1175 = sbr.rel (%p1173) target = $region168
        $region167: #{_lambda_.1} parent=155 // pred_region
          %1177 = dma.done [#allocation5], 16
        $region168: #{_lambda_.1} parent=155 // pred_fallthru
          _
        // Predicated region
        $region169: #{_lambda_.1} parent=155 // pred_check
          %p1178 = pneg %p385
        $region170: #{_lambda_.1} parent=155 // pred_check_branch
          %1180 = sbr.rel (%p1178) target = $region172
        $region171: #{_lambda_.1} parent=155 // pred_region
          %1182 = dma.done [#allocation8], 16
        $region172: #{_lambda_.1} parent=155 // pred_fallthru
          _
        // Predicated region
        $region173: #{_lambda_.1} parent=155 // pred_check
          %p1183 = pneg %p406
        $region174: #{_lambda_.1} parent=155 // pred_check_branch
          %1185 = sbr.rel (%p1183) target = $region176
        $region175: #{_lambda_.1} parent=155 // pred_region
          %1187 = dma.done [#allocation8], 16
        $region176: #{_lambda_.1} parent=155 // pred_fallthru
          _
        // Predicated region
        $region177: #{_lambda_.1} parent=155 // pred_check
          %p1188 = pneg %p427
        $region178: #{_lambda_.1} parent=155 // pred_check_branch
          %1190 = sbr.rel (%p1188) target = $region180
        $region179: #{_lambda_.1} parent=155 // pred_region
          %1192 = dma.done [#allocation11], 16
        $region180: #{_lambda_.1} parent=155 // pred_fallthru
          _
        // Predicated region
        $region181: #{_lambda_.1} parent=155 // pred_check
          %p1193 = pneg %p448
        $region182: #{_lambda_.1} parent=155 // pred_check_branch
          %1195 = sbr.rel (%p1193) target = $region184
        $region183: #{_lambda_.1} parent=155 // pred_region
          %1197 = dma.done [#allocation11], 512
        $region184: #{_lambda_.1} parent=155 // pred_fallthru
          _
        // Predicated region
        $region185: #{_lambda_.1} parent=155 // pred_check
          %p1198 = pneg %p469
        $region186: #{_lambda_.1} parent=155 // pred_check_branch
          %1200 = sbr.rel (%p1198) target = $region188
        $region187: #{_lambda_.1} parent=155 // pred_region
          %1202 = dma.done [#allocation14], 16
        $region188: #{_lambda_.1} parent=155 // pred_fallthru
          _
        // Predicated region
        $region189: #{_lambda_.1} parent=155 // pred_check
          %p1203 = pneg %p490
        $region190: #{_lambda_.1} parent=155 // pred_check_branch
          %1205 = sbr.rel (%p1203) target = $region192
        $region191: #{_lambda_.1} parent=155 // pred_region
          %1207 = dma.done [#allocation14], 512
        $region192: #{_lambda_.1} parent=155 // pred_fallthru
          _
        // Predicated region
        $region193: #{_lambda_.1} parent=155 // pred_check
          %p1208 = pneg %p511
        $region194: #{_lambda_.1} parent=155 // pred_check_branch
          %1210 = sbr.rel (%p1208) target = $region196
        $region195: #{_lambda_.1} parent=155 // pred_region
          %1212 = dma.done [#allocation17], 16
        $region196: #{_lambda_.1} parent=155 // pred_fallthru
          _
        // Predicated region
        $region197: #{_lambda_.1} parent=155 // pred_check
          %p1213 = pneg %p532
        $region198: #{_lambda_.1} parent=155 // pred_check_branch
          %1215 = sbr.rel (%p1213) target = $region200
        $region199: #{_lambda_.1} parent=155 // pred_region
          %1217 = dma.done [#allocation17], 16
        $region200: #{_lambda_.1} parent=155 // pred_fallthru
          _
        // Predicated region
        $region201: #{_lambda_.1} parent=155 // pred_check
          %p1218 = pneg %p553
        $region202: #{_lambda_.1} parent=155 // pred_check_branch
          %1220 = sbr.rel (%p1218) target = $region204
        $region203: #{_lambda_.1} parent=155 // pred_region
          %1222 = dma.done [#allocation20], 16
        $region204: #{_lambda_.1} parent=155 // pred_fallthru
          _
        // Predicated region
        $region205: #{_lambda_.1} parent=155 // pred_check
          %p1223 = pneg %p595
        $region206: #{_lambda_.1} parent=155 // pred_check_branch
          %1225 = sbr.rel (%p1223) target = $region208
        $region207: #{_lambda_.1} parent=155 // pred_region
          %1227 = dma.done [#allocation20], 16
        $region208: #{_lambda_.1} parent=155 // pred_fallthru
          _
        // Predicated region
        $region209: #{_lambda_.1} parent=155 // pred_check
          %p1228 = pneg %p616
        $region210: #{_lambda_.1} parent=155 // pred_check_branch
          %1230 = sbr.rel (%p1228) target = $region212
        $region211: #{_lambda_.1} parent=155 // pred_region
          %1232 = dma.done [#allocation23], 256
        $region212: #{_lambda_.1} parent=155 // pred_fallthru
          _
        // Predicated region
        $region213: #{_lambda_.1} parent=155 // pred_check
          %p1233 = pneg %p637
        $region214: #{_lambda_.1} parent=155 // pred_check_branch
          %1235 = sbr.rel (%p1233) target = $region216
        $region215: #{_lambda_.1} parent=155 // pred_region
          %1237 = dma.done [#allocation23], 16
        $region216: #{_lambda_.1} parent=155 // pred_fallthru
          _
        // Predicated region
        $region217: #{_lambda_.1} parent=155 // pred_check
          %p1238 = pneg %p658
        $region218: #{_lambda_.1} parent=155 // pred_check_branch
          %1240 = sbr.rel (%p1238) target = $region220
        $region219: #{_lambda_.1} parent=155 // pred_region
          %1242 = dma.done [#allocation26], 16
        $region220: #{_lambda_.1} parent=155 // pred_fallthru
          _
        // Predicated region
        $region221: #{_lambda_.1} parent=155 // pred_check
          %p1243 = pneg %p679
        $region222: #{_lambda_.1} parent=155 // pred_check_branch
          %1245 = sbr.rel (%p1243) target = $region224
        $region223: #{_lambda_.1} parent=155 // pred_region
          %1247 = dma.done [#allocation26], 16
        $region224: #{_lambda_.1} parent=155 // pred_fallthru
          _
        // Predicated region
        $region225: #{_lambda_.1} parent=155 // pred_check
          %p1248 = pneg %p721
        $region226: #{_lambda_.1} parent=155 // pred_check_branch
          %1250 = sbr.rel (%p1248) target = $region228
        $region227: #{_lambda_.1} parent=155 // pred_region
          %1252 = dma.done [#allocation29], 16
        $region228: #{_lambda_.1} parent=155 // pred_fallthru
          _
        // Predicated region
        $region229: #{_lambda_.1} parent=155 // pred_check
          %p1253 = pneg %p763
        $region230: #{_lambda_.1} parent=155 // pred_check_branch
          %1255 = sbr.rel (%p1253) target = $region232
        $region231: #{_lambda_.1} parent=155 // pred_region
          %1257 = dma.done [#allocation29], 16
        $region232: #{_lambda_.1} parent=155 // pred_fallthru
          _
        // Predicated region
        $region233: #{_lambda_.1} parent=155 // pred_check
          %p1258 = pneg %p784
        $region234: #{_lambda_.1} parent=155 // pred_check_branch
          %1260 = sbr.rel (%p1258) target = $region236
        $region235: #{_lambda_.1} parent=155 // pred_region
          %1262 = dma.done [#allocation32], 256
        $region236: #{_lambda_.1} parent=155 // pred_fallthru
          _
        // Predicated region
        $region237: #{_lambda_.1} parent=155 // pred_check
          %p1263 = pneg %p805
        $region238: #{_lambda_.1} parent=155 // pred_check_branch
          %1265 = sbr.rel (%p1263) target = $region240
        $region239: #{_lambda_.1} parent=155 // pred_region
          %1267 = dma.done [#allocation32], 16
        $region240: #{_lambda_.1} parent=155 // pred_fallthru
          _
        %p1268 = scmp.lt.s32.totalorder %s91, 1
        %s1269 = scalar_select %p1268, %s91, 1
        %s1270 = smul.addr %s1269, 2
        %s1271 = smul.addr %s1270, 8
        %s1272 = scalar_lea.vmem %s1, %s1271
        %p1273 = pneg %p112
        %p1274 = pneg %p109
        %p1275 = pneg %p133
        %p1276 = pneg %p130
        %p1277 = pneg %p154
        %p1278 = pneg %p151
        %p1279 = pneg %p175
        %p1280 = pneg %p172
        %p1281 = pneg %p196
        %p1282 = pneg %p193
        %p1283 = pneg %p217
        %p1284 = pneg %p214
        %p1285 = pneg %p238
        %p1286 = pneg %p235
        %p1287 = pneg %p259
        %p1288 = pneg %p256
        %p1289 = pneg %p280
        %p1290 = pneg %p277
        %p1291 = pneg %p301
        %p1292 = pneg %p298
        %p1293 = pneg %p322
        %p1294 = pneg %p319
        %p1295 = pneg %p343
        %p1296 = pneg %p340
        %p1297 = pneg %p364
        %p1298 = pneg %p361
        %p1299 = pneg %p385
        %p1300 = pneg %p382
        %p1301 = pneg %p406
        %p1302 = pneg %p403
        %p1303 = pneg %p427
        %p1304 = pneg %p424
        %p1305 = pneg %p448
        %p1306 = pneg %p445
        %p1307 = pneg %p469
        %p1308 = pneg %p466
        %p1309 = pneg %p490
        %p1310 = pneg %p487
        %p1311 = pneg %p511
        %p1312 = pneg %p508
        %p1313 = pneg %p532
        %p1314 = pneg %p529
        %p1315 = pneg %p553
        %p1316 = pneg %p550
        %p1317 = pneg %p574
        %p1318 = pneg %p571
        %p1319 = pneg %p595
        %p1320 = pneg %p592
        %p1321 = pneg %p616
        %p1322 = pneg %p613
        %p1323 = pneg %p637
        %p1324 = pneg %p634
        %p1325 = pneg %p658
        %p1326 = pneg %p655
        %p1327 = pneg %p679
        %p1328 = pneg %p676
        %p1329 = pneg %p700
        %p1330 = pneg %p697
        %p1331 = pneg %p721
        %p1332 = pneg %p718
        %p1333 = pneg %p742
        %p1334 = pneg %p739
        %p1335 = pneg %p763
        %p1336 = pneg %p760
        %p1337 = pneg %p784
        %p1338 = pneg %p781
        %p1339 = pneg %p805
        %p1340 = pneg %p802
        %p1341 = pneg %p831
        %p1342 = pneg %p828
        %p1343 = scmp.lt.s32.totalorder %s91, 1
        %s1344 = scalar_select %p1343, %s91, 1
        %s1345 = smul.addr %s1344, 2
        %s1346 = smul.addr %s1345, 8
        %s1347 = scalar_lea.vmem %s69, %s1346
        %p1348 = scmp.lt.s32.totalorder %s91, 1
        %s1349 = scalar_select %p1348, %s91, 1
        %s1350 = smul.addr %s1349, 2
        %s1351 = smul.addr %s1350, 8
        %s1352 = scalar_lea.vmem %s1, %s1351
        %p1353 = scmp.lt.s32.totalorder %s91, 1
        %s1354 = scalar_select %p1353, %s91, 1
        %s1355 = smul.addr %s1354, 2
        %s1356 = smul.addr %s1355, 8
        %s1357 = scalar_lea.vmem %s69, %s1356
        %v1358 = vld [vmem:[%s1352] sm:$0xff]
        %v1359 = vld [vmem:[%s1352 + $0x8] sm:$0xff]
        %v1360 = vld [vmem:[#allocation2] sm:$0xff]
        %v1361 = vld [vmem:[#allocation2 + $0x8] sm:$0xff]
        %v1362 = vld [vmem:[%s5] sm:$0x1]
        %v1364 = vperm.slane %v1362, 0
        %vm1366 = vcmask 130048
        %v1368 = vsel %vm1366, %v1358, 0
        %v1371 = vsel %vm1366, %v1359, 0
        %1373 = vmatpush.msra.mxu0 0.0
        %1374 = vmatpush.msra.mxu0 0.0
        %1375 = vmatpush.msra.mxu0 0.0
        %1376 = vmatpush.msra.mxu0 0.0
        %1377 = vmatpush.msra.mxu0 0.0
        %1378 = vmatpush.msra.mxu0 0.0
        %1379 = vmatpush.msra.mxu0 0.0
        %1380 = vmatpush.msra.mxu0 0.0
        %1381 = vmatpush.msra.mxu0 0.0
        %1382 = vmatpush.msra.mxu0 0.0
        %1383 = vmatpush.msra.mxu0 0.0
        %1384 = vmatpush.msra.mxu0 0.0
        %1385 = vmatpush.msra.mxu0 0.0
        %1386 = vmatpush.msra.mxu0 0.0
        %1387 = vmatpush.msra.mxu0 %v1361
        %1388 = vmatpush.msra.mxu0 %v1360
        %1389 = vmatmul.f32.gmra.mxu0 %v1368
        %v1390 = vpop.f32.mrf.mxu0
        %v1391 = vadd.f32 %v1364, %v1390
        %1392 = vmatmul.f32.gmra.mxu0 %v1371
        %v1393 = vpop.f32.mrf.mxu0
        %v1394 = vadd.f32 %v1364, %v1393
        %1395 = vdwg.mxu0
        %v1396 = vld [vmem:[%s7] sm:$0xff]
        %v1397 = vld [vmem:[%s7 + $0x8] sm:$0xff]
        %v1398 = vadd.f32 %v1391, %v1396
        %v1399 = vadd.f32 %v1394, %v1397
        %v1400 = vld [vmem:[%s9] sm:$0xff]
        %v1401 = vld [vmem:[%s9 + $0x8] sm:$0xff]
        %v1402 = vld [vmem:[%s9 + $0x10] sm:$0xff]
        %v1403 = vld [vmem:[%s9 + $0x18] sm:$0xff]
        %v1404 = vld [vmem:[%s11] sm:$0x1]
        %v1406 = vperm.slane %v1404, 0
        %vm1408 = vcmask 261120
        %v1410 = vsel %vm1408, %v1398, 0
        %v1413 = vsel %vm1408, %v1399, 0
        %1415 = vmatpush.msra.mxu0 0.0
        %1416 = vmatpush.msra.mxu0 0.0
        %1417 = vmatpush.msra.mxu0 0.0
        %1418 = vmatpush.msra.mxu0 0.0
        %1419 = vmatpush.msra.mxu0 0.0
        %1420 = vmatpush.msra.mxu0 0.0
        %1421 = vmatpush.msra.mxu0 0.0
        %1422 = vmatpush.msra.mxu0 0.0
        %1423 = vmatpush.msra.mxu0 0.0
        %1424 = vmatpush.msra.mxu0 0.0
        %1425 = vmatpush.msra.mxu0 0.0
        %1426 = vmatpush.msra.mxu0 0.0
        %1427 = vmatpush.msra.mxu0 %v1403
        %1428 = vmatpush.msra.mxu0 %v1402
        %1429 = vmatpush.msra.mxu0 %v1401
        %1430 = vmatpush.msra.mxu0 %v1400
        %1431 = vmatmul.f32.gmra.mxu0 %v1410
        %v1432 = vpop.f32.mrf.mxu0
        %v1433 = vadd.f32 %v1406, %v1432
        %1434 = vmatmul.f32.gmra.mxu0 %v1413
        %v1435 = vpop.f32.mrf.mxu0
        %v1436 = vadd.f32 %v1406, %v1435
        %1437 = vdwg.mxu0
        %1440 = vrot.lane.b32.xlu0 %v1433, 96
        %v1441 = vpop.permute.xlu0 %1440
        %1442 = vrot.lane.b32.xlu0 %v1436, 96
        %v1443 = vpop.permute.xlu0 %1442
        %v1444 = vsel %vm1366, %v1433, 0
        %v1446 = vsel %vm1366, %v1436, 0
        %v1448 = vsel %vm1366, %v1441, 0
        %v1450 = vsel %vm1366, %v1443, 0
        %1452 = vmatpush.xpose.msra.mxu0 0.0
        %1453 = vmatpush.xpose.msra.mxu0 0.0
        %1454 = vmatpush.xpose.msra.mxu0 0.0
        %1455 = vmatpush.xpose.msra.mxu0 0.0
        %1456 = vmatpush.xpose.msra.mxu0 0.0
        %1457 = vmatpush.xpose.msra.mxu0 0.0
        %1458 = vmatpush.xpose.msra.mxu0 0.0
        %1459 = vmatpush.xpose.msra.mxu0 0.0
        %1460 = vmatpush.xpose.msra.mxu0 0.0
        %1461 = vmatpush.xpose.msra.mxu0 0.0
        %1462 = vmatpush.xpose.msra.mxu0 0.0
        %1463 = vmatpush.xpose.msra.mxu0 0.0
        %1464 = vmatpush.xpose.msra.mxu0 0.0
        %1465 = vmatpush.xpose.msra.mxu0 0.0
        %1466 = vmatpush.xpose.msra.mxu0 %v1450
        %1467 = vmatpush.xpose.msra.mxu0 %v1448
        %1468 = vmatmul.f32.gmra.mxu0 %v1444
        %v1469 = vpop.f32.mrf.mxu0
        %v1470 = vadd.f32 0.0, %v1469
        %1471 = vmatmul.f32.gmra.mxu0 %v1446
        %v1472 = vpop.f32.mrf.mxu0
        %v1473 = vadd.f32 0.0, %v1472
        %1474 = vdwg.mxu0
        %v1475 = vmul.f32 %v1470, 0.25
        %v1476 = vmul.f32 %v1473, 0.25
        %v1477 = vsel %vm1366, %v1475, -inf
        %1478 = vmax.xlane.f32.xlu0 %v1477
        %v1479 = vpop.xlane.xlu0 %1478
        %v1480 = vsel %vm1366, %v1476, -inf
        %1481 = vmax.xlane.f32.xlu0 %v1480
        %v1482 = vpop.xlane.xlu0 %1481
        %v1483 = vsub.f32 %v1475, %v1479
        %v1484 = vsub.f32 %v1476, %v1482
        %v1485 = vmul.f32 %v1483, 1.442695
        %v1486 = vpow.pop %v1485
        %v1487 = vmul.f32 %v1484, 1.442695
        %v1488 = vpow.pop %v1487
        %v1489 = vsel %vm1366, %v1486, 0.0
        %1490 = vadd.xlane.f32.xlu0 %v1489
        %v1491 = vpop.xlane.xlu0 %1490
        %v1492 = vsel %vm1366, %v1488, 0.0
        %1493 = vadd.xlane.f32.xlu0 %v1492
        %v1494 = vpop.xlane.xlu0 %1493
        %v1495 = vrcp.pop %v1491
        %v1496 = vrcp.pop %v1494
        %v1497 = vmul.f32 %v1486, %v1495
        %v1498 = vmul.f32 %v1488, %v1496
        %1499 = vrot.lane.b32.xlu0 %v1433, 64
        %v1500 = vpop.permute.xlu0 %1499
        %1501 = vrot.lane.b32.xlu0 %v1436, 64
        %v1502 = vpop.permute.xlu0 %1501
        %v1506 = vsel %vm1366, %v1497, 0
        %v1509 = vsel %vm1366, %v1498, 0
        %1511 = vmatpush.msra.mxu0 0.0
        %1512 = vmatpush.msra.mxu0 0.0
        %1513 = vmatpush.msra.mxu0 0.0
        %1514 = vmatpush.msra.mxu0 0.0
        %1515 = vmatpush.msra.mxu0 0.0
        %1516 = vmatpush.msra.mxu0 0.0
        %1517 = vmatpush.msra.mxu0 0.0
        %1518 = vmatpush.msra.mxu0 0.0
        %1519 = vmatpush.msra.mxu0 0.0
        %1520 = vmatpush.msra.mxu0 0.0
        %1521 = vmatpush.msra.mxu0 0.0
        %1522 = vmatpush.msra.mxu0 0.0
        %1523 = vmatpush.msra.mxu0 0.0
        %1524 = vmatpush.msra.mxu0 0.0
        %1525 = vmatpush.msra.mxu0 %v1502
        %1526 = vmatpush.msra.mxu0 %v1500
        %1527 = vmatmul.f32.gmra.mxu0 %v1506
        %v1528 = vpop.f32.mrf.mxu0
        %v1529 = vadd.f32 0.0, %v1528
        %1530 = vmatmul.f32.gmra.mxu0 %v1509
        %v1531 = vpop.f32.mrf.mxu0
        %v1532 = vadd.f32 0.0, %v1531
        %1533 = vdwg.mxu0
        %v1534 = vld [vmem:[%s13] sm:$0xff]
        %v1535 = vld [vmem:[%s13 + $0x8] sm:$0xff]
        %1536 = vrot.lane.b32.xlu0 %v1433, 112
        %v1537 = vpop.permute.xlu0 %1536
        %1538 = vrot.lane.b32.xlu0 %v1436, 112
        %v1539 = vpop.permute.xlu0 %1538
        %1540 = vrot.lane.b32.xlu0 %v1433, 80
        %v1541 = vpop.permute.xlu0 %1540
        %1542 = vrot.lane.b32.xlu0 %v1436, 80
        %v1543 = vpop.permute.xlu0 %1542
        %v1544 = vsel %vm1366, %v1537, 0
        %v1546 = vsel %vm1366, %v1539, 0
        %v1548 = vsel %vm1366, %v1541, 0
        %v1550 = vsel %vm1366, %v1543, 0
        %1552 = vmatpush.xpose.msra.mxu0 0.0
        %1553 = vmatpush.xpose.msra.mxu0 0.0
        %1554 = vmatpush.xpose.msra.mxu0 0.0
        %1555 = vmatpush.xpose.msra.mxu0 0.0
        %1556 = vmatpush.xpose.msra.mxu0 0.0
        %1557 = vmatpush.xpose.msra.mxu0 0.0
        %1558 = vmatpush.xpose.msra.mxu0 0.0
        %1559 = vmatpush.xpose.msra.mxu0 0.0
        %1560 = vmatpush.xpose.msra.mxu0 0.0
        %1561 = vmatpush.xpose.msra.mxu0 0.0
        %1562 = vmatpush.xpose.msra.mxu0 0.0
        %1563 = vmatpush.xpose.msra.mxu0 0.0
        %1564 = vmatpush.xpose.msra.mxu0 0.0
        %1565 = vmatpush.xpose.msra.mxu0 0.0
        %1566 = vmatpush.xpose.msra.mxu0 %v1550
        %1567 = vmatpush.xpose.msra.mxu0 %v1548
        %1568 = vmatmul.f32.gmra.mxu0 %v1544
        %v1569 = vpop.f32.mrf.mxu0
        %v1570 = vadd.f32 0.0, %v1569
        %1571 = vmatmul.f32.gmra.mxu0 %v1546
        %v1572 = vpop.f32.mrf.mxu0
        %v1573 = vadd.f32 0.0, %v1572
        %1574 = vdwg.mxu0
        %v1575 = vmul.f32 %v1570, 0.25
        %v1576 = vmul.f32 %v1573, 0.25
        %v1577 = vsel %vm1366, %v1575, -inf
        %1578 = vmax.xlane.f32.xlu0 %v1577
        %v1579 = vpop.xlane.xlu0 %1578
        %v1580 = vsel %vm1366, %v1576, -inf
        %1581 = vmax.xlane.f32.xlu0 %v1580
        %v1582 = vpop.xlane.xlu0 %1581
        %v1583 = vsub.f32 %v1575, %v1579
        %v1584 = vsub.f32 %v1576, %v1582
        %v1585 = vmul.f32 %v1583, 1.442695
        %v1586 = vpow.pop %v1585
        %v1587 = vmul.f32 %v1584, 1.442695
        %v1588 = vpow.pop %v1587
        %v1589 = vsel %vm1366, %v1586, 0.0
        %1590 = vadd.xlane.f32.xlu0 %v1589
        %v1591 = vpop.xlane.xlu0 %1590
        %v1592 = vsel %vm1366, %v1588, 0.0
        %1593 = vadd.xlane.f32.xlu0 %v1592
        %v1594 = vpop.xlane.xlu0 %1593
        %v1595 = vrcp.pop %v1591
        %v1596 = vrcp.pop %v1594
        %v1597 = vmul.f32 %v1586, %v1595
        %v1598 = vmul.f32 %v1588, %v1596
        %1599 = vrot.lane.b32.xlu0 %v1433, 48
        %v1600 = vpop.permute.xlu0 %1599
        %1601 = vrot.lane.b32.xlu0 %v1436, 48
        %v1602 = vpop.permute.xlu0 %1601
        %v1606 = vsel %vm1366, %v1597, 0
        %v1609 = vsel %vm1366, %v1598, 0
        %1611 = vmatpush.msra.mxu0 0.0
        %1612 = vmatpush.msra.mxu0 0.0
        %1613 = vmatpush.msra.mxu0 0.0
        %1614 = vmatpush.msra.mxu0 0.0
        %1615 = vmatpush.msra.mxu0 0.0
        %1616 = vmatpush.msra.mxu0 0.0
        %1617 = vmatpush.msra.mxu0 0.0
        %1618 = vmatpush.msra.mxu0 0.0
        %1619 = vmatpush.msra.mxu0 0.0
        %1620 = vmatpush.msra.mxu0 0.0
        %1621 = vmatpush.msra.mxu0 0.0
        %1622 = vmatpush.msra.mxu0 0.0
        %1623 = vmatpush.msra.mxu0 0.0
        %1624 = vmatpush.msra.mxu0 0.0
        %1625 = vmatpush.msra.mxu0 %v1602
        %1626 = vmatpush.msra.mxu0 %v1600
        %1627 = vmatmul.f32.gmra.mxu0 %v1606
        %v1628 = vpop.f32.mrf.mxu0
        %v1629 = vadd.f32 0.0, %v1628
        %1630 = vmatmul.f32.gmra.mxu0 %v1609
        %v1631 = vpop.f32.mrf.mxu0
        %v1632 = vadd.f32 0.0, %v1631
        %1633 = vdwg.mxu0
        %v1634 = vld [vmem:[%s13 + $0x10] sm:$0xff]
        %v1635 = vld [vmem:[%s13 + $0x18] sm:$0xff]
        %v1637 = vsel %vm1366, %v1629, 0
        %v1640 = vsel %vm1366, %v1632, 0
        %1642 = vmatpush.msra.mxu0 0.0
        %1643 = vmatpush.msra.mxu0 0.0
        %1644 = vmatpush.msra.mxu0 0.0
        %1645 = vmatpush.msra.mxu0 0.0
        %1646 = vmatpush.msra.mxu0 0.0
        %1647 = vmatpush.msra.mxu0 0.0
        %1648 = vmatpush.msra.mxu0 0.0
        %1649 = vmatpush.msra.mxu0 0.0
        %1650 = vmatpush.msra.mxu0 0.0
        %1651 = vmatpush.msra.mxu0 0.0
        %1652 = vmatpush.msra.mxu0 0.0
        %1653 = vmatpush.msra.mxu0 0.0
        %1654 = vmatpush.msra.mxu0 0.0
        %1655 = vmatpush.msra.mxu0 0.0
        %1656 = vmatpush.msra.mxu0 %v1635
        %1657 = vmatpush.msra.mxu0 %v1634
        %1658 = vmatmul.f32.gmra.mxu0 %v1637
        %v1659 = vpop.f32.mrf.mxu0
        %v1660 = vadd.f32 0.0, %v1659
        %1661 = vmatmul.f32.gmra.mxu0 %v1640
        %v1662 = vpop.f32.mrf.mxu0
        %v1663 = vadd.f32 0.0, %v1662
        %1664 = vdwg.mxu0
        %v1666 = vsel %vm1366, %v1529, 0
        %v1669 = vsel %vm1366, %v1532, 0
        %1671 = vmatpush.msra.mxu0 0.0
        %1672 = vmatpush.msra.mxu0 0.0
        %1673 = vmatpush.msra.mxu0 0.0
        %1674 = vmatpush.msra.mxu0 0.0
        %1675 = vmatpush.msra.mxu0 0.0
        %1676 = vmatpush.msra.mxu0 0.0
        %1677 = vmatpush.msra.mxu0 0.0
        %1678 = vmatpush.msra.mxu0 0.0
        %1679 = vmatpush.msra.mxu0 0.0
        %1680 = vmatpush.msra.mxu0 0.0
        %1681 = vmatpush.msra.mxu0 0.0
        %1682 = vmatpush.msra.mxu0 0.0
        %1683 = vmatpush.msra.mxu0 0.0
        %1684 = vmatpush.msra.mxu0 0.0
        %1685 = vmatpush.msra.mxu0 %v1535
        %1686 = vmatpush.msra.mxu0 %v1534
        %1687 = vmatmul.f32.gmra.mxu0 %v1666
        %v1688 = vpop.f32.mrf.mxu0
        %v1689 = vadd.f32 %v1660, %v1688
        %1690 = vmatmul.f32.gmra.mxu0 %v1669
        %v1691 = vpop.f32.mrf.mxu0
        %v1692 = vadd.f32 %v1663, %v1691
        %1693 = vdwg.mxu0
        %v1694 = vld [vmem:[%s15] sm:$0x1]
        %v1696 = vperm.slane %v1694, 0
        %v1698 = vadd.f32 %v1689, %v1696
        %v1699 = vadd.f32 %v1692, %v1696
        %v1700 = vadd.f32 %v1398, %v1698
        %v1701 = vadd.f32 %v1399, %v1699
        %v1702 = vsel %vm1408, %v1700, 0.0
        %1703 = vadd.xlane.f32.xlu0 %v1702
        %v1704 = vpop.xlane.xlu0 %1703
        %v1705 = vsel %vm1408, %v1701, 0.0
        %1706 = vadd.xlane.f32.xlu0 %v1705
        %v1707 = vpop.xlane.xlu0 %1706
        %v1708 = vrcp.pop 32.0
        %v1709 = vmul.f32 32.0, %v1708
        %v1710 = vsub.f32 1.0, %v1709
        %v1711 = vmul.f32 %v1708, %v1710
        %v1712 = vadd.f32 %v1708, %v1711
        %vm1713 = vweird.f32 %v1708
        %v1714 = vsel %vm1713, %v1708, %v1712
        %v1715 = vmul.f32 %v1704, %v1714
        %v1716 = vmul.f32 %v1707, %v1714
        %v1717 = vsub.f32 %v1700, %v1715
        %v1718 = vsub.f32 %v1701, %v1716
        %v1719 = vmul.f32 %v1717, %v1717
        %v1720 = vmul.f32 %v1718, %v1718
        %v1721 = vsel %vm1408, %v1719, 0.0
        %1722 = vadd.xlane.f32.xlu0 %v1721
        %v1723 = vpop.xlane.xlu0 %1722
        %v1724 = vsel %vm1408, %v1720, 0.0
        %1725 = vadd.xlane.f32.xlu0 %v1724
        %v1726 = vpop.xlane.xlu0 %1725
        %v1727 = vmul.f32 %v1723, %v1714
        %v1728 = vmul.f32 %v1726, %v1714
        %v1729 = vadd.f32 %v1727, 1e-05
        %v1730 = vadd.f32 %v1728, 1e-05
        %v1731 = vrsqrt.pop %v1729
        %v1732 = vmul.f32 %v1731, %v1729
        %v1733 = vmul.f32 %v1732, %v1731
        %v1734 = vmul.f32 0.5, %v1733
        %v1735 = vsub.f32 1.5, %v1734
        %v1736 = vmul.f32 %v1731, %v1735
        %vm1737 = vweird.f32 %v1729
        %vm1738 = vweird.f32 %v1731
        %vm1739 = vmor %vm1737, %vm1738
        %v1740 = vsel %vm1739, %v1731, %v1736
        %v1741 = vrsqrt.pop %v1730
        %v1742 = vmul.f32 %v1741, %v1730
        %v1743 = vmul.f32 %v1742, %v1741
        %v1744 = vmul.f32 0.5, %v1743
        %v1745 = vsub.f32 1.5, %v1744
        %v1746 = vmul.f32 %v1741, %v1745
        %vm1747 = vweird.f32 %v1730
        %vm1748 = vweird.f32 %v1741
        %vm1749 = vmor %vm1747, %vm1748
        %v1750 = vsel %vm1749, %v1741, %v1746
        %v1751 = vmul.f32 %v1717, %v1740
        %v1752 = vmul.f32 %v1718, %v1750
        %v1753 = vld [vmem:[%s17] sm:$0x1]
        %v1755 = vperm.slane %v1753, 0
        %v1757 = vmul.f32 %v1751, %v1755
        %v1758 = vmul.f32 %v1752, %v1755
        %v1759 = vld [vmem:[#allocation4] sm:$0x1]
        %v1761 = vperm.slane %v1759, 0
        %v1763 = vadd.f32 %v1757, %v1761
        %v1764 = vadd.f32 %v1758, %v1761
        %v1765 = vld [vmem:[%s21] sm:$0xff]
        %v1766 = vld [vmem:[%s21 + $0x8] sm:$0xff]
        %v1767 = vld [vmem:[%s21 + $0x10] sm:$0xff]
        %v1768 = vld [vmem:[%s21 + $0x18] sm:$0xff]
        %v1769 = vld [vmem:[#allocation6] sm:$0x1]
        %v1771 = vperm.slane %v1769, 0
        %v1774 = vsel %vm1408, %v1763, 0
        %v1777 = vsel %vm1408, %v1764, 0
        %1779 = vmatpush.msra.mxu0 0.0
        %1780 = vmatpush.msra.mxu0 0.0
        %1781 = vmatpush.msra.mxu0 0.0
        %1782 = vmatpush.msra.mxu0 0.0
        %1783 = vmatpush.msra.mxu0 0.0
        %1784 = vmatpush.msra.mxu0 0.0
        %1785 = vmatpush.msra.mxu0 0.0
        %1786 = vmatpush.msra.mxu0 0.0
        %1787 = vmatpush.msra.mxu0 0.0
        %1788 = vmatpush.msra.mxu0 0.0
        %1789 = vmatpush.msra.mxu0 0.0
        %1790 = vmatpush.msra.mxu0 0.0
        %1791 = vmatpush.msra.mxu0 %v1768
        %1792 = vmatpush.msra.mxu0 %v1767
        %1793 = vmatpush.msra.mxu0 %v1766
        %1794 = vmatpush.msra.mxu0 %v1765
        %1795 = vmatmul.f32.gmra.mxu0 %v1774
        %v1796 = vpop.f32.mrf.mxu0
        %v1797 = vadd.f32 %v1771, %v1796
        %1798 = vmatmul.f32.gmra.mxu0 %v1777
        %v1799 = vpop.f32.mrf.mxu0
        %v1800 = vadd.f32 %v1771, %v1799
        %1801 = vdwg.mxu0
        %v1802 = vmax.f32 %v1797, 0.0
        %v1803 = vmax.f32 %v1800, 0.0
        %v1804 = vld [vmem:[%s25] sm:$0xff]
        %v1805 = vld [vmem:[%s25 + $0x8] sm:$0xff]
        %v1806 = vld [vmem:[%s25 + $0x10] sm:$0xff]
        %v1807 = vld [vmem:[%s25 + $0x18] sm:$0xff]
        %v1808 = vld [vmem:[#allocation7] sm:$0x1]
        %v1810 = vperm.slane %v1808, 0
        %v1813 = vsel %vm1408, %v1802, 0
        %v1816 = vsel %vm1408, %v1803, 0
        %1818 = vmatpush.msra.mxu0 0.0
        %1819 = vmatpush.msra.mxu0 0.0
        %1820 = vmatpush.msra.mxu0 0.0
        %1821 = vmatpush.msra.mxu0 0.0
        %1822 = vmatpush.msra.mxu0 0.0
        %1823 = vmatpush.msra.mxu0 0.0
        %1824 = vmatpush.msra.mxu0 0.0
        %1825 = vmatpush.msra.mxu0 0.0
        %1826 = vmatpush.msra.mxu0 0.0
        %1827 = vmatpush.msra.mxu0 0.0
        %1828 = vmatpush.msra.mxu0 0.0
        %1829 = vmatpush.msra.mxu0 0.0
        %1830 = vmatpush.msra.mxu0 %v1807
        %1831 = vmatpush.msra.mxu0 %v1806
        %1832 = vmatpush.msra.mxu0 %v1805
        %1833 = vmatpush.msra.mxu0 %v1804
        %1834 = vmatmul.f32.gmra.mxu0 %v1813
        %v1835 = vpop.f32.mrf.mxu0
        %v1836 = vadd.f32 %v1810, %v1835
        %1837 = vmatmul.f32.gmra.mxu0 %v1816
        %v1838 = vpop.f32.mrf.mxu0
        %v1839 = vadd.f32 %v1810, %v1838
        %1840 = vdwg.mxu0
        %v1841 = vadd.f32 %v1763, %v1836
        %v1842 = vadd.f32 %v1764, %v1839
        %v1843 = vsel %vm1408, %v1841, 0.0
        %1844 = vadd.xlane.f32.xlu0 %v1843
        %v1845 = vpop.xlane.xlu0 %1844
        %v1846 = vsel %vm1408, %v1842, 0.0
        %1847 = vadd.xlane.f32.xlu0 %v1846
        %v1848 = vpop.xlane.xlu0 %1847
        %v1849 = vmul.f32 %v1845, %v1714
        %v1850 = vmul.f32 %v1848, %v1714
        %v1851 = vsub.f32 %v1841, %v1849
        %v1852 = vsub.f32 %v1842, %v1850
        %v1853 = vmul.f32 %v1851, %v1851
        %v1854 = vmul.f32 %v1852, %v1852
        %v1855 = vsel %vm1408, %v1853, 0.0
        %1856 = vadd.xlane.f32.xlu0 %v1855
        %v1857 = vpop.xlane.xlu0 %1856
        %v1858 = vsel %vm1408, %v1854, 0.0
        %1859 = vadd.xlane.f32.xlu0 %v1858
        %v1860 = vpop.xlane.xlu0 %1859
        %v1861 = vmul.f32 %v1857, %v1714
        %v1862 = vmul.f32 %v1860, %v1714
        %v1863 = vadd.f32 %v1861, 1e-05
        %v1864 = vadd.f32 %v1862, 1e-05
        %v1865 = vrsqrt.pop %v1863
        %v1866 = vmul.f32 %v1865, %v1863
        %v1867 = vmul.f32 %v1866, %v1865
        %v1868 = vmul.f32 0.5, %v1867
        %v1869 = vsub.f32 1.5, %v1868
        %v1870 = vmul.f32 %v1865, %v1869
        %vm1871 = vweird.f32 %v1863
        %vm1872 = vweird.f32 %v1865
        %vm1873 = vmor %vm1871, %vm1872
        %v1874 = vsel %vm1873, %v1865, %v1870
        %v1875 = vrsqrt.pop %v1864
        %v1876 = vmul.f32 %v1875, %v1864
        %v1877 = vmul.f32 %v1876, %v1875
        %v1878 = vmul.f32 0.5, %v1877
        %v1879 = vsub.f32 1.5, %v1878
        %v1880 = vmul.f32 %v1875, %v1879
        %vm1881 = vweird.f32 %v1864
        %vm1882 = vweird.f32 %v1875
        %vm1883 = vmor %vm1881, %vm1882
        %v1884 = vsel %vm1883, %v1875, %v1880
        %v1885 = vmul.f32 %v1851, %v1874
        %v1886 = vmul.f32 %v1852, %v1884
        %v1887 = vld [vmem:[#allocation9] sm:$0x1]
        %v1889 = vperm.slane %v1887, 0
        %v1891 = vmul.f32 %v1885, %v1889
        %v1892 = vmul.f32 %v1886, %v1889
        %v1893 = vld [vmem:[#allocation10] sm:$0x1]
        %v1895 = vperm.slane %v1893, 0
        %v1897 = vadd.f32 %v1891, %v1895
        %v1898 = vadd.f32 %v1892, %v1895
        %v1899 = vld [vmem:[#allocation12] sm:$0xff]
        %v1900 = vld [vmem:[#allocation12 + $0x8] sm:$0xff]
        %v1901 = vld [vmem:[#allocation12 + $0x10] sm:$0xff]
        %v1902 = vld [vmem:[#allocation12 + $0x18] sm:$0xff]
        %v1903 = vld [vmem:[#allocation13] sm:$0x1]
        %v1905 = vperm.slane %v1903, 0
        %v1908 = vsel %vm1408, %v1897, 0
        %v1911 = vsel %vm1408, %v1898, 0
        %1913 = vmatpush.msra.mxu0 0.0
        %1914 = vmatpush.msra.mxu0 0.0
        %1915 = vmatpush.msra.mxu0 0.0
        %1916 = vmatpush.msra.mxu0 0.0
        %1917 = vmatpush.msra.mxu0 0.0
        %1918 = vmatpush.msra.mxu0 0.0
        %1919 = vmatpush.msra.mxu0 0.0
        %1920 = vmatpush.msra.mxu0 0.0
        %1921 = vmatpush.msra.mxu0 0.0
        %1922 = vmatpush.msra.mxu0 0.0
        %1923 = vmatpush.msra.mxu0 0.0
        %1924 = vmatpush.msra.mxu0 0.0
        %1925 = vmatpush.msra.mxu0 %v1902
        %1926 = vmatpush.msra.mxu0 %v1901
        %1927 = vmatpush.msra.mxu0 %v1900
        %1928 = vmatpush.msra.mxu0 %v1899
        %1929 = vmatmul.f32.gmra.mxu0 %v1908
        %v1930 = vpop.f32.mrf.mxu0
        %v1931 = vadd.f32 %v1905, %v1930
        %1932 = vmatmul.f32.gmra.mxu0 %v1911
        %v1933 = vpop.f32.mrf.mxu0
        %v1934 = vadd.f32 %v1905, %v1933
        %1935 = vdwg.mxu0
        %1938 = vrot.lane.b32.xlu0 %v1931, 96
        %v1939 = vpop.permute.xlu0 %1938
        %1940 = vrot.lane.b32.xlu0 %v1934, 96
        %v1941 = vpop.permute.xlu0 %1940
        %v1942 = vsel %vm1366, %v1931, 0
        %v1944 = vsel %vm1366, %v1934, 0
        %v1946 = vsel %vm1366, %v1939, 0
        %v1948 = vsel %vm1366, %v1941, 0
        %1950 = vmatpush.xpose.msra.mxu0 0.0
        %1951 = vmatpush.xpose.msra.mxu0 0.0
        %1952 = vmatpush.xpose.msra.mxu0 0.0
        %1953 = vmatpush.xpose.msra.mxu0 0.0
        %1954 = vmatpush.xpose.msra.mxu0 0.0
        %1955 = vmatpush.xpose.msra.mxu0 0.0
        %1956 = vmatpush.xpose.msra.mxu0 0.0
        %1957 = vmatpush.xpose.msra.mxu0 0.0
        %1958 = vmatpush.xpose.msra.mxu0 0.0
        %1959 = vmatpush.xpose.msra.mxu0 0.0
        %1960 = vmatpush.xpose.msra.mxu0 0.0
        %1961 = vmatpush.xpose.msra.mxu0 0.0
        %1962 = vmatpush.xpose.msra.mxu0 0.0
        %1963 = vmatpush.xpose.msra.mxu0 0.0
        %1964 = vmatpush.xpose.msra.mxu0 %v1948
        %1965 = vmatpush.xpose.msra.mxu0 %v1946
        %1966 = vmatmul.f32.gmra.mxu0 %v1942
        %v1967 = vpop.f32.mrf.mxu0
        %v1968 = vadd.f32 0.0, %v1967
        %1969 = vmatmul.f32.gmra.mxu0 %v1944
        %v1970 = vpop.f32.mrf.mxu0
        %v1971 = vadd.f32 0.0, %v1970
        %1972 = vdwg.mxu0
        %v1973 = vmul.f32 %v1968, 0.25
        %v1974 = vmul.f32 %v1971, 0.25
        %v1975 = vsel %vm1366, %v1973, -inf
        %1976 = vmax.xlane.f32.xlu0 %v1975
        %v1977 = vpop.xlane.xlu0 %1976
        %v1978 = vsel %vm1366, %v1974, -inf
        %1979 = vmax.xlane.f32.xlu0 %v1978
        %v1980 = vpop.xlane.xlu0 %1979
        %v1981 = vsub.f32 %v1973, %v1977
        %v1982 = vsub.f32 %v1974, %v1980
        %v1983 = vmul.f32 %v1981, 1.442695
        %v1984 = vpow.pop %v1983
        %v1985 = vmul.f32 %v1982, 1.442695
        %v1986 = vpow.pop %v1985
        %v1987 = vsel %vm1366, %v1984, 0.0
        %1988 = vadd.xlane.f32.xlu0 %v1987
        %v1989 = vpop.xlane.xlu0 %1988
        %v1990 = vsel %vm1366, %v1986, 0.0
        %1991 = vadd.xlane.f32.xlu0 %v1990
        %v1992 = vpop.xlane.xlu0 %1991
        %v1993 = vrcp.pop %v1989
        %v1994 = vrcp.pop %v1992
        %v1995 = vmul.f32 %v1984, %v1993
        %v1996 = vmul.f32 %v1986, %v1994
        %1997 = vrot.lane.b32.xlu0 %v1931, 64
        %v1998 = vpop.permute.xlu0 %1997
        %1999 = vrot.lane.b32.xlu0 %v1934, 64
        %v2000 = vpop.permute.xlu0 %1999
        %v2004 = vsel %vm1366, %v1995, 0
        %v2007 = vsel %vm1366, %v1996, 0
        %2009 = vmatpush.msra.mxu0 0.0
        %2010 = vmatpush.msra.mxu0 0.0
        %2011 = vmatpush.msra.mxu0 0.0
        %2012 = vmatpush.msra.mxu0 0.0
        %2013 = vmatpush.msra.mxu0 0.0
        %2014 = vmatpush.msra.mxu0 0.0
        %2015 = vmatpush.msra.mxu0 0.0
        %2016 = vmatpush.msra.mxu0 0.0
        %2017 = vmatpush.msra.mxu0 0.0
        %2018 = vmatpush.msra.mxu0 0.0
        %2019 = vmatpush.msra.mxu0 0.0
        %2020 = vmatpush.msra.mxu0 0.0
        %2021 = vmatpush.msra.mxu0 0.0
        %2022 = vmatpush.msra.mxu0 0.0
        %2023 = vmatpush.msra.mxu0 %v2000
        %2024 = vmatpush.msra.mxu0 %v1998
        %2025 = vmatmul.f32.gmra.mxu0 %v2004
        %v2026 = vpop.f32.mrf.mxu0
        %v2027 = vadd.f32 0.0, %v2026
        %2028 = vmatmul.f32.gmra.mxu0 %v2007
        %v2029 = vpop.f32.mrf.mxu0
        %v2030 = vadd.f32 0.0, %v2029
        %2031 = vdwg.mxu0
        %v2032 = vld [vmem:[#allocation15] sm:$0xff]
        %v2033 = vld [vmem:[#allocation15 + $0x8] sm:$0xff]
        %2034 = vrot.lane.b32.xlu0 %v1931, 112
        %v2035 = vpop.permute.xlu0 %2034
        %2036 = vrot.lane.b32.xlu0 %v1934, 112
        %v2037 = vpop.permute.xlu0 %2036
        %2038 = vrot.lane.b32.xlu0 %v1931, 80
        %v2039 = vpop.permute.xlu0 %2038
        %2040 = vrot.lane.b32.xlu0 %v1934, 80
        %v2041 = vpop.permute.xlu0 %2040
        %v2042 = vsel %vm1366, %v2035, 0
        %v2044 = vsel %vm1366, %v2037, 0
        %v2046 = vsel %vm1366, %v2039, 0
        %v2048 = vsel %vm1366, %v2041, 0
        %2050 = vmatpush.xpose.msra.mxu0 0.0
        %2051 = vmatpush.xpose.msra.mxu0 0.0
        %2052 = vmatpush.xpose.msra.mxu0 0.0
        %2053 = vmatpush.xpose.msra.mxu0 0.0
        %2054 = vmatpush.xpose.msra.mxu0 0.0
        %2055 = vmatpush.xpose.msra.mxu0 0.0
        %2056 = vmatpush.xpose.msra.mxu0 0.0
        %2057 = vmatpush.xpose.msra.mxu0 0.0
        %2058 = vmatpush.xpose.msra.mxu0 0.0
        %2059 = vmatpush.xpose.msra.mxu0 0.0
        %2060 = vmatpush.xpose.msra.mxu0 0.0
        %2061 = vmatpush.xpose.msra.mxu0 0.0
        %2062 = vmatpush.xpose.msra.mxu0 0.0
        %2063 = vmatpush.xpose.msra.mxu0 0.0
        %2064 = vmatpush.xpose.msra.mxu0 %v2048
        %2065 = vmatpush.xpose.msra.mxu0 %v2046
        %2066 = vmatmul.f32.gmra.mxu0 %v2042
        %v2067 = vpop.f32.mrf.mxu0
        %v2068 = vadd.f32 0.0, %v2067
        %2069 = vmatmul.f32.gmra.mxu0 %v2044
        %v2070 = vpop.f32.mrf.mxu0
        %v2071 = vadd.f32 0.0, %v2070
        %2072 = vdwg.mxu0
        %v2073 = vmul.f32 %v2068, 0.25
        %v2074 = vmul.f32 %v2071, 0.25
        %v2075 = vsel %vm1366, %v2073, -inf
        %2076 = vmax.xlane.f32.xlu0 %v2075
        %v2077 = vpop.xlane.xlu0 %2076
        %v2078 = vsel %vm1366, %v2074, -inf
        %2079 = vmax.xlane.f32.xlu0 %v2078
        %v2080 = vpop.xlane.xlu0 %2079
        %v2081 = vsub.f32 %v2073, %v2077
        %v2082 = vsub.f32 %v2074, %v2080
        %v2083 = vmul.f32 %v2081, 1.442695
        %v2084 = vpow.pop %v2083
        %v2085 = vmul.f32 %v2082, 1.442695
        %v2086 = vpow.pop %v2085
        %v2087 = vsel %vm1366, %v2084, 0.0
        %2088 = vadd.xlane.f32.xlu0 %v2087
        %v2089 = vpop.xlane.xlu0 %2088
        %v2090 = vsel %vm1366, %v2086, 0.0
        %2091 = vadd.xlane.f32.xlu0 %v2090
        %v2092 = vpop.xlane.xlu0 %2091
        %v2093 = vrcp.pop %v2089
        %v2094 = vrcp.pop %v2092
        %v2095 = vmul.f32 %v2084, %v2093
        %v2096 = vmul.f32 %v2086, %v2094
        %2097 = vrot.lane.b32.xlu0 %v1931, 48
        %v2098 = vpop.permute.xlu0 %2097
        %2099 = vrot.lane.b32.xlu0 %v1934, 48
        %v2100 = vpop.permute.xlu0 %2099
        %v2104 = vsel %vm1366, %v2095, 0
        %v2107 = vsel %vm1366, %v2096, 0
        %2109 = vmatpush.msra.mxu0 0.0
        %2110 = vmatpush.msra.mxu0 0.0
        %2111 = vmatpush.msra.mxu0 0.0
        %2112 = vmatpush.msra.mxu0 0.0
        %2113 = vmatpush.msra.mxu0 0.0
        %2114 = vmatpush.msra.mxu0 0.0
        %2115 = vmatpush.msra.mxu0 0.0
        %2116 = vmatpush.msra.mxu0 0.0
        %2117 = vmatpush.msra.mxu0 0.0
        %2118 = vmatpush.msra.mxu0 0.0
        %2119 = vmatpush.msra.mxu0 0.0
        %2120 = vmatpush.msra.mxu0 0.0
        %2121 = vmatpush.msra.mxu0 0.0
        %2122 = vmatpush.msra.mxu0 0.0
        %2123 = vmatpush.msra.mxu0 %v2100
        %2124 = vmatpush.msra.mxu0 %v2098
        %2125 = vmatmul.f32.gmra.mxu0 %v2104
        %v2126 = vpop.f32.mrf.mxu0
        %v2127 = vadd.f32 0.0, %v2126
        %2128 = vmatmul.f32.gmra.mxu0 %v2107
        %v2129 = vpop.f32.mrf.mxu0
        %v2130 = vadd.f32 0.0, %v2129
        %2131 = vdwg.mxu0
        %v2132 = vld [vmem:[#allocation15 + $0x10] sm:$0xff]
        %v2133 = vld [vmem:[#allocation15 + $0x18] sm:$0xff]
        %v2135 = vsel %vm1366, %v2127, 0
        %v2138 = vsel %vm1366, %v2130, 0
        %2140 = vmatpush.msra.mxu0 0.0
        %2141 = vmatpush.msra.mxu0 0.0
        %2142 = vmatpush.msra.mxu0 0.0
        %2143 = vmatpush.msra.mxu0 0.0
        %2144 = vmatpush.msra.mxu0 0.0
        %2145 = vmatpush.msra.mxu0 0.0
        %2146 = vmatpush.msra.mxu0 0.0
        %2147 = vmatpush.msra.mxu0 0.0
        %2148 = vmatpush.msra.mxu0 0.0
        %2149 = vmatpush.msra.mxu0 0.0
        %2150 = vmatpush.msra.mxu0 0.0
        %2151 = vmatpush.msra.mxu0 0.0
        %2152 = vmatpush.msra.mxu0 0.0
        %2153 = vmatpush.msra.mxu0 0.0
        %2154 = vmatpush.msra.mxu0 %v2133
        %2155 = vmatpush.msra.mxu0 %v2132
        %2156 = vmatmul.f32.gmra.mxu0 %v2135
        %v2157 = vpop.f32.mrf.mxu0
        %v2158 = vadd.f32 0.0, %v2157
        %2159 = vmatmul.f32.gmra.mxu0 %v2138
        %v2160 = vpop.f32.mrf.mxu0
        %v2161 = vadd.f32 0.0, %v2160
        %2162 = vdwg.mxu0
        %v2164 = vsel %vm1366, %v2027, 0
        %v2167 = vsel %vm1366, %v2030, 0
        %2169 = vmatpush.msra.mxu0 0.0
        %2170 = vmatpush.msra.mxu0 0.0
        %2171 = vmatpush.msra.mxu0 0.0
        %2172 = vmatpush.msra.mxu0 0.0
        %2173 = vmatpush.msra.mxu0 0.0
        %2174 = vmatpush.msra.mxu0 0.0
        %2175 = vmatpush.msra.mxu0 0.0
        %2176 = vmatpush.msra.mxu0 0.0
        %2177 = vmatpush.msra.mxu0 0.0
        %2178 = vmatpush.msra.mxu0 0.0
        %2179 = vmatpush.msra.mxu0 0.0
        %2180 = vmatpush.msra.mxu0 0.0
        %2181 = vmatpush.msra.mxu0 0.0
        %2182 = vmatpush.msra.mxu0 0.0
        %2183 = vmatpush.msra.mxu0 %v2033
        %2184 = vmatpush.msra.mxu0 %v2032
        %2185 = vmatmul.f32.gmra.mxu0 %v2164
        %v2186 = vpop.f32.mrf.mxu0
        %v2187 = vadd.f32 %v2158, %v2186
        %2188 = vmatmul.f32.gmra.mxu0 %v2167
        %v2189 = vpop.f32.mrf.mxu0
        %v2190 = vadd.f32 %v2161, %v2189
        %2191 = vdwg.mxu0
        %v2192 = vld [vmem:[#allocation16] sm:$0x1]
        %v2194 = vperm.slane %v2192, 0
        %v2196 = vadd.f32 %v2187, %v2194
        %v2197 = vadd.f32 %v2190, %v2194
        %v2198 = vadd.f32 %v1897, %v2196
        %v2199 = vadd.f32 %v1898, %v2197
        %v2200 = vsel %vm1408, %v2198, 0.0
        %2201 = vadd.xlane.f32.xlu0 %v2200
        %v2202 = vpop.xlane.xlu0 %2201
        %v2203 = vsel %vm1408, %v2199, 0.0
        %2204 = vadd.xlane.f32.xlu0 %v2203
        %v2205 = vpop.xlane.xlu0 %2204
        %v2206 = vmul.f32 %v2202, %v1714
        %v2207 = vmul.f32 %v2205, %v1714
        %v2208 = vsub.f32 %v2198, %v2206
        %v2209 = vsub.f32 %v2199, %v2207
        %v2210 = vmul.f32 %v2208, %v2208
        %v2211 = vmul.f32 %v2209, %v2209
        %v2212 = vsel %vm1408, %v2210, 0.0
        %2213 = vadd.xlane.f32.xlu0 %v2212
        %v2214 = vpop.xlane.xlu0 %2213
        %v2215 = vsel %vm1408, %v2211, 0.0
        %2216 = vadd.xlane.f32.xlu0 %v2215
        %v2217 = vpop.xlane.xlu0 %2216
        %v2218 = vmul.f32 %v2214, %v1714
        %v2219 = vmul.f32 %v2217, %v1714
        %v2220 = vadd.f32 %v2218, 1e-05
        %v2221 = vadd.f32 %v2219, 1e-05
        %v2222 = vrsqrt.pop %v2220
        %v2223 = vmul.f32 %v2222, %v2220
        %v2224 = vmul.f32 %v2223, %v2222
        %v2225 = vmul.f32 0.5, %v2224
        %v2226 = vsub.f32 1.5, %v2225
        %v2227 = vmul.f32 %v2222, %v2226
        %vm2228 = vweird.f32 %v2220
        %vm2229 = vweird.f32 %v2222
        %vm2230 = vmor %vm2228, %vm2229
        %v2231 = vsel %vm2230, %v2222, %v2227
        %v2232 = vrsqrt.pop %v2221
        %v2233 = vmul.f32 %v2232, %v2221
        %v2234 = vmul.f32 %v2233, %v2232
        %v2235 = vmul.f32 0.5, %v2234
        %v2236 = vsub.f32 1.5, %v2235
        %v2237 = vmul.f32 %v2232, %v2236
        %vm2238 = vweird.f32 %v2221
        %vm2239 = vweird.f32 %v2232
        %vm2240 = vmor %vm2238, %vm2239
        %v2241 = vsel %vm2240, %v2232, %v2237
        %v2242 = vmul.f32 %v2208, %v2231
        %v2243 = vmul.f32 %v2209, %v2241
        %v2244 = vld [vmem:[#allocation18] sm:$0x1]
        %v2246 = vperm.slane %v2244, 0
        %v2248 = vmul.f32 %v2242, %v2246
        %v2249 = vmul.f32 %v2243, %v2246
        %v2250 = vld [vmem:[#allocation19] sm:$0x1]
        %v2252 = vperm.slane %v2250, 0
        %v2254 = vadd.f32 %v2248, %v2252
        %v2255 = vadd.f32 %v2249, %v2252
        %v2256 = vld [vmem:[%s45] sm:$0xff]
        %v2257 = vld [vmem:[%s45 + $0x8] sm:$0xff]
        %v2258 = vld [vmem:[%s45 + $0x10] sm:$0xff]
        %v2259 = vld [vmem:[%s45 + $0x18] sm:$0xff]
        %v2260 = vld [vmem:[#allocation21] sm:$0x1]
        %v2262 = vperm.slane %v2260, 0
        %v2265 = vsel %vm1408, %v2254, 0
        %v2268 = vsel %vm1408, %v2255, 0
        %2270 = vmatpush.msra.mxu0 0.0
        %2271 = vmatpush.msra.mxu0 0.0
        %2272 = vmatpush.msra.mxu0 0.0
        %2273 = vmatpush.msra.mxu0 0.0
        %2274 = vmatpush.msra.mxu0 0.0
        %2275 = vmatpush.msra.mxu0 0.0
        %2276 = vmatpush.msra.mxu0 0.0
        %2277 = vmatpush.msra.mxu0 0.0
        %2278 = vmatpush.msra.mxu0 0.0
        %2279 = vmatpush.msra.mxu0 0.0
        %2280 = vmatpush.msra.mxu0 0.0
        %2281 = vmatpush.msra.mxu0 0.0
        %2282 = vmatpush.msra.mxu0 %v2259
        %2283 = vmatpush.msra.mxu0 %v2258
        %2284 = vmatpush.msra.mxu0 %v2257
        %2285 = vmatpush.msra.mxu0 %v2256
        %2286 = vmatmul.f32.gmra.mxu0 %v2265
        %v2287 = vpop.f32.mrf.mxu0
        %v2288 = vadd.f32 %v2262, %v2287
        %2289 = vmatmul.f32.gmra.mxu0 %v2268
        %v2290 = vpop.f32.mrf.mxu0
        %v2291 = vadd.f32 %v2262, %v2290
        %2292 = vdwg.mxu0
        %v2293 = vmax.f32 %v2288, 0.0
        %v2294 = vmax.f32 %v2291, 0.0
        %v2295 = vld [vmem:[#allocation22] sm:$0xff]
        %v2296 = vld [vmem:[#allocation22 + $0x8] sm:$0xff]
        %v2297 = vld [vmem:[#allocation24] sm:$0x1]
        %v2299 = vperm.slane %v2297, 0
        %v2302 = vsel %vm1366, %v2293, 0
        %v2305 = vsel %vm1366, %v2294, 0
        %2307 = vmatpush.msra.mxu0 0.0
        %2308 = vmatpush.msra.mxu0 0.0
        %2309 = vmatpush.msra.mxu0 0.0
        %2310 = vmatpush.msra.mxu0 0.0
        %2311 = vmatpush.msra.mxu0 0.0
        %2312 = vmatpush.msra.mxu0 0.0
        %2313 = vmatpush.msra.mxu0 0.0
        %2314 = vmatpush.msra.mxu0 0.0
        %2315 = vmatpush.msra.mxu0 0.0
        %2316 = vmatpush.msra.mxu0 0.0
        %2317 = vmatpush.msra.mxu0 0.0
        %2318 = vmatpush.msra.mxu0 0.0
        %2319 = vmatpush.msra.mxu0 0.0
        %2320 = vmatpush.msra.mxu0 0.0
        %2321 = vmatpush.msra.mxu0 %v2296
        %2322 = vmatpush.msra.mxu0 %v2295
        %2323 = vmatmul.f32.gmra.mxu0 %v2302
        %v2324 = vpop.f32.mrf.mxu0
        %v2325 = vadd.f32 %v2299, %v2324
        %2326 = vmatmul.f32.gmra.mxu0 %v2305
        %v2327 = vpop.f32.mrf.mxu0
        %v2328 = vadd.f32 %v2299, %v2327
        %2329 = vdwg.mxu0
        %v2330 = vadd.f32 %v2254, %v2325
        %v2331 = vadd.f32 %v2255, %v2328
        %v2332 = vsel %vm1408, %v2330, 0.0
        %2333 = vadd.xlane.f32.xlu0 %v2332
        %v2334 = vpop.xlane.xlu0 %2333
        %v2335 = vsel %vm1408, %v2331, 0.0
        %2336 = vadd.xlane.f32.xlu0 %v2335
        %v2337 = vpop.xlane.xlu0 %2336
        %v2338 = vmul.f32 %v2334, %v1714
        %v2339 = vmul.f32 %v2337, %v1714
        %v2340 = vsub.f32 %v2330, %v2338
        %v2341 = vsub.f32 %v2331, %v2339
        %v2342 = vmul.f32 %v2340, %v2340
        %v2343 = vmul.f32 %v2341, %v2341
        %v2344 = vsel %vm1408, %v2342, 0.0
        %2345 = vadd.xlane.f32.xlu0 %v2344
        %v2346 = vpop.xlane.xlu0 %2345
        %v2347 = vsel %vm1408, %v2343, 0.0
        %2348 = vadd.xlane.f32.xlu0 %v2347
        %v2349 = vpop.xlane.xlu0 %2348
        %v2350 = vmul.f32 %v2346, %v1714
        %v2351 = vmul.f32 %v2349, %v1714
        %v2352 = vadd.f32 %v2350, 1e-05
        %v2353 = vadd.f32 %v2351, 1e-05
        %v2354 = vrsqrt.pop %v2352
        %v2355 = vmul.f32 %v2354, %v2352
        %v2356 = vmul.f32 %v2355, %v2354
        %v2357 = vmul.f32 0.5, %v2356
        %v2358 = vsub.f32 1.5, %v2357
        %v2359 = vmul.f32 %v2354, %v2358
        %vm2360 = vweird.f32 %v2352
        %vm2361 = vweird.f32 %v2354
        %vm2362 = vmor %vm2360, %vm2361
        %v2363 = vsel %vm2362, %v2354, %v2359
        %v2364 = vrsqrt.pop %v2353
        %v2365 = vmul.f32 %v2364, %v2353
        %v2366 = vmul.f32 %v2365, %v2364
        %v2367 = vmul.f32 0.5, %v2366
        %v2368 = vsub.f32 1.5, %v2367
        %v2369 = vmul.f32 %v2364, %v2368
        %vm2370 = vweird.f32 %v2353
        %vm2371 = vweird.f32 %v2364
        %vm2372 = vmor %vm2370, %vm2371
        %v2373 = vsel %vm2372, %v2364, %v2369
        %v2374 = vmul.f32 %v2340, %v2363
        %v2375 = vmul.f32 %v2341, %v2373
        %v2376 = vld [vmem:[#allocation25] sm:$0x1]
        %v2378 = vperm.slane %v2376, 0
        %v2380 = vmul.f32 %v2374, %v2378
        %v2381 = vmul.f32 %v2375, %v2378
        %v2382 = vld [vmem:[#allocation27] sm:$0x1]
        %v2384 = vperm.slane %v2382, 0
        %v2386 = vadd.f32 %v2380, %v2384
        %v2387 = vadd.f32 %v2381, %v2384
        %v2388 = vld [vmem:[%s57] sm:$0xff]
        %v2389 = vld [vmem:[%s57 + $0x8] sm:$0xff]
        %v2390 = vld [vmem:[%s57 + $0x10] sm:$0xff]
        %v2391 = vld [vmem:[%s57 + $0x18] sm:$0xff]
        %v2392 = vld [vmem:[#allocation28] sm:$0x1]
        %v2394 = vperm.slane %v2392, 0
        %v2397 = vsel %vm1408, %v2386, 0
        %v2400 = vsel %vm1408, %v2387, 0
        %2402 = vmatpush.msra.mxu0 0.0
        %2403 = vmatpush.msra.mxu0 0.0
        %2404 = vmatpush.msra.mxu0 0.0
        %2405 = vmatpush.msra.mxu0 0.0
        %2406 = vmatpush.msra.mxu0 0.0
        %2407 = vmatpush.msra.mxu0 0.0
        %2408 = vmatpush.msra.mxu0 0.0
        %2409 = vmatpush.msra.mxu0 0.0
        %2410 = vmatpush.msra.mxu0 0.0
        %2411 = vmatpush.msra.mxu0 0.0
        %2412 = vmatpush.msra.mxu0 0.0
        %2413 = vmatpush.msra.mxu0 0.0
        %2414 = vmatpush.msra.mxu0 %v2391
        %2415 = vmatpush.msra.mxu0 %v2390
        %2416 = vmatpush.msra.mxu0 %v2389
        %2417 = vmatpush.msra.mxu0 %v2388
        %2418 = vmatmul.f32.gmra.mxu0 %v2397
        %v2419 = vpop.f32.mrf.mxu0
        %v2420 = vadd.f32 %v2394, %v2419
        %2421 = vmatmul.f32.gmra.mxu0 %v2400
        %v2422 = vpop.f32.mrf.mxu0
        %v2423 = vadd.f32 %v2394, %v2422
        %2424 = vdwg.mxu0
        %vm2425 = vcmask 23552
        %v2426 = vsel %vm2425, %v2420, 0.0
        %v2427 = vsel %vm2425, %v2423, 0.0
        %v2428 = vadd.f32 %v2426, %v2427
        %v2429 = vrot.slane %v2428, 4
        %v2430 = vadd.f32 %v2428, %v2429
        %v2431 = vrot.slane %v2430, 2
        %v2432 = vadd.f32 %v2430, %v2431
        %v2433 = vrot.slane %v2432, 1
        %v2434 = vadd.f32 %v2432, %v2433
        %v2435 = vrcp.pop 16.0
        %v2436 = vmul.f32 16.0, %v2435
        %v2437 = vsub.f32 1.0, %v2436
        %v2438 = vmul.f32 %v2435, %v2437
        %v2439 = vadd.f32 %v2435, %v2438
        %vm2440 = vweird.f32 %v2435
        %v2441 = vsel %vm2440, %v2435, %v2439
        %v2442 = vmul.f32 %v2434, %v2441
        %v2443 = vsub.f32 %v2420, %v2442
        %v2444 = vsub.f32 %v2423, %v2442
        %v2445 = vmul.f32 %v2443, %v2443
        %v2446 = vmul.f32 %v2444, %v2444
        %v2447 = vsel %vm2425, %v2445, 0.0
        %2448 = vadd.xlane.f32.xlu0 %v2447
        %v2449 = vpop.xlane.xlu0 %2448
        %v2450 = vsel %vm2425, %v2446, 0.0
        %2451 = vadd.xlane.f32.xlu0 %v2450
        %v2452 = vpop.xlane.xlu0 %2451
        %v2453 = vmax.f32 %v2449, %v2452
        %v2454 = vrot.slane %v2453, 4
        %v2455 = vmax.f32 %v2453, %v2454
        %v2456 = vrot.slane %v2455, 2
        %v2457 = vmax.f32 %v2455, %v2456
        %v2458 = vrot.slane %v2457, 1
        %v2459 = vmax.f32 %v2457, %v2458
        %s2460 = vtos %v2459
        %s2461 = sadd.f32 %s2460, 1e-12
        %v2462 = vstv %s2461
        %v2463 = vrsqrt.pop %v2462
        %v2464 = vmul.f32 %v2463, %v2462
        %v2465 = vmul.f32 %v2464, %v2463
        %v2466 = vmul.f32 0.5, %v2465
        %v2467 = vsub.f32 1.5, %v2466
        %v2468 = vmul.f32 %v2463, %v2467
        %vm2469 = vweird.f32 %v2462
        %vm2470 = vweird.f32 %v2463
        %vm2471 = vmor %vm2469, %vm2470
        %v2472 = vsel %vm2471, %v2463, %v2468
        %s2473 = vtos %v2472
        %v2474 = vstv %s2473
        %v2475 = vmul.f32 %v2443, %v2474
        %v2476 = vmul.f32 %v2444, %v2474
        %v2477 = vld [vmem:[%s61] sm:$0xff]
        %v2478 = vld [vmem:[%s61 + $0x8] sm:$0xff]
        %v2479 = vld [vmem:[%s61 + $0x10] sm:$0xff]
        %v2480 = vld [vmem:[%s61 + $0x18] sm:$0xff]
        %v2481 = vld [vmem:[#allocation30] sm:$0x1]
        %v2483 = vperm.slane %v2481, 0
        %2485 = vmatpush.msra.mxu0 0.0
        %2486 = vmatpush.msra.mxu0 0.0
        %2487 = vmatpush.msra.mxu0 0.0
        %2488 = vmatpush.msra.mxu0 0.0
        %2489 = vmatpush.msra.mxu0 0.0
        %2490 = vmatpush.msra.mxu0 0.0
        %2491 = vmatpush.msra.mxu0 0.0
        %2492 = vmatpush.msra.mxu0 0.0
        %2493 = vmatpush.msra.mxu0 0.0
        %2494 = vmatpush.msra.mxu0 0.0
        %2495 = vmatpush.msra.mxu0 0.0
        %2496 = vmatpush.msra.mxu0 0.0
        %2497 = vmatpush.msra.mxu0 %v2480
        %2498 = vmatpush.msra.mxu0 %v2479
        %2499 = vmatpush.msra.mxu0 %v2478
        %2500 = vmatpush.msra.mxu0 %v2477
        %2501 = vmatmul.f32.gmra.mxu0 %v2397
        %v2502 = vpop.f32.mrf.mxu0
        %v2503 = vadd.f32 %v2483, %v2502
        %2504 = vmatmul.f32.gmra.mxu0 %v2400
        %v2505 = vpop.f32.mrf.mxu0
        %v2506 = vadd.f32 %v2483, %v2505
        %2507 = vdwg.mxu0
        %v2508 = vmax.f32 %v2503, 0.0
        %v2509 = vmax.f32 %v2506, 0.0
        %v2510 = vld [vmem:[#allocation31] sm:$0xff]
        %v2511 = vld [vmem:[#allocation31 + $0x8] sm:$0x3]
        %v2512 = vld [vmem:[#allocation33] sm:$0x1]
        %v2514 = vperm.slane %v2512, 0
        %vm2516 = vcmask 80896
        %v2518 = vsel %vm2516, %v2508, 0
        %v2521 = vsel %vm2516, %v2509, 0
        %vm2523 = vcmask 1041408
        %v2525 = vsel %vm2523, %v2511, 0
        %2527 = vmatpush.msra.mxu0 0.0
        %2528 = vmatpush.msra.mxu0 0.0
        %2529 = vmatpush.msra.mxu0 0.0
        %2530 = vmatpush.msra.mxu0 0.0
        %2531 = vmatpush.msra.mxu0 0.0
        %2532 = vmatpush.msra.mxu0 0.0
        %2533 = vmatpush.msra.mxu0 0.0
        %2534 = vmatpush.msra.mxu0 0.0
        %2535 = vmatpush.msra.mxu0 0.0
        %2536 = vmatpush.msra.mxu0 0.0
        %2537 = vmatpush.msra.mxu0 0.0
        %2538 = vmatpush.msra.mxu0 0.0
        %2539 = vmatpush.msra.mxu0 0.0
        %2540 = vmatpush.msra.mxu0 0.0
        %2541 = vmatpush.msra.mxu0 %v2525
        %2542 = vmatpush.msra.mxu0 %v2510
        %2543 = vmatmul.f32.gmra.mxu0 %v2518
        %v2544 = vpop.f32.mrf.mxu0
        %v2545 = vadd.f32 %v2514, %v2544
        %2546 = vmatmul.f32.gmra.mxu0 %v2521
        %v2547 = vpop.f32.mrf.mxu0
        %v2548 = vadd.f32 %v2514, %v2547
        %2549 = vdwg.mxu0
        %2550 = vxpose.xlu0.b32.start [1/16] %v2475, 128
        %2551 = vxpose.xlu0.b32.cont [2/16] %v2476, 128
        %2552 = vxpose.xlu0.b32.cont [3/16] 0.0, 128
        %2553 = vxpose.xlu0.b32.cont [4/16] 0.0, 128
        %2554 = vxpose.xlu0.b32.cont [5/16] 0.0, 128
        %2555 = vxpose.xlu0.b32.cont [6/16] 0.0, 128
        %2556 = vxpose.xlu0.b32.cont [7/16] 0.0, 128
        %2557 = vxpose.xlu0.b32.cont [8/16] 0.0, 128
        %2558 = vxpose.xlu0.b32.cont [9/16] 0.0, 128
        %2559 = vxpose.xlu0.b32.cont [10/16] 0.0, 128
        %2560 = vxpose.xlu0.b32.cont [11/16] 0.0, 128
        %2561 = vxpose.xlu0.b32.cont [12/16] 0.0, 128
        %2562 = vxpose.xlu0.b32.cont [13/16] 0.0, 128
        %2563 = vxpose.xlu0.b32.cont [14/16] 0.0, 128
        %2564 = vxpose.xlu0.b32.cont [15/16] 0.0, 128
        %2565 = vxpose.xlu0.b32.end [16/16] 0.0, 128
        %v2566 = vpop.trf.xlu0
        %v2567 = vpop.trf.xlu0
        %v2568 = vpop.trf.xlu0
        %v2569 = vpop.trf.xlu0
        %v2570 = vpop.trf.xlu0
        %v2571 = vpop.trf.xlu0
        %v2572 = vpop.trf.xlu0
        %v2573 = vpop.trf.xlu0
        %v2574 = vpop.trf.xlu0
        %v2575 = vpop.trf.xlu0
        %v2576 = vpop.trf.xlu0
        %v2577 = vpop.trf.xlu0
        %v2578 = vpop.trf.xlu0
        %v2579 = vpop.trf.xlu0
        %v2580 = vpop.trf.xlu0
        %v2581 = vpop.trf.xlu0
        %2583 = vset.pattern.permute.xlu0 0
        %2584 = vperm.xlu0 %2583, %v2475
        %v2585 = vpop.permute.xlu0 %2584
        %2588 = vset.pattern.permute.xlu0 0
        %2589 = vperm.xlu0 %2588, %v2476
        %v2590 = vpop.permute.xlu0 %2589
        %v2592 = vperm.slane %v2566, 0
        %v2593 = vsub.f32 %v2585, %v2592
        %v2594 = vsub.f32 %v2590, %v2592
        %v2595 = vmul.f32 %v2593, %v2593
        %v2596 = vmul.f32 %v2594, %v2594
        %v2597 = vadd.f32 %v2595, 0.0
        %v2598 = vadd.f32 %v2596, 0.0
        %2599 = vrot.lane.b32.xlu0 %v2475, 127
        %v2600 = vpop.permute.xlu0 %2599
        %2601 = vrot.lane.b32.xlu0 %v2476, 127
        %v2602 = vpop.permute.xlu0 %2601
        %2605 = vxpose.xlu0.b32.start [1/16] %v2600, 128
        %2606 = vxpose.xlu0.b32.cont [2/16] %v2602, 128
        %2607 = vxpose.xlu0.b32.cont [3/16] 0.0, 128
        %2608 = vxpose.xlu0.b32.cont [4/16] 0.0, 128
        %2609 = vxpose.xlu0.b32.cont [5/16] 0.0, 128
        %2610 = vxpose.xlu0.b32.cont [6/16] 0.0, 128
        %2611 = vxpose.xlu0.b32.cont [7/16] 0.0, 128
        %2612 = vxpose.xlu0.b32.cont [8/16] 0.0, 128
        %2613 = vxpose.xlu0.b32.cont [9/16] 0.0, 128
        %2614 = vxpose.xlu0.b32.cont [10/16] 0.0, 128
        %2615 = vxpose.xlu0.b32.cont [11/16] 0.0, 128
        %2616 = vxpose.xlu0.b32.cont [12/16] 0.0, 128
        %2617 = vxpose.xlu0.b32.cont [13/16] 0.0, 128
        %2618 = vxpose.xlu0.b32.cont [14/16] 0.0, 128
        %2619 = vxpose.xlu0.b32.cont [15/16] 0.0, 128
        %2620 = vxpose.xlu0.b32.end [16/16] 0.0, 128
        %v2621 = vpop.trf.xlu0
        %v2622 = vpop.trf.xlu0
        %v2623 = vpop.trf.xlu0
        %v2624 = vpop.trf.xlu0
        %v2625 = vpop.trf.xlu0
        %v2626 = vpop.trf.xlu0
        %v2627 = vpop.trf.xlu0
        %v2628 = vpop.trf.xlu0
        %v2629 = vpop.trf.xlu0
        %v2630 = vpop.trf.xlu0
        %v2631 = vpop.trf.xlu0
        %v2632 = vpop.trf.xlu0
        %v2633 = vpop.trf.xlu0
        %v2634 = vpop.trf.xlu0
        %v2635 = vpop.trf.xlu0
        %v2636 = vpop.trf.xlu0
        %2637 = vset.pattern.permute.xlu0 1
        %2638 = vperm.xlu0 %2637, %v2475
        %v2639 = vpop.permute.xlu0 %2638
        %2641 = vset.pattern.permute.xlu0 1
        %2642 = vperm.xlu0 %2641, %v2476
        %v2643 = vpop.permute.xlu0 %2642
        %v2645 = vperm.slane %v2621, 0
        %v2646 = vsub.f32 %v2639, %v2645
        %v2647 = vsub.f32 %v2643, %v2645
        %v2648 = vmul.f32 %v2646, %v2646
        %v2649 = vmul.f32 %v2647, %v2647
        %v2650 = vadd.f32 %v2597, %v2648
        %v2651 = vadd.f32 %v2598, %v2649
        %2652 = vrot.lane.b32.xlu0 %v2475, 126
        %v2653 = vpop.permute.xlu0 %2652
        %2654 = vrot.lane.b32.xlu0 %v2476, 126
        %v2655 = vpop.permute.xlu0 %2654
        %2658 = vxpose.xlu0.b32.start [1/16] %v2653, 128
        %2659 = vxpose.xlu0.b32.cont [2/16] %v2655, 128
        %2660 = vxpose.xlu0.b32.cont [3/16] 0.0, 128
        %2661 = vxpose.xlu0.b32.cont [4/16] 0.0, 128
        %2662 = vxpose.xlu0.b32.cont [5/16] 0.0, 128
        %2663 = vxpose.xlu0.b32.cont [6/16] 0.0, 128
        %2664 = vxpose.xlu0.b32.cont [7/16] 0.0, 128
        %2665 = vxpose.xlu0.b32.cont [8/16] 0.0, 128
        %2666 = vxpose.xlu0.b32.cont [9/16] 0.0, 128
        %2667 = vxpose.xlu0.b32.cont [10/16] 0.0, 128
        %2668 = vxpose.xlu0.b32.cont [11/16] 0.0, 128
        %2669 = vxpose.xlu0.b32.cont [12/16] 0.0, 128
        %2670 = vxpose.xlu0.b32.cont [13/16] 0.0, 128
        %2671 = vxpose.xlu0.b32.cont [14/16] 0.0, 128
        %2672 = vxpose.xlu0.b32.cont [15/16] 0.0, 128
        %2673 = vxpose.xlu0.b32.end [16/16] 0.0, 128
        %v2674 = vpop.trf.xlu0
        %v2675 = vpop.trf.xlu0
        %v2676 = vpop.trf.xlu0
        %v2677 = vpop.trf.xlu0
        %v2678 = vpop.trf.xlu0
        %v2679 = vpop.trf.xlu0
        %v2680 = vpop.trf.xlu0
        %v2681 = vpop.trf.xlu0
        %v2682 = vpop.trf.xlu0
        %v2683 = vpop.trf.xlu0
        %v2684 = vpop.trf.xlu0
        %v2685 = vpop.trf.xlu0
        %v2686 = vpop.trf.xlu0
        %v2687 = vpop.trf.xlu0
        %v2688 = vpop.trf.xlu0
        %v2689 = vpop.trf.xlu0
        %2690 = vset.pattern.permute.xlu0 2
        %2691 = vperm.xlu0 %2690, %v2475
        %v2692 = vpop.permute.xlu0 %2691
        %2694 = vset.pattern.permute.xlu0 2
        %2695 = vperm.xlu0 %2694, %v2476
        %v2696 = vpop.permute.xlu0 %2695
        %v2698 = vperm.slane %v2674, 0
        %v2699 = vsub.f32 %v2692, %v2698
        %v2700 = vsub.f32 %v2696, %v2698
        %v2701 = vmul.f32 %v2699, %v2699
        %v2702 = vmul.f32 %v2700, %v2700
        %v2703 = vadd.f32 %v2650, %v2701
        %v2704 = vadd.f32 %v2651, %v2702
        %v2705 = vrsqrt.pop %v2703
        %v2706 = vmul.f32 %v2705, %v2703
        %v2707 = vmul.f32 %v2706, %v2705
        %v2708 = vmul.f32 0.5, %v2707
        %v2709 = vsub.f32 1.5, %v2708
        %v2710 = vmul.f32 %v2705, %v2709
        %v2711 = vmul.f32 %v2703, %v2710
        %vm2712 = vcmp.eq.f32.partialorder %v2703, inf
        %v2713 = vsel %vm2712, %v2703, %v2711
        %vm2714 = vcmp.eq.f32.partialorder %v2703, 0.0
        %v2715 = vand.u32 %v2703, 2147483648
        %v2716 = vsel %vm2714, %v2715, %v2713
        %v2717 = vrsqrt.pop %v2704
        %v2718 = vmul.f32 %v2717, %v2704
        %v2719 = vmul.f32 %v2718, %v2717
        %v2720 = vmul.f32 0.5, %v2719
        %v2721 = vsub.f32 1.5, %v2720
        %v2722 = vmul.f32 %v2717, %v2721
        %v2723 = vmul.f32 %v2704, %v2722
        %vm2724 = vcmp.eq.f32.partialorder %v2704, inf
        %v2725 = vsel %vm2724, %v2704, %v2723
        %vm2726 = vcmp.eq.f32.partialorder %v2704, 0.0
        %v2727 = vand.u32 %v2704, 2147483648
        %v2728 = vsel %vm2726, %v2727, %v2725
        %2731 = vrot.lane.b32.xlu0 %v2716, 3
        %v2732 = vpop.permute.xlu0 %2731
        %2733 = vrot.lane.b32.xlu0 %v2728, 3
        %v2734 = vpop.permute.xlu0 %2733
        %2739 = vrot.lane.b32.xlu0 %v2545, 19
        %v2740 = vpop.permute.xlu0 %2739
        %2741 = vrot.lane.b32.xlu0 %v2548, 19
        %v2742 = vpop.permute.xlu0 %2741
        %v2745 = vsel %vm2425, %v2475, %v2732
        %v2746 = vsel %vm2425, %v2476, %v2734
        %vm2747 = vcmask 154624
        %v2748 = vsel %vm2747, %v2745, %v2740
        %v2749 = vsel %vm2747, %v2746, %v2742
        %vm2750 = vcmask 236544
        %v2751 = vsel %vm2750, %v2748, 0.0
        %v2752 = vsel %vm2750, %v2749, 0.0
        %2753 = vst [vmem:[%s1357] sm:$0xff] %v2751
        %2754 = vst [vmem:[%s1357 + $0x8] sm:$0xff] %v2752
        %p2755 = scmp.lt.s32.totalorder %s91, 1
        %s2756 = scalar_select %p2755, %s91, 1
        %s2757 = smul.addr %s2756, 2
        %s2758 = smul.addr %s2757, 8
        %s2759 = scalar_lea.vmem %s69, %s2758
        // Predicated region
        $region241: #{_lambda_.1} parent=155 // pred_check
          %p2760 = pneg %p828
        $region242: #{_lambda_.1} parent=155 // pred_check_branch
          %2762 = sbr.rel (%p2760) target = $region244
        $region243: #{_lambda_.1} parent=155 // pred_region
          _
        $region244: #{_lambda_.1} parent=155 // pred_fallthru
          _
      $region156: #{_lambda_.1} parent=5 // pred_fallthru
        _
      %p2763 = scmp.le.s32.totalorder 2, %s86
      // Predicated region
      $region245: #{_lambda_.1} parent=5 // pred_check
        %p2764 = pneg %p2763
      $region246: #{_lambda_.1} parent=5 // pred_check_branch
        %2766 = sbr.rel (%p2764) target = $region248
      $region247: #{_lambda_.1} parent=5 // pred_region
        %s2767 = ssub.s32 %s86, 2
        // Predicated region
        $region249: #{_lambda_.1} parent=247 // pred_check
          %p2768 = pneg %p834
        $region250: #{_lambda_.1} parent=247 // pred_check_branch
          %2770 = sbr.rel (%p2768) target = $region252
        $region251: #{_lambda_.1} parent=247 // pred_region
          %p2771 = scmp.lt.s32.totalorder %s92, 1
          %s2772 = scalar_select %p2771, %s92, 1
          %s2773 = smul.addr %s2772, 2
          %s2774 = smul.addr %s2773, 8
          %s2775 = scalar_lea.vmem %s69, %s2774
        $region252: #{_lambda_.1} parent=247 // pred_fallthru
          _
      $region248: #{_lambda_.1} parent=5 // pred_fallthru
        _
    $region6: #{_lambda_.1} parent=1 // loop_footer
      %s90 = sadd.s32 1, %s86
    $region7: #{_lambda_.1} parent=1 // loop_footer_branch
      %85 = sbr.rel target = $region3
    $region8: #{_lambda_.1} parent=1 // loop_exit
      _
    %2776 = vsyncpa [#allocation3], 1
    %s2777 = scalar_lea.sflag [#allocation3], 1
    %2778 = vsyncpa %s2777, 1
    %2779 = vsyncpa [#allocation5], 1
    %2780 = vsyncpa [#allocation8], 1
    %2781 = vsyncpa [#allocation11], 1
    %2782 = vsyncpa [#allocation14], 1
    %2783 = vsyncpa [#allocation17], 1
    %2784 = vsyncpa [#allocation20], 1
    %2785 = vsyncpa [#allocation23], 1
    %2786 = vsyncpa [#allocation26], 1
    %2787 = vsyncpa [#allocation29], 1
    %2788 = vsyncpa [#allocation32], 1

</llo_original>
